<compile_context>
chip_gen: v6e
topology: v6e:2x2x1
jax: 0.10.0
libtpu: 0.0.40
codegen_flags: <defaults>
</compile_context>

<pallas_src>
import functools

import jax
import jax.numpy as jnp
import numpy as np
from jax import lax
from jax.experimental import pallas as pl
from jax.experimental.pallas import tpu as pltpu


# ----------------------------------------------------------------------------
# Fused kernel: NetVLAD pooling + FC for one block of batch elements per step.
# ----------------------------------------------------------------------------
def _netvlad_fc_kernel(x_ref, cs_ref, bias_ref, c2t_ref, w_ref, fcb_ref,
                       out_ref, vlad_ref, flat_ref, *, block_b, T, D, K):
    for b in range(block_b):                                   # static, small
        x = x_ref[b]                                           # (T, D)

        # soft-assignment logits; BN scale is pre-folded into cs, bias added here
        assign = jnp.dot(x, cs_ref[...], preferred_element_type=jnp.float32)
        assign = assign + bias_ref[...]                        # (T, K)

        # softmax over clusters (EUP exp + approx reciprocal)
        assign = assign - jnp.max(assign, axis=1, keepdims=True)
        assign = jnp.exp(assign)
        denom = jnp.sum(assign, axis=1, keepdims=True)         # (T, 1)
        assign = assign * pl.reciprocal(denom, approx=True)

        # vlad[k, d] = sum_t assign[t, k] * x[t, d] : lane-dense (K, D), no x.T
        cdims = (((0,), (0,)), ((), ()))
        vlad = lax.dot_general(assign, x, cdims,
                               preferred_element_type=jnp.float32)       # (K, D)
        # per-cluster assignment mass already broadcast along D (ones matmul
        # avoids a (1, K) -> (K, 1) transpose/relayout; MXU has plenty of slack)
        a_bcast = lax.dot_general(assign, jnp.ones((T, D), jnp.float32), cdims,
                                  preferred_element_type=jnp.float32)    # (K, D)
        vlad = vlad - a_bcast * c2t_ref[...]

        # intra-normalization: L2 over D per cluster (F.normalize eps semantics)
        ss_col = jnp.sum(vlad * vlad, axis=1, keepdims=True)   # (K, 1)
        vlad = vlad * lax.rsqrt(jnp.maximum(ss_col, 1e-24))
        # global L2 over the flattened descriptor
        ss_tot = jnp.sum(vlad * vlad)
        vlad = vlad * lax.rsqrt(jnp.maximum(ss_tot, 1e-24))

        # flatten (K, D) into row b of the flat scratch (order k*D + d; the fc
        # weights are permuted to match in the wrapper)
        vlad_ref[...] = vlad
        for k in range(K):
            flat_ref[pl.ds(b, 1), pl.ds(k * D, D)] = vlad_ref[pl.ds(k, 1), :]

    # fused FC on the whole batch block; fc weights stay resident in VMEM
    y = jnp.dot(flat_ref[...], w_ref[...], preferred_element_type=jnp.float32)
    out_ref[0] = (y + fcb_ref[...]).astype(out_ref.dtype)


def _pick_block_b(B):
    """Largest divisor of B that is <= 8 and <= B//2 (keeps >=2 grid blocks so
    both v7x TensorCores get work), falling back to 1."""
    if B < 2:
        return 1
    for d in range(min(8, B // 2), 0, -1):
        if B % d == 0:
            return d
    return 1


def stream_forward(x, params, *, block_b=None):
    """Pallas implementation of Stream.forward (pool='NetVLAD', eval mode)."""
    B, T, D = x.shape
    K = params["clusters"].shape[1]
    O = params["fc_w"].shape[1]

    if block_b is None:
        block_b = _pick_block_b(B)
    assert B % block_b == 0

    # ---- one-time parameter prep (plain XLA ops outside the kernel) ----
    # eval-mode BatchNorm1d folded: scale into clusters, bias kept as an add.
    bn_scale = params["bn_gamma"] / jnp.sqrt(params["bn_var"] + 1e-5)      # (K,)
    cs = params["clusters"] * bn_scale[None, :]                            # (D, K)
    bn_bias = (params["bn_beta"] - params["bn_mean"] * bn_scale).reshape(1, K)
    # clusters2 in lane-dense (K, D) layout.
    c2t = params["clusters2"].T                                            # (K, D)
    # torch flatten order is d*K + k; the kernel flattens as k*D + d -> permute rows.
    w_perm = params["fc_w"].reshape(D, K, O).transpose(1, 0, 2).reshape(K * D, O)
    fc_b = params["fc_b"].reshape(1, O)

    kernel = functools.partial(_netvlad_fc_kernel,
                               block_b=block_b, T=T, D=D, K=K)

    out = pl.pallas_call(
        kernel,
        out_shape=jax.ShapeDtypeStruct((B // block_b, block_b, O), jnp.float32),
        grid_spec=pltpu.PrefetchScalarGridSpec(
            num_scalar_prefetch=0,
            grid=(B // block_b,),
            in_specs=[
                pl.BlockSpec((block_b, T, D), lambda i: (i, 0, 0)),   # x block
                pl.BlockSpec((D, K), lambda i: (0, 0)),               # clusters*scale
                pl.BlockSpec((1, K), lambda i: (0, 0)),               # bn bias
                pl.BlockSpec((K, D), lambda i: (0, 0)),               # clusters2^T
                pl.BlockSpec((K * D, O), lambda i: (0, 0)),           # fc weights
                pl.BlockSpec((1, O), lambda i: (0, 0)),               # fc bias
            ],
            out_specs=pl.BlockSpec((1, block_b, O), lambda i: (i, 0, 0)),
            scratch_shapes=[
                pltpu.VMEM((K, D), jnp.float32),            # per-element vlad
                pltpu.VMEM((block_b, K * D), jnp.float32),  # flattened descriptors
            ],
        ),
        compiler_params=pltpu.CompilerParams(
            dimension_semantics=("parallel",)),
    )(x, cs, bn_bias, c2t, w_perm, fc_b)

    return out.reshape(B, O)


# ----------------------------------------------------------------------------
# Pure-JAX reference (exact torch-order math), for a sanity check.
# ----------------------------------------------------------------------------
def stream_reference(x, params):
    B, T, D = x.shape
    K = params["clusters"].shape[1]
    bn_scale = params["bn_gamma"] / jnp.sqrt(params["bn_var"] + 1e-5)
    bn_bias = params["bn_beta"] - params["bn_mean"] * bn_scale

    assign = jnp.einsum("btd,dk->btk", x, params["clusters"],
                        precision=jax.lax.Precision.HIGHEST)
    assign = assign * bn_scale + bn_bias
    assign = assign - jnp.max(assign, axis=-1, keepdims=True)
    assign = jnp.exp(assign)
    assign = assign / jnp.sum(assign, axis=-1, keepdims=True)

    a_sum = jnp.sum(assign, axis=1, keepdims=True)                # (B,1,K)
    a = a_sum * params["clusters2"][None]                         # (B,D,K)
    vlad = jnp.einsum("btk,btd->bdk", assign, x,
                      precision=jax.lax.Precision.HIGHEST) - a
    vlad = vlad / jnp.maximum(
        jnp.sqrt(jnp.sum(vlad * vlad, axis=1, keepdims=True)), 1e-12)
    flat = vlad.reshape(B, D * K)
    flat = flat / jnp.maximum(
        jnp.sqrt(jnp.sum(flat * flat, axis=1, keepdims=True)), 1e-12)
    return jnp.einsum("bi,io->bo", flat, params["fc_w"],
                      precision=jax.lax.Precision.HIGHEST) + params["fc_b"][0]


if __name__ == "__main__":
    # Small shapes consistent with the module's forward:
    #   batch=2, frames=8, feature_size=128, vocab_size(K)=64, output=128
    B, T, D, K, O = 2, 8, 128, 64, 128

    key = jax.random.PRNGKey(0)
    ks = jax.random.split(key, 8)

    x = jax.random.normal(ks[0], (B, T, D), dtype=jnp.float32)

    params = {
        # NetVLAD parameters (torch init: randn / sqrt(feature_size))
        "clusters": (jax.random.normal(ks[1], (D, K), jnp.float32)
                     / jnp.sqrt(jnp.float32(D))),
        "clusters2": (jax.random.normal(ks[2], (D, K), jnp.float32)
                      / jnp.sqrt(jnp.float32(D))),
        # BatchNorm1d(K) eval-mode parameters / running stats
        "bn_gamma": 1.0 + 0.1 * jax.random.normal(ks[3], (K,), jnp.float32),
        "bn_beta": 0.1 * jax.random.normal(ks[4], (K,), jnp.float32),
        "bn_mean": 0.05 * jax.random.normal(ks[5], (K,), jnp.float32),
        "bn_var": jnp.abs(jax.random.normal(ks[6], (K,), jnp.float32)) + 0.5,
        # fc: Linear(D*K -> O); stored as (in, out) so y = flat @ W + b,
        # with row index d*K + k (torch flatten order of the (B, D, K) vlad).
        "fc_w": (jax.random.normal(ks[7], (D * K, O), jnp.float32)
                 / jnp.sqrt(jnp.float32(D * K))),
        "fc_b": jnp.zeros((1, O), jnp.float32) + 0.01,
    }

    out = stream_forward(x, params)
    out = jax.block_until_ready(out)

    ref = jax.block_until_ready(stream_reference(x, params))
    np.testing.assert_allclose(np.asarray(out), np.asarray(ref),
                               rtol=5e-2, atol=5e-3)

    assert out.shape == (B, O)
    print("KERNEL_OK")
</pallas_src>

<mosaic_0001>
module attributes {stable_mosaic.version = 11 : i64} {
  func.func @_netvlad_fc_kernel(%arg0: i32, %arg1: memref<1x8x128xf32, #tpu.memory_space<vmem>>, %arg2: memref<128x64xf32, #tpu.memory_space<vmem>>, %arg3: memref<1x64xf32, #tpu.memory_space<vmem>>, %arg4: memref<64x128xf32, #tpu.memory_space<vmem>>, %arg5: memref<8192x128xf32, #tpu.memory_space<vmem>>, %arg6: memref<1x128xf32, #tpu.memory_space<vmem>>, %arg7: memref<1x1x128xf32, #tpu.memory_space<vmem>>, %arg8: memref<64x128xf32, #tpu.memory_space<vmem>>, %arg9: memref<1x8192xf32, #tpu.memory_space<vmem>>) attributes {dimension_semantics = [#tpu.dimension_semantics<parallel>], iteration_bounds = array<i64: 2>, scalar_prefetch = 0 : i64, scratch_operands = 2 : i64, tpu.core_type = #tpu.core_type<tc>, window_params = [{transform_indices = @transform_0, window_bounds = array<i64: 1, 8, 128>}, {pipeline_mode = #tpu.pipeline_mode<synchronous>, transform_indices = @transform_1, window_bounds = array<i64: 128, 64>}, {pipeline_mode = #tpu.pipeline_mode<synchronous>, transform_indices = @transform_2, window_bounds = array<i64: 1, 64>}, {pipeline_mode = #tpu.pipeline_mode<synchronous>, transform_indices = @transform_3, window_bounds = array<i64: 64, 128>}, {pipeline_mode = #tpu.pipeline_mode<synchronous>, transform_indices = @transform_4, window_bounds = array<i64: 8192, 128>}, {pipeline_mode = #tpu.pipeline_mode<synchronous>, transform_indices = @transform_5, window_bounds = array<i64: 1, 128>}, {transform_indices = @transform_6, window_bounds = array<i64: 1, 1, 128>}]} {
    %c0 = arith.constant 0 : index
    %c0_0 = arith.constant 0 : index
    %c0_1 = arith.constant 0 : index
    %0 = vector.load %arg1[%c0, %c0_0, %c0_1] : memref<1x8x128xf32, #tpu.memory_space<vmem>>, vector<1x8x128xf32>
    %1 = vector.shape_cast %0 : vector<1x8x128xf32> to vector<8x128xf32>
    %c0_2 = arith.constant 0 : index
    %c0_3 = arith.constant 0 : index
    %2 = vector.load %arg2[%c0_2, %c0_3] : memref<128x64xf32, #tpu.memory_space<vmem>>, vector<128x64xf32>
    %cst = arith.constant dense<0.000000e+00> : vector<8x64xf32>
    %3 = tpu.matmul %1, %2, %cst {dimension_numbers = #tpu.dot_dimension_numbers<[1], [0], [0], [1], [0, 0, 1, 1], [], []>} : vector<8x128xf32>, vector<128x64xf32>, vector<8x64xf32> -> vector<8x64xf32>
    %c0_4 = arith.constant 0 : index
    %c0_5 = arith.constant 0 : index
    %4 = vector.load %arg3[%c0_4, %c0_5] : memref<1x64xf32, #tpu.memory_space<vmem>>, vector<1x64xf32>
    %5 = vector.broadcast %4 : vector<1x64xf32> to vector<8x64xf32>
    %6 = arith.addf %3, %5 : vector<8x64xf32>
    %cst_6 = arith.constant dense<0xFF800000> : vector<8xf32>
    %7 = vector.multi_reduction <maximumf>, %6, %cst_6 [1] : vector<8x64xf32> to vector<8xf32>
    %8 = vector.shape_cast %7 : vector<8xf32> to vector<8x1xf32>
    %9 = vector.broadcast %8 : vector<8x1xf32> to vector<8x64xf32>
    %10 = arith.subf %6, %9 : vector<8x64xf32>
    %11 = math.exp %10 : vector<8x64xf32>
    %cst_7 = arith.constant dense<0.000000e+00> : vector<8xf32>
    %12 = vector.multi_reduction <add>, %11, %cst_7 [1] : vector<8x64xf32> to vector<8xf32>
    %13 = vector.shape_cast %12 : vector<8xf32> to vector<8x1xf32>
    %14 = tpu.reciprocal %13 {approx = true} : vector<8x1xf32> -> vector<8x1xf32>
    %15 = vector.broadcast %14 : vector<8x1xf32> to vector<8x64xf32>
    %16 = arith.mulf %11, %15 : vector<8x64xf32>
    %cst_8 = arith.constant dense<0.000000e+00> : vector<64x128xf32>
    %17 = tpu.matmul %16, %1, %cst_8 {dimension_numbers = #tpu.dot_dimension_numbers<[0], [0], [1], [1], [0, 1, 1, 1], [], []>} : vector<8x64xf32>, vector<8x128xf32>, vector<64x128xf32> -> vector<64x128xf32>
    %cst_9 = arith.constant 1.000000e+00 : f32
    %18 = vector.broadcast %cst_9 : f32 to vector<8x128xf32>
    %cst_10 = arith.constant dense<0.000000e+00> : vector<64x128xf32>
    %19 = tpu.matmul %16, %18, %cst_10 {dimension_numbers = #tpu.dot_dimension_numbers<[0], [0], [1], [1], [0, 1, 1, 1], [], []>} : vector<8x64xf32>, vector<8x128xf32>, vector<64x128xf32> -> vector<64x128xf32>
    %c0_11 = arith.constant 0 : index
    %c0_12 = arith.constant 0 : index
    %20 = vector.load %arg4[%c0_11, %c0_12] : memref<64x128xf32, #tpu.memory_space<vmem>>, vector<64x128xf32>
    %21 = arith.mulf %19, %20 : vector<64x128xf32>
    %22 = arith.subf %17, %21 : vector<64x128xf32>
    %23 = arith.mulf %22, %22 : vector<64x128xf32>
    %cst_13 = arith.constant dense<0.000000e+00> : vector<64xf32>
    %24 = vector.multi_reduction <add>, %23, %cst_13 [1] : vector<64x128xf32> to vector<64xf32>
    %25 = vector.shape_cast %24 : vector<64xf32> to vector<64x1xf32>
    %cst_14 = arith.constant 1.000000e-24 : f32
    %26 = vector.broadcast %cst_14 : f32 to vector<64x1xf32>
    %27 = arith.maximumf %25, %26 : vector<64x1xf32>
    %28 = math.rsqrt %27 : vector<64x1xf32>
    %29 = vector.broadcast %28 : vector<64x1xf32> to vector<64x128xf32>
    %30 = arith.mulf %22, %29 : vector<64x128xf32>
    %31 = arith.mulf %30, %30 : vector<64x128xf32>
    %32 = vector.shape_cast %31 : vector<64x128xf32> to vector<1x64x128xf32>
    %cst_15 = arith.constant dense<0.000000e+00> : vector<1xf32>
    %33 = vector.multi_reduction <add>, %32, %cst_15 [1, 2] : vector<1x64x128xf32> to vector<1xf32>
    %34 = vector.shape_cast %33 : vector<1xf32> to vector<1x1x1xf32>
    %35 = vector.extract %34[0, 0, 0] : f32 from vector<1x1x1xf32>
    %cst_16 = arith.constant 1.000000e-24 : f32
    %36 = arith.maximumf %35, %cst_16 : f32
    %37 = math.rsqrt %36 : f32
    %38 = vector.broadcast %37 : f32 to vector<64x128xf32>
    %39 = arith.mulf %30, %38 : vector<64x128xf32>
    %c0_17 = arith.constant 0 : index
    %c0_18 = arith.constant 0 : index
    %40 = vector.load %arg8[%c0_17, %c0_18] : memref<64x128xf32, #tpu.memory_space<vmem>>, vector<64x128xf32>
    tpu.vector_store %arg8[%c0_17, %c0_18], %39 {strides = array<i32>} : memref<64x128xf32, #tpu.memory_space<vmem>>, vector<64x128xf32>,
    %c0_19 = arith.constant 0 : index
    %c0_20 = arith.constant 0 : index
    %41 = vector.load %arg8[%c0_19, %c0_20] : memref<64x128xf32, #tpu.memory_space<vmem>>, vector<1x128xf32>
    %c0_21 = arith.constant 0 : index
    %c0_22 = arith.constant 0 : index
    %42 = vector.load %arg9[%c0_21, %c0_22] : memref<1x8192xf32, #tpu.memory_space<vmem>>, vector<1x128xf32>
    tpu.vector_store %arg9[%c0_21, %c0_22], %41 {strides = array<i32>} : memref<1x8192xf32, #tpu.memory_space<vmem>>, vector<1x128xf32>,
    %c1 = arith.constant 1 : index
    %c0_23 = arith.constant 0 : index
    %43 = vector.load %arg8[%c1, %c0_23] : memref<64x128xf32, #tpu.memory_space<vmem>>, vector<1x128xf32>
    %c0_24 = arith.constant 0 : index
    %c128 = arith.constant 128 : index
    %44 = vector.load %arg9[%c0_24, %c128] : memref<1x8192xf32, #tpu.memory_space<vmem>>, vector<1x128xf32>
    tpu.vector_store %arg9[%c0_24, %c128], %43 {strides = array<i32>} : memref<1x8192xf32, #tpu.memory_space<vmem>>, vector<1x128xf32>,
    %c2 = arith.constant 2 : index
    %c0_25 = arith.constant 0 : index
    %45 = vector.load %arg8[%c2, %c0_25] : memref<64x128xf32, #tpu.memory_space<vmem>>, vector<1x128xf32>
    %c0_26 = arith.constant 0 : index
    %c256 = arith.constant 256 : index
    %46 = vector.load %arg9[%c0_26, %c256] : memref<1x8192xf32, #tpu.memory_space<vmem>>, vector<1x128xf32>
    tpu.vector_store %arg9[%c0_26, %c256], %45 {strides = array<i32>} : memref<1x8192xf32, #tpu.memory_space<vmem>>, vector<1x128xf32>,
    %c3 = arith.constant 3 : index
    %c0_27 = arith.constant 0 : index
    %47 = vector.load %arg8[%c3, %c0_27] : memref<64x128xf32, #tpu.memory_space<vmem>>, vector<1x128xf32>
    %c0_28 = arith.constant 0 : index
    %c384 = arith.constant 384 : index
    %48 = vector.load %arg9[%c0_28, %c384] : memref<1x8192xf32, #tpu.memory_space<vmem>>, vector<1x128xf32>
    tpu.vector_store %arg9[%c0_28, %c384], %47 {strides = array<i32>} : memref<1x8192xf32, #tpu.memory_space<vmem>>, vector<1x128xf32>,
    %c4 = arith.constant 4 : index
    %c0_29 = arith.constant 0 : index
    %49 = vector.load %arg8[%c4, %c0_29] : memref<64x128xf32, #tpu.memory_space<vmem>>, vector<1x128xf32>
    %c0_30 = arith.constant 0 : index
    %c512 = arith.constant 512 : index
    %50 = vector.load %arg9[%c0_30, %c512] : memref<1x8192xf32, #tpu.memory_space<vmem>>, vector<1x128xf32>
    tpu.vector_store %arg9[%c0_30, %c512], %49 {strides = array<i32>} : memref<1x8192xf32, #tpu.memory_space<vmem>>, vector<1x128xf32>,
    %c5 = arith.constant 5 : index
    %c0_31 = arith.constant 0 : index
    %51 = vector.load %arg8[%c5, %c0_31] : memref<64x128xf32, #tpu.memory_space<vmem>>, vector<1x128xf32>
    %c0_32 = arith.constant 0 : index
    %c640 = arith.constant 640 : index
    %52 = vector.load %arg9[%c0_32, %c640] : memref<1x8192xf32, #tpu.memory_space<vmem>>, vector<1x128xf32>
    tpu.vector_store %arg9[%c0_32, %c640], %51 {strides = array<i32>} : memref<1x8192xf32, #tpu.memory_space<vmem>>, vector<1x128xf32>,
    %c6 = arith.constant 6 : index
    %c0_33 = arith.constant 0 : index
    %53 = vector.load %arg8[%c6, %c0_33] : memref<64x128xf32, #tpu.memory_space<vmem>>, vector<1x128xf32>
    %c0_34 = arith.constant 0 : index
    %c768 = arith.constant 768 : index
    %54 = vector.load %arg9[%c0_34, %c768] : memref<1x8192xf32, #tpu.memory_space<vmem>>, vector<1x128xf32>
    tpu.vector_store %arg9[%c0_34, %c768], %53 {strides = array<i32>} : memref<1x8192xf32, #tpu.memory_space<vmem>>, vector<1x128xf32>,
    %c7 = arith.constant 7 : index
    %c0_35 = arith.constant 0 : index
    %55 = vector.load %arg8[%c7, %c0_35] : memref<64x128xf32, #tpu.memory_space<vmem>>, vector<1x128xf32>
    %c0_36 = arith.constant 0 : index
    %c896 = arith.constant 896 : index
    %56 = vector.load %arg9[%c0_36, %c896] : memref<1x8192xf32, #tpu.memory_space<vmem>>, vector<1x128xf32>
    tpu.vector_store %arg9[%c0_36, %c896], %55 {strides = array<i32>} : memref<1x8192xf32, #tpu.memory_space<vmem>>, vector<1x128xf32>,
    %c8 = arith.constant 8 : index
    %c0_37 = arith.constant 0 : index
    %57 = vector.load %arg8[%c8, %c0_37] : memref<64x128xf32, #tpu.memory_space<vmem>>, vector<1x128xf32>
    %c0_38 = arith.constant 0 : index
    %c1024 = arith.constant 1024 : index
    %58 = vector.load %arg9[%c0_38, %c1024] : memref<1x8192xf32, #tpu.memory_space<vmem>>, vector<1x128xf32>
    tpu.vector_store %arg9[%c0_38, %c1024], %57 {strides = array<i32>} : memref<1x8192xf32, #tpu.memory_space<vmem>>, vector<1x128xf32>,
    %c9 = arith.constant 9 : index
    %c0_39 = arith.constant 0 : index
    %59 = vector.load %arg8[%c9, %c0_39] : memref<64x128xf32, #tpu.memory_space<vmem>>, vector<1x128xf32>
    %c0_40 = arith.constant 0 : index
    %c1152 = arith.constant 1152 : index
    %60 = vector.load %arg9[%c0_40, %c1152] : memref<1x8192xf32, #tpu.memory_space<vmem>>, vector<1x128xf32>
    tpu.vector_store %arg9[%c0_40, %c1152], %59 {strides = array<i32>} : memref<1x8192xf32, #tpu.memory_space<vmem>>, vector<1x128xf32>,
    %c10 = arith.constant 10 : index
    %c0_41 = arith.constant 0 : index
    %61 = vector.load %arg8[%c10, %c0_41] : memref<64x128xf32, #tpu.memory_space<vmem>>, vector<1x128xf32>
    %c0_42 = arith.constant 0 : index
    %c1280 = arith.constant 1280 : index
    %62 = vector.load %arg9[%c0_42, %c1280] : memref<1x8192xf32, #tpu.memory_space<vmem>>, vector<1x128xf32>
    tpu.vector_store %arg9[%c0_42, %c1280], %61 {strides = array<i32>} : memref<1x8192xf32, #tpu.memory_space<vmem>>, vector<1x128xf32>,
    %c11 = arith.constant 11 : index
    %c0_43 = arith.constant 0 : index
    %63 = vector.load %arg8[%c11, %c0_43] : memref<64x128xf32, #tpu.memory_space<vmem>>, vector<1x128xf32>
    %c0_44 = arith.constant 0 : index
    %c1408 = arith.constant 1408 : index
    %64 = vector.load %arg9[%c0_44, %c1408] : memref<1x8192xf32, #tpu.memory_space<vmem>>, vector<1x128xf32>
    tpu.vector_store %arg9[%c0_44, %c1408], %63 {strides = array<i32>} : memref<1x8192xf32, #tpu.memory_space<vmem>>, vector<1x128xf32>,
    %c12 = arith.constant 12 : index
    %c0_45 = arith.constant 0 : index
    %65 = vector.load %arg8[%c12, %c0_45] : memref<64x128xf32, #tpu.memory_space<vmem>>, vector<1x128xf32>
    %c0_46 = arith.constant 0 : index
    %c1536 = arith.constant 1536 : index
    %66 = vector.load %arg9[%c0_46, %c1536] : memref<1x8192xf32, #tpu.memory_space<vmem>>, vector<1x128xf32>
    tpu.vector_store %arg9[%c0_46, %c1536], %65 {strides = array<i32>} : memref<1x8192xf32, #tpu.memory_space<vmem>>, vector<1x128xf32>,
    %c13 = arith.constant 13 : index
    %c0_47 = arith.constant 0 : index
    %67 = vector.load %arg8[%c13, %c0_47] : memref<64x128xf32, #tpu.memory_space<vmem>>, vector<1x128xf32>
    %c0_48 = arith.constant 0 : index
    %c1664 = arith.constant 1664 : index
    %68 = vector.load %arg9[%c0_48, %c1664] : memref<1x8192xf32, #tpu.memory_space<vmem>>, vector<1x128xf32>
    tpu.vector_store %arg9[%c0_48, %c1664], %67 {strides = array<i32>} : memref<1x8192xf32, #tpu.memory_space<vmem>>, vector<1x128xf32>,
    %c14 = arith.constant 14 : index
    %c0_49 = arith.constant 0 : index
    %69 = vector.load %arg8[%c14, %c0_49] : memref<64x128xf32, #tpu.memory_space<vmem>>, vector<1x128xf32>
    %c0_50 = arith.constant 0 : index
    %c1792 = arith.constant 1792 : index
    %70 = vector.load %arg9[%c0_50, %c1792] : memref<1x8192xf32, #tpu.memory_space<vmem>>, vector<1x128xf32>
    tpu.vector_store %arg9[%c0_50, %c1792], %69 {strides = array<i32>} : memref<1x8192xf32, #tpu.memory_space<vmem>>, vector<1x128xf32>,
    %c15 = arith.constant 15 : index
    %c0_51 = arith.constant 0 : index
    %71 = vector.load %arg8[%c15, %c0_51] : memref<64x128xf32, #tpu.memory_space<vmem>>, vector<1x128xf32>
    %c0_52 = arith.constant 0 : index
    %c1920 = arith.constant 1920 : index
    %72 = vector.load %arg9[%c0_52, %c1920] : memref<1x8192xf32, #tpu.memory_space<vmem>>, vector<1x128xf32>
    tpu.vector_store %arg9[%c0_52, %c1920], %71 {strides = array<i32>} : memref<1x8192xf32, #tpu.memory_space<vmem>>, vector<1x128xf32>,
    %c16 = arith.constant 16 : index
    %c0_53 = arith.constant 0 : index
    %73 = vector.load %arg8[%c16, %c0_53] : memref<64x128xf32, #tpu.memory_space<vmem>>, vector<1x128xf32>
    %c0_54 = arith.constant 0 : index
    %c2048 = arith.constant 2048 : index
    %74 = vector.load %arg9[%c0_54, %c2048] : memref<1x8192xf32, #tpu.memory_space<vmem>>, vector<1x128xf32>
    tpu.vector_store %arg9[%c0_54, %c2048], %73 {strides = array<i32>} : memref<1x8192xf32, #tpu.memory_space<vmem>>, vector<1x128xf32>,
    %c17 = arith.constant 17 : index
    %c0_55 = arith.constant 0 : index
    %75 = vector.load %arg8[%c17, %c0_55] : memref<64x128xf32, #tpu.memory_space<vmem>>, vector<1x128xf32>
    %c0_56 = arith.constant 0 : index
    %c2176 = arith.constant 2176 : index
    %76 = vector.load %arg9[%c0_56, %c2176] : memref<1x8192xf32, #tpu.memory_space<vmem>>, vector<1x128xf32>
    tpu.vector_store %arg9[%c0_56, %c2176], %75 {strides = array<i32>} : memref<1x8192xf32, #tpu.memory_space<vmem>>, vector<1x128xf32>,
    %c18 = arith.constant 18 : index
    %c0_57 = arith.constant 0 : index
    %77 = vector.load %arg8[%c18, %c0_57] : memref<64x128xf32, #tpu.memory_space<vmem>>, vector<1x128xf32>
    %c0_58 = arith.constant 0 : index
    %c2304 = arith.constant 2304 : index
    %78 = vector.load %arg9[%c0_58, %c2304] : memref<1x8192xf32, #tpu.memory_space<vmem>>, vector<1x128xf32>
    tpu.vector_store %arg9[%c0_58, %c2304], %77 {strides = array<i32>} : memref<1x8192xf32, #tpu.memory_space<vmem>>, vector<1x128xf32>,
    %c19 = arith.constant 19 : index
    %c0_59 = arith.constant 0 : index
    %79 = vector.load %arg8[%c19, %c0_59] : memref<64x128xf32, #tpu.memory_space<vmem>>, vector<1x128xf32>
    %c0_60 = arith.constant 0 : index
    %c2432 = arith.constant 2432 : index
    %80 = vector.load %arg9[%c0_60, %c2432] : memref<1x8192xf32, #tpu.memory_space<vmem>>, vector<1x128xf32>
    tpu.vector_store %arg9[%c0_60, %c2432], %79 {strides = array<i32>} : memref<1x8192xf32, #tpu.memory_space<vmem>>, vector<1x128xf32>,
    %c20 = arith.constant 20 : index
    %c0_61 = arith.constant 0 : index
    %81 = vector.load %arg8[%c20, %c0_61] : memref<64x128xf32, #tpu.memory_space<vmem>>, vector<1x128xf32>
    %c0_62 = arith.constant 0 : index
    %c2560 = arith.constant 2560 : index
    %82 = vector.load %arg9[%c0_62, %c2560] : memref<1x8192xf32, #tpu.memory_space<vmem>>, vector<1x128xf32>
    tpu.vector_store %arg9[%c0_62, %c2560], %81 {strides = array<i32>} : memref<1x8192xf32, #tpu.memory_space<vmem>>, vector<1x128xf32>,
    %c21 = arith.constant 21 : index
    %c0_63 = arith.constant 0 : index
    %83 = vector.load %arg8[%c21, %c0_63] : memref<64x128xf32, #tpu.memory_space<vmem>>, vector<1x128xf32>
    %c0_64 = arith.constant 0 : index
    %c2688 = arith.constant 2688 : index
    %84 = vector.load %arg9[%c0_64, %c2688] : memref<1x8192xf32, #tpu.memory_space<vmem>>, vector<1x128xf32>
    tpu.vector_store %arg9[%c0_64, %c2688], %83 {strides = array<i32>} : memref<1x8192xf32, #tpu.memory_space<vmem>>, vector<1x128xf32>,
    %c22 = arith.constant 22 : index
    %c0_65 = arith.constant 0 : index
    %85 = vector.load %arg8[%c22, %c0_65] : memref<64x128xf32, #tpu.memory_space<vmem>>, vector<1x128xf32>
    %c0_66 = arith.constant 0 : index
    %c2816 = arith.constant 2816 : index
    %86 = vector.load %arg9[%c0_66, %c2816] : memref<1x8192xf32, #tpu.memory_space<vmem>>, vector<1x128xf32>
    tpu.vector_store %arg9[%c0_66, %c2816], %85 {strides = array<i32>} : memref<1x8192xf32, #tpu.memory_space<vmem>>, vector<1x128xf32>,
    %c23 = arith.constant 23 : index
    %c0_67 = arith.constant 0 : index
    %87 = vector.load %arg8[%c23, %c0_67] : memref<64x128xf32, #tpu.memory_space<vmem>>, vector<1x128xf32>
    %c0_68 = arith.constant 0 : index
    %c2944 = arith.constant 2944 : index
    %88 = vector.load %arg9[%c0_68, %c2944] : memref<1x8192xf32, #tpu.memory_space<vmem>>, vector<1x128xf32>
    tpu.vector_store %arg9[%c0_68, %c2944], %87 {strides = array<i32>} : memref<1x8192xf32, #tpu.memory_space<vmem>>, vector<1x128xf32>,
    %c24 = arith.constant 24 : index
    %c0_69 = arith.constant 0 : index
    %89 = vector.load %arg8[%c24, %c0_69] : memref<64x128xf32, #tpu.memory_space<vmem>>, vector<1x128xf32>
    %c0_70 = arith.constant 0 : index
    %c3072 = arith.constant 3072 : index
    %90 = vector.load %arg9[%c0_70, %c3072] : memref<1x8192xf32, #tpu.memory_space<vmem>>, vector<1x128xf32>
    tpu.vector_store %arg9[%c0_70, %c3072], %89 {strides = array<i32>} : memref<1x8192xf32, #tpu.memory_space<vmem>>, vector<1x128xf32>,
    %c25 = arith.constant 25 : index
    %c0_71 = arith.constant 0 : index
    %91 = vector.load %arg8[%c25, %c0_71] : memref<64x128xf32, #tpu.memory_space<vmem>>, vector<1x128xf32>
    %c0_72 = arith.constant 0 : index
    %c3200 = arith.constant 3200 : index
    %92 = vector.load %arg9[%c0_72, %c3200] : memref<1x8192xf32, #tpu.memory_space<vmem>>, vector<1x128xf32>
    tpu.vector_store %arg9[%c0_72, %c3200], %91 {strides = array<i32>} : memref<1x8192xf32, #tpu.memory_space<vmem>>, vector<1x128xf32>,
    %c26 = arith.constant 26 : index
    %c0_73 = arith.constant 0 : index
    %93 = vector.load %arg8[%c26, %c0_73] : memref<64x128xf32, #tpu.memory_space<vmem>>, vector<1x128xf32>
    %c0_74 = arith.constant 0 : index
    %c3328 = arith.constant 3328 : index
    %94 = vector.load %arg9[%c0_74, %c3328] : memref<1x8192xf32, #tpu.memory_space<vmem>>, vector<1x128xf32>
    tpu.vector_store %arg9[%c0_74, %c3328], %93 {strides = array<i32>} : memref<1x8192xf32, #tpu.memory_space<vmem>>, vector<1x128xf32>,
    %c27 = arith.constant 27 : index
    %c0_75 = arith.constant 0 : index
    %95 = vector.load %arg8[%c27, %c0_75] : memref<64x128xf32, #tpu.memory_space<vmem>>, vector<1x128xf32>
    %c0_76 = arith.constant 0 : index
    %c3456 = arith.constant 3456 : index
    %96 = vector.load %arg9[%c0_76, %c3456] : memref<1x8192xf32, #tpu.memory_space<vmem>>, vector<1x128xf32>
    tpu.vector_store %arg9[%c0_76, %c3456], %95 {strides = array<i32>} : memref<1x8192xf32, #tpu.memory_space<vmem>>, vector<1x128xf32>,
    %c28 = arith.constant 28 : index
    %c0_77 = arith.constant 0 : index
    %97 = vector.load %arg8[%c28, %c0_77] : memref<64x128xf32, #tpu.memory_space<vmem>>, vector<1x128xf32>
    %c0_78 = arith.constant 0 : index
    %c3584 = arith.constant 3584 : index
    %98 = vector.load %arg9[%c0_78, %c3584] : memref<1x8192xf32, #tpu.memory_space<vmem>>, vector<1x128xf32>
    tpu.vector_store %arg9[%c0_78, %c3584], %97 {strides = array<i32>} : memref<1x8192xf32, #tpu.memory_space<vmem>>, vector<1x128xf32>,
    %c29 = arith.constant 29 : index
    %c0_79 = arith.constant 0 : index
    %99 = vector.load %arg8[%c29, %c0_79] : memref<64x128xf32, #tpu.memory_space<vmem>>, vector<1x128xf32>
    %c0_80 = arith.constant 0 : index
    %c3712 = arith.constant 3712 : index
    %100 = vector.load %arg9[%c0_80, %c3712] : memref<1x8192xf32, #tpu.memory_space<vmem>>, vector<1x128xf32>
    tpu.vector_store %arg9[%c0_80, %c3712], %99 {strides = array<i32>} : memref<1x8192xf32, #tpu.memory_space<vmem>>, vector<1x128xf32>,
    %c30 = arith.constant 30 : index
    %c0_81 = arith.constant 0 : index
    %101 = vector.load %arg8[%c30, %c0_81] : memref<64x128xf32, #tpu.memory_space<vmem>>, vector<1x128xf32>
    %c0_82 = arith.constant 0 : index
    %c3840 = arith.constant 3840 : index
    %102 = vector.load %arg9[%c0_82, %c3840] : memref<1x8192xf32, #tpu.memory_space<vmem>>, vector<1x128xf32>
    tpu.vector_store %arg9[%c0_82, %c3840], %101 {strides = array<i32>} : memref<1x8192xf32, #tpu.memory_space<vmem>>, vector<1x128xf32>,
    %c31 = arith.constant 31 : index
    %c0_83 = arith.constant 0 : index
    %103 = vector.load %arg8[%c31, %c0_83] : memref<64x128xf32, #tpu.memory_space<vmem>>, vector<1x128xf32>
    %c0_84 = arith.constant 0 : index
    %c3968 = arith.constant 3968 : index
    %104 = vector.load %arg9[%c0_84, %c3968] : memref<1x8192xf32, #tpu.memory_space<vmem>>, vector<1x128xf32>
    tpu.vector_store %arg9[%c0_84, %c3968], %103 {strides = array<i32>} : memref<1x8192xf32, #tpu.memory_space<vmem>>, vector<1x128xf32>,
    %c32 = arith.constant 32 : index
    %c0_85 = arith.constant 0 : index
    %105 = vector.load %arg8[%c32, %c0_85] : memref<64x128xf32, #tpu.memory_space<vmem>>, vector<1x128xf32>
    %c0_86 = arith.constant 0 : index
    %c4096 = arith.constant 4096 : index
    %106 = vector.load %arg9[%c0_86, %c4096] : memref<1x8192xf32, #tpu.memory_space<vmem>>, vector<1x128xf32>
    tpu.vector_store %arg9[%c0_86, %c4096], %105 {strides = array<i32>} : memref<1x8192xf32, #tpu.memory_space<vmem>>, vector<1x128xf32>,
    %c33 = arith.constant 33 : index
    %c0_87 = arith.constant 0 : index
    %107 = vector.load %arg8[%c33, %c0_87] : memref<64x128xf32, #tpu.memory_space<vmem>>, vector<1x128xf32>
    %c0_88 = arith.constant 0 : index
    %c4224 = arith.constant 4224 : index
    %108 = vector.load %arg9[%c0_88, %c4224] : memref<1x8192xf32, #tpu.memory_space<vmem>>, vector<1x128xf32>
    tpu.vector_store %arg9[%c0_88, %c4224], %107 {strides = array<i32>} : memref<1x8192xf32, #tpu.memory_space<vmem>>, vector<1x128xf32>,
    %c34 = arith.constant 34 : index
    %c0_89 = arith.constant 0 : index
    %109 = vector.load %arg8[%c34, %c0_89] : memref<64x128xf32, #tpu.memory_space<vmem>>, vector<1x128xf32>
    %c0_90 = arith.constant 0 : index
    %c4352 = arith.constant 4352 : index
    %110 = vector.load %arg9[%c0_90, %c4352] : memref<1x8192xf32, #tpu.memory_space<vmem>>, vector<1x128xf32>
    tpu.vector_store %arg9[%c0_90, %c4352], %109 {strides = array<i32>} : memref<1x8192xf32, #tpu.memory_space<vmem>>, vector<1x128xf32>,
    %c35 = arith.constant 35 : index
    %c0_91 = arith.constant 0 : index
    %111 = vector.load %arg8[%c35, %c0_91] : memref<64x128xf32, #tpu.memory_space<vmem>>, vector<1x128xf32>
    %c0_92 = arith.constant 0 : index
    %c4480 = arith.constant 4480 : index
    %112 = vector.load %arg9[%c0_92, %c4480] : memref<1x8192xf32, #tpu.memory_space<vmem>>, vector<1x128xf32>
    tpu.vector_store %arg9[%c0_92, %c4480], %111 {strides = array<i32>} : memref<1x8192xf32, #tpu.memory_space<vmem>>, vector<1x128xf32>,
    %c36 = arith.constant 36 : index
    %c0_93 = arith.constant 0 : index
    %113 = vector.load %arg8[%c36, %c0_93] : memref<64x128xf32, #tpu.memory_space<vmem>>, vector<1x128xf32>
    %c0_94 = arith.constant 0 : index
    %c4608 = arith.constant 4608 : index
    %114 = vector.load %arg9[%c0_94, %c4608] : memref<1x8192xf32, #tpu.memory_space<vmem>>, vector<1x128xf32>
    tpu.vector_store %arg9[%c0_94, %c4608], %113 {strides = array<i32>} : memref<1x8192xf32, #tpu.memory_space<vmem>>, vector<1x128xf32>,
    %c37 = arith.constant 37 : index
    %c0_95 = arith.constant 0 : index
    %115 = vector.load %arg8[%c37, %c0_95] : memref<64x128xf32, #tpu.memory_space<vmem>>, vector<1x128xf32>
    %c0_96 = arith.constant 0 : index
    %c4736 = arith.constant 4736 : index
    %116 = vector.load %arg9[%c0_96, %c4736] : memref<1x8192xf32, #tpu.memory_space<vmem>>, vector<1x128xf32>
    tpu.vector_store %arg9[%c0_96, %c4736], %115 {strides = array<i32>} : memref<1x8192xf32, #tpu.memory_space<vmem>>, vector<1x128xf32>,
    %c38 = arith.constant 38 : index
    %c0_97 = arith.constant 0 : index
    %117 = vector.load %arg8[%c38, %c0_97] : memref<64x128xf32, #tpu.memory_space<vmem>>, vector<1x128xf32>
    %c0_98 = arith.constant 0 : index
    %c4864 = arith.constant 4864 : index
    %118 = vector.load %arg9[%c0_98, %c4864] : memref<1x8192xf32, #tpu.memory_space<vmem>>, vector<1x128xf32>
    tpu.vector_store %arg9[%c0_98, %c4864], %117 {strides = array<i32>} : memref<1x8192xf32, #tpu.memory_space<vmem>>, vector<1x128xf32>,
    %c39 = arith.constant 39 : index
    %c0_99 = arith.constant 0 : index
    %119 = vector.load %arg8[%c39, %c0_99] : memref<64x128xf32, #tpu.memory_space<vmem>>, vector<1x128xf32>
    %c0_100 = arith.constant 0 : index
    %c4992 = arith.constant 4992 : index
    %120 = vector.load %arg9[%c0_100, %c4992] : memref<1x8192xf32, #tpu.memory_space<vmem>>, vector<1x128xf32>
    tpu.vector_store %arg9[%c0_100, %c4992], %119 {strides = array<i32>} : memref<1x8192xf32, #tpu.memory_space<vmem>>, vector<1x128xf32>,
    %c40 = arith.constant 40 : index
    %c0_101 = arith.constant 0 : index
    %121 = vector.load %arg8[%c40, %c0_101] : memref<64x128xf32, #tpu.memory_space<vmem>>, vector<1x128xf32>
    %c0_102 = arith.constant 0 : index
    %c5120 = arith.constant 5120 : index
    %122 = vector.load %arg9[%c0_102, %c5120] : memref<1x8192xf32, #tpu.memory_space<vmem>>, vector<1x128xf32>
    tpu.vector_store %arg9[%c0_102, %c5120], %121 {strides = array<i32>} : memref<1x8192xf32, #tpu.memory_space<vmem>>, vector<1x128xf32>,
    %c41 = arith.constant 41 : index
    %c0_103 = arith.constant 0 : index
    %123 = vector.load %arg8[%c41, %c0_103] : memref<64x128xf32, #tpu.memory_space<vmem>>, vector<1x128xf32>
    %c0_104 = arith.constant 0 : index
    %c5248 = arith.constant 5248 : index
    %124 = vector.load %arg9[%c0_104, %c5248] : memref<1x8192xf32, #tpu.memory_space<vmem>>, vector<1x128xf32>
    tpu.vector_store %arg9[%c0_104, %c5248], %123 {strides = array<i32>} : memref<1x8192xf32, #tpu.memory_space<vmem>>, vector<1x128xf32>,
    %c42 = arith.constant 42 : index
    %c0_105 = arith.constant 0 : index
    %125 = vector.load %arg8[%c42, %c0_105] : memref<64x128xf32, #tpu.memory_space<vmem>>, vector<1x128xf32>
    %c0_106 = arith.constant 0 : index
    %c5376 = arith.constant 5376 : index
    %126 = vector.load %arg9[%c0_106, %c5376] : memref<1x8192xf32, #tpu.memory_space<vmem>>, vector<1x128xf32>
    tpu.vector_store %arg9[%c0_106, %c5376], %125 {strides = array<i32>} : memref<1x8192xf32, #tpu.memory_space<vmem>>, vector<1x128xf32>,
    %c43 = arith.constant 43 : index
    %c0_107 = arith.constant 0 : index
    %127 = vector.load %arg8[%c43, %c0_107] : memref<64x128xf32, #tpu.memory_space<vmem>>, vector<1x128xf32>
    %c0_108 = arith.constant 0 : index
    %c5504 = arith.constant 5504 : index
    %128 = vector.load %arg9[%c0_108, %c5504] : memref<1x8192xf32, #tpu.memory_space<vmem>>, vector<1x128xf32>
    tpu.vector_store %arg9[%c0_108, %c5504], %127 {strides = array<i32>} : memref<1x8192xf32, #tpu.memory_space<vmem>>, vector<1x128xf32>,
    %c44 = arith.constant 44 : index
    %c0_109 = arith.constant 0 : index
    %129 = vector.load %arg8[%c44, %c0_109] : memref<64x128xf32, #tpu.memory_space<vmem>>, vector<1x128xf32>
    %c0_110 = arith.constant 0 : index
    %c5632 = arith.constant 5632 : index
    %130 = vector.load %arg9[%c0_110, %c5632] : memref<1x8192xf32, #tpu.memory_space<vmem>>, vector<1x128xf32>
    tpu.vector_store %arg9[%c0_110, %c5632], %129 {strides = array<i32>} : memref<1x8192xf32, #tpu.memory_space<vmem>>, vector<1x128xf32>,
    %c45 = arith.constant 45 : index
    %c0_111 = arith.constant 0 : index
    %131 = vector.load %arg8[%c45, %c0_111] : memref<64x128xf32, #tpu.memory_space<vmem>>, vector<1x128xf32>
    %c0_112 = arith.constant 0 : index
    %c5760 = arith.constant 5760 : index
    %132 = vector.load %arg9[%c0_112, %c5760] : memref<1x8192xf32, #tpu.memory_space<vmem>>, vector<1x128xf32>
    tpu.vector_store %arg9[%c0_112, %c5760], %131 {strides = array<i32>} : memref<1x8192xf32, #tpu.memory_space<vmem>>, vector<1x128xf32>,
    %c46 = arith.constant 46 : index
    %c0_113 = arith.constant 0 : index
    %133 = vector.load %arg8[%c46, %c0_113] : memref<64x128xf32, #tpu.memory_space<vmem>>, vector<1x128xf32>
    %c0_114 = arith.constant 0 : index
    %c5888 = arith.constant 5888 : index
    %134 = vector.load %arg9[%c0_114, %c5888] : memref<1x8192xf32, #tpu.memory_space<vmem>>, vector<1x128xf32>
    tpu.vector_store %arg9[%c0_114, %c5888], %133 {strides = array<i32>} : memref<1x8192xf32, #tpu.memory_space<vmem>>, vector<1x128xf32>,
    %c47 = arith.constant 47 : index
    %c0_115 = arith.constant 0 : index
    %135 = vector.load %arg8[%c47, %c0_115] : memref<64x128xf32, #tpu.memory_space<vmem>>, vector<1x128xf32>
    %c0_116 = arith.constant 0 : index
    %c6016 = arith.constant 6016 : index
    %136 = vector.load %arg9[%c0_116, %c6016] : memref<1x8192xf32, #tpu.memory_space<vmem>>, vector<1x128xf32>
    tpu.vector_store %arg9[%c0_116, %c6016], %135 {strides = array<i32>} : memref<1x8192xf32, #tpu.memory_space<vmem>>, vector<1x128xf32>,
    %c48 = arith.constant 48 : index
    %c0_117 = arith.constant 0 : index
    %137 = vector.load %arg8[%c48, %c0_117] : memref<64x128xf32, #tpu.memory_space<vmem>>, vector<1x128xf32>
    %c0_118 = arith.constant 0 : index
    %c6144 = arith.constant 6144 : index
    %138 = vector.load %arg9[%c0_118, %c6144] : memref<1x8192xf32, #tpu.memory_space<vmem>>, vector<1x128xf32>
    tpu.vector_store %arg9[%c0_118, %c6144], %137 {strides = array<i32>} : memref<1x8192xf32, #tpu.memory_space<vmem>>, vector<1x128xf32>,
    %c49 = arith.constant 49 : index
    %c0_119 = arith.constant 0 : index
    %139 = vector.load %arg8[%c49, %c0_119] : memref<64x128xf32, #tpu.memory_space<vmem>>, vector<1x128xf32>
    %c0_120 = arith.constant 0 : index
    %c6272 = arith.constant 6272 : index
    %140 = vector.load %arg9[%c0_120, %c6272] : memref<1x8192xf32, #tpu.memory_space<vmem>>, vector<1x128xf32>
    tpu.vector_store %arg9[%c0_120, %c6272], %139 {strides = array<i32>} : memref<1x8192xf32, #tpu.memory_space<vmem>>, vector<1x128xf32>,
    %c50 = arith.constant 50 : index
    %c0_121 = arith.constant 0 : index
    %141 = vector.load %arg8[%c50, %c0_121] : memref<64x128xf32, #tpu.memory_space<vmem>>, vector<1x128xf32>
    %c0_122 = arith.constant 0 : index
    %c6400 = arith.constant 6400 : index
    %142 = vector.load %arg9[%c0_122, %c6400] : memref<1x8192xf32, #tpu.memory_space<vmem>>, vector<1x128xf32>
    tpu.vector_store %arg9[%c0_122, %c6400], %141 {strides = array<i32>} : memref<1x8192xf32, #tpu.memory_space<vmem>>, vector<1x128xf32>,
    %c51 = arith.constant 51 : index
    %c0_123 = arith.constant 0 : index
    %143 = vector.load %arg8[%c51, %c0_123] : memref<64x128xf32, #tpu.memory_space<vmem>>, vector<1x128xf32>
    %c0_124 = arith.constant 0 : index
    %c6528 = arith.constant 6528 : index
    %144 = vector.load %arg9[%c0_124, %c6528] : memref<1x8192xf32, #tpu.memory_space<vmem>>, vector<1x128xf32>
    tpu.vector_store %arg9[%c0_124, %c6528], %143 {strides = array<i32>} : memref<1x8192xf32, #tpu.memory_space<vmem>>, vector<1x128xf32>,
    %c52 = arith.constant 52 : index
    %c0_125 = arith.constant 0 : index
    %145 = vector.load %arg8[%c52, %c0_125] : memref<64x128xf32, #tpu.memory_space<vmem>>, vector<1x128xf32>
    %c0_126 = arith.constant 0 : index
    %c6656 = arith.constant 6656 : index
    %146 = vector.load %arg9[%c0_126, %c6656] : memref<1x8192xf32, #tpu.memory_space<vmem>>, vector<1x128xf32>
    tpu.vector_store %arg9[%c0_126, %c6656], %145 {strides = array<i32>} : memref<1x8192xf32, #tpu.memory_space<vmem>>, vector<1x128xf32>,
    %c53 = arith.constant 53 : index
    %c0_127 = arith.constant 0 : index
    %147 = vector.load %arg8[%c53, %c0_127] : memref<64x128xf32, #tpu.memory_space<vmem>>, vector<1x128xf32>
    %c0_128 = arith.constant 0 : index
    %c6784 = arith.constant 6784 : index
    %148 = vector.load %arg9[%c0_128, %c6784] : memref<1x8192xf32, #tpu.memory_space<vmem>>, vector<1x128xf32>
    tpu.vector_store %arg9[%c0_128, %c6784], %147 {strides = array<i32>} : memref<1x8192xf32, #tpu.memory_space<vmem>>, vector<1x128xf32>,
    %c54 = arith.constant 54 : index
    %c0_129 = arith.constant 0 : index
    %149 = vector.load %arg8[%c54, %c0_129] : memref<64x128xf32, #tpu.memory_space<vmem>>, vector<1x128xf32>
    %c0_130 = arith.constant 0 : index
    %c6912 = arith.constant 6912 : index
    %150 = vector.load %arg9[%c0_130, %c6912] : memref<1x8192xf32, #tpu.memory_space<vmem>>, vector<1x128xf32>
    tpu.vector_store %arg9[%c0_130, %c6912], %149 {strides = array<i32>} : memref<1x8192xf32, #tpu.memory_space<vmem>>, vector<1x128xf32>,
    %c55 = arith.constant 55 : index
    %c0_131 = arith.constant 0 : index
    %151 = vector.load %arg8[%c55, %c0_131] : memref<64x128xf32, #tpu.memory_space<vmem>>, vector<1x128xf32>
    %c0_132 = arith.constant 0 : index
    %c7040 = arith.constant 7040 : index
    %152 = vector.load %arg9[%c0_132, %c7040] : memref<1x8192xf32, #tpu.memory_space<vmem>>, vector<1x128xf32>
    tpu.vector_store %arg9[%c0_132, %c7040], %151 {strides = array<i32>} : memref<1x8192xf32, #tpu.memory_space<vmem>>, vector<1x128xf32>,
    %c56 = arith.constant 56 : index
    %c0_133 = arith.constant 0 : index
    %153 = vector.load %arg8[%c56, %c0_133] : memref<64x128xf32, #tpu.memory_space<vmem>>, vector<1x128xf32>
    %c0_134 = arith.constant 0 : index
    %c7168 = arith.constant 7168 : index
    %154 = vector.load %arg9[%c0_134, %c7168] : memref<1x8192xf32, #tpu.memory_space<vmem>>, vector<1x128xf32>
    tpu.vector_store %arg9[%c0_134, %c7168], %153 {strides = array<i32>} : memref<1x8192xf32, #tpu.memory_space<vmem>>, vector<1x128xf32>,
    %c57 = arith.constant 57 : index
    %c0_135 = arith.constant 0 : index
    %155 = vector.load %arg8[%c57, %c0_135] : memref<64x128xf32, #tpu.memory_space<vmem>>, vector<1x128xf32>
    %c0_136 = arith.constant 0 : index
    %c7296 = arith.constant 7296 : index
    %156 = vector.load %arg9[%c0_136, %c7296] : memref<1x8192xf32, #tpu.memory_space<vmem>>, vector<1x128xf32>
    tpu.vector_store %arg9[%c0_136, %c7296], %155 {strides = array<i32>} : memref<1x8192xf32, #tpu.memory_space<vmem>>, vector<1x128xf32>,
    %c58 = arith.constant 58 : index
    %c0_137 = arith.constant 0 : index
    %157 = vector.load %arg8[%c58, %c0_137] : memref<64x128xf32, #tpu.memory_space<vmem>>, vector<1x128xf32>
    %c0_138 = arith.constant 0 : index
    %c7424 = arith.constant 7424 : index
    %158 = vector.load %arg9[%c0_138, %c7424] : memref<1x8192xf32, #tpu.memory_space<vmem>>, vector<1x128xf32>
    tpu.vector_store %arg9[%c0_138, %c7424], %157 {strides = array<i32>} : memref<1x8192xf32, #tpu.memory_space<vmem>>, vector<1x128xf32>,
    %c59 = arith.constant 59 : index
    %c0_139 = arith.constant 0 : index
    %159 = vector.load %arg8[%c59, %c0_139] : memref<64x128xf32, #tpu.memory_space<vmem>>, vector<1x128xf32>
    %c0_140 = arith.constant 0 : index
    %c7552 = arith.constant 7552 : index
    %160 = vector.load %arg9[%c0_140, %c7552] : memref<1x8192xf32, #tpu.memory_space<vmem>>, vector<1x128xf32>
    tpu.vector_store %arg9[%c0_140, %c7552], %159 {strides = array<i32>} : memref<1x8192xf32, #tpu.memory_space<vmem>>, vector<1x128xf32>,
    %c60 = arith.constant 60 : index
    %c0_141 = arith.constant 0 : index
    %161 = vector.load %arg8[%c60, %c0_141] : memref<64x128xf32, #tpu.memory_space<vmem>>, vector<1x128xf32>
    %c0_142 = arith.constant 0 : index
    %c7680 = arith.constant 7680 : index
    %162 = vector.load %arg9[%c0_142, %c7680] : memref<1x8192xf32, #tpu.memory_space<vmem>>, vector<1x128xf32>
    tpu.vector_store %arg9[%c0_142, %c7680], %161 {strides = array<i32>} : memref<1x8192xf32, #tpu.memory_space<vmem>>, vector<1x128xf32>,
    %c61 = arith.constant 61 : index
    %c0_143 = arith.constant 0 : index
    %163 = vector.load %arg8[%c61, %c0_143] : memref<64x128xf32, #tpu.memory_space<vmem>>, vector<1x128xf32>
    %c0_144 = arith.constant 0 : index
    %c7808 = arith.constant 7808 : index
    %164 = vector.load %arg9[%c0_144, %c7808] : memref<1x8192xf32, #tpu.memory_space<vmem>>, vector<1x128xf32>
    tpu.vector_store %arg9[%c0_144, %c7808], %163 {strides = array<i32>} : memref<1x8192xf32, #tpu.memory_space<vmem>>, vector<1x128xf32>,
    %c62 = arith.constant 62 : index
    %c0_145 = arith.constant 0 : index
    %165 = vector.load %arg8[%c62, %c0_145] : memref<64x128xf32, #tpu.memory_space<vmem>>, vector<1x128xf32>
    %c0_146 = arith.constant 0 : index
    %c7936 = arith.constant 7936 : index
    %166 = vector.load %arg9[%c0_146, %c7936] : memref<1x8192xf32, #tpu.memory_space<vmem>>, vector<1x128xf32>
    tpu.vector_store %arg9[%c0_146, %c7936], %165 {strides = array<i32>} : memref<1x8192xf32, #tpu.memory_space<vmem>>, vector<1x128xf32>,
    %c63 = arith.constant 63 : index
    %c0_147 = arith.constant 0 : index
    %167 = vector.load %arg8[%c63, %c0_147] : memref<64x128xf32, #tpu.memory_space<vmem>>, vector<1x128xf32>
    %c0_148 = arith.constant 0 : index
    %c8064 = arith.constant 8064 : index
    %168 = vector.load %arg9[%c0_148, %c8064] : memref<1x8192xf32, #tpu.memory_space<vmem>>, vector<1x128xf32>
    tpu.vector_store %arg9[%c0_148, %c8064], %167 {strides = array<i32>} : memref<1x8192xf32, #tpu.memory_space<vmem>>, vector<1x128xf32>,
    %c0_149 = arith.constant 0 : index
    %c0_150 = arith.constant 0 : index
    %169 = vector.load %arg9[%c0_149, %c0_150] : memref<1x8192xf32, #tpu.memory_space<vmem>>, vector<1x8192xf32>
    %c0_151 = arith.constant 0 : index
    %c0_152 = arith.constant 0 : index
    %170 = vector.load %arg5[%c0_151, %c0_152] : memref<8192x128xf32, #tpu.memory_space<vmem>>, vector<8192x128xf32>
    %cst_153 = arith.constant dense<0.000000e+00> : vector<1x128xf32>
    %171 = tpu.matmul %169, %170, %cst_153 {dimension_numbers = #tpu.dot_dimension_numbers<[1], [0], [0], [1], [0, 0, 1, 1], [], []>} : vector<1x8192xf32>, vector<8192x128xf32>, vector<1x128xf32> -> vector<1x128xf32>
    %c0_154 = arith.constant 0 : index
    %c0_155 = arith.constant 0 : index
    %172 = vector.load %arg6[%c0_154, %c0_155] : memref<1x128xf32, #tpu.memory_space<vmem>>, vector<1x128xf32>
    %173 = arith.addf %171, %172 : vector<1x128xf32>
    %c0_156 = arith.constant 0 : index
    %c0_157 = arith.constant 0 : index
    %c0_158 = arith.constant 0 : index
    %174 = vector.load %arg7[%c0_156, %c0_157, %c0_158] : memref<1x1x128xf32, #tpu.memory_space<vmem>>, vector<1x1x128xf32>
    %175 = vector.shape_cast %174 : vector<1x1x128xf32> to vector<1x128xf32>
    %176 = vector.shape_cast %173 : vector<1x128xf32> to vector<1x1x128xf32>
    tpu.vector_store %arg7[%c0_156, %c0_157, %c0_158], %176 {strides = array<i32>} : memref<1x1x128xf32, #tpu.memory_space<vmem>>, vector<1x1x128xf32>,
    return
  }
  func.func @transform_0(%arg0: i32) -> (i32, i32, i32) {
    %c0_i32 = arith.constant 0 : i32
    %c0_i32_0 = arith.constant 0 : i32
    %c0_i32_1 = arith.constant 0 : i32
    return %arg0, %c0_i32, %c0_i32_0 : i32, i32, i32
  }
  func.func @transform_1(%arg0: i32) -> (i32, i32) {
    %c0_i32 = arith.constant 0 : i32
    %c0_i32_0 = arith.constant 0 : i32
    %c0_i32_1 = arith.constant 0 : i32
    return %c0_i32, %c0_i32_0 : i32, i32
  }
  func.func @transform_2(%arg0: i32) -> (i32, i32) {
    %c0_i32 = arith.constant 0 : i32
    %c0_i32_0 = arith.constant 0 : i32
    %c0_i32_1 = arith.constant 0 : i32
    return %c0_i32, %c0_i32_0 : i32, i32
  }
  func.func @transform_3(%arg0: i32) -> (i32, i32) {
    %c0_i32 = arith.constant 0 : i32
    %c0_i32_0 = arith.constant 0 : i32
    %c0_i32_1 = arith.constant 0 : i32
    return %c0_i32, %c0_i32_0 : i32, i32
  }
  func.func @transform_4(%arg0: i32) -> (i32, i32) {
    %c0_i32 = arith.constant 0 : i32
    %c0_i32_0 = arith.constant 0 : i32
    %c0_i32_1 = arith.constant 0 : i32
    return %c0_i32, %c0_i32_0 : i32, i32
  }
  func.func @transform_5(%arg0: i32) -> (i32, i32) {
    %c0_i32 = arith.constant 0 : i32
    %c0_i32_0 = arith.constant 0 : i32
    %c0_i32_1 = arith.constant 0 : i32
    return %c0_i32, %c0_i32_0 : i32, i32
  }
  func.func @transform_6(%arg0: i32) -> (i32, i32, i32) {
    %c0_i32 = arith.constant 0 : i32
    %c0_i32_0 = arith.constant 0 : i32
    %c0_i32_1 = arith.constant 0 : i32
    return %arg0, %c0_i32, %c0_i32_0 : i32, i32, i32
  }
}

</mosaic_0001>

<llo_original>
// kernel: tpu_custom_call.1
$region0: #{tpu_custom_call.1}
  #allocation0 [shape = 'u32[]', space=smem, size = 0x4, offset = 0x4, fixed_abs, tag = 'smem constant byte address 0x4 - core index']
  #allocation1 [shape = 'u32[144,128]{1,0:T(1,128)}', space=vmem, size = 0x12000, scoped, tag = 'internal scratch']
  #allocation2 [shape = 'f32[64,128]{1,0:T(8,128)}', space=vmem, size = 0x8000, scoped, tag = 'scratch operand']
  #allocation3 [shape = 'f32[1,8192]{1,0:T(1,128)}', space=vmem, size = 0x8000, scoped, tag = 'scratch operand']
  %s0 = inlined_call_operand.hbm [shape: f32[2,8,128], index: 0, kind: input, shape index: {}]
  %s1 = inlined_call_operand.vmem [shape: f32[128,64], index: 1, kind: input, shape index: {}]
  %s2 = inlined_call_operand.hbm [shape: f32[1,64], index: 2, kind: input, shape index: {}]
  %s3 = inlined_call_operand.hbm [shape: f32[64,128], index: 3, kind: input, shape index: {}]
  %s4 = inlined_call_operand.hbm [shape: f32[8192,128], index: 4, kind: input, shape index: {}]
  %s5 = inlined_call_operand.hbm [shape: f32[1,128], index: 5, kind: input, shape index: {}]
  %s6 = inlined_call_operand.hbm [shape: f32[2,1,128], index: 6, kind: output, shape index: {}]
  %s7 = sld [smem:[#allocation0]]
  $region77: #{tpu_custom_call.1} parent=0
    _
  %s9 = ssub.s32 1, %s7
  %s10 = scalar_select 0, %s9, %s7
  $region1: #{tpu_custom_call.1} parent=0
    #allocation4 [shape = 'u8[8192]{0}', space=vmem, size = 0x2000, scoped, tag = 'input window, operand 0']
    #allocation5 [shape = 's32[2]{0}', space=sflag, size = 0x8, scoped, tag = 'scoped memory for tpu_custom_call.1']
    #allocation6 [shape = 's32[2]{0}', space=sflag, size = 0x8, scoped, tag = 'scoped memory for tpu_custom_call.1']
    #allocation7 [shape = 'u8[512]{0}', space=vmem, size = 0x400, scoped, tag = 'input window, operand 2, single buffered']
    #allocation8 [shape = 's32[1]{0}', space=sflag, size = 0x4, scoped, tag = 'scoped memory for tpu_custom_call.1']
    #allocation9 [shape = 'u8[32768]{0}', space=vmem, size = 0x8000, scoped, tag = 'input window, operand 3, single buffered']
    #allocation10 [shape = 'u8[4194304]{0}', space=vmem, size = 0x400000, scoped, tag = 'input window, operand 4, single buffered']
    #allocation11 [shape = 's32[1]{0}', space=sflag, size = 0x4, scoped, tag = 'scoped memory for tpu_custom_call.1']
    #allocation12 [shape = 'u8[512]{0}', space=vmem, size = 0x400, scoped, tag = 'input window, operand 5, single buffered']
    #allocation13 [shape = 'u8[1024]{0}', space=vmem, size = 0x400, scoped, tag = 'output window, operand 0']
    %11 = vsyncpa [#allocation5], 0
    %s12 = scalar_lea.sflag [#allocation5], 1
    %13 = vsyncpa %s12, 0
    %14 = vsyncpa [#allocation8], 0
    %15 = vsyncpa [#allocation11], 0
    %16 = vsyncpa [#allocation6], 0
    %s17 = scalar_lea.sflag [#allocation6], 1
    %18 = vsyncpa %s17, 0
    loop: start=0, step=1, limit=4
    $region2: #{tpu_custom_call.1} parent=1 // loop_pre_header
      _
    $region3: #{tpu_custom_call.1} parent=1 // loop_header
      %s20 = sphi 0, %s24
      %p21 = scmp.ge.s32.totalorder %s20, 4
      %s30 = sphi 0, %s32
      %s33 = sphi 0, %s30
      %s34 = sphi 0, %s33
      %s50 = sphi 0, %s34
      %s54 = sphi 0, %s54
      %s56 = sphi 0, %s54
      %s57 = sphi 0, %s56
      %s71 = sphi 0, %s57
      %s75 = sphi 0, %s75
      %s77 = sphi 0, %s75
      %s78 = sphi 0, %s77
      %s92 = sphi 0, %s78
      %s96 = sphi 0, %s96
      %s98 = sphi 0, %s96
      %s99 = sphi 0, %s98
      %s113 = sphi 0, %s99
      %s117 = sphi 0, %s117
      %s119 = sphi 0, %s117
      %s120 = sphi 0, %s119
      %s134 = sphi 0, %s120
      %s138 = sphi 0, %s138
      %s140 = sphi 0, %s138
      %s141 = sphi 0, %s140
      %s155 = sphi 0, %s141
      %s161 = sphi 0, %s163
      %s164 = sphi 0, %s161
      %s165 = sphi 0, %s164
      %s181 = sphi 0, %s165
    $region4: #{tpu_custom_call.1} parent=1 // loop_header_branch
      %23 = sbr.rel (%p21) target = $region8
    $region5: #{tpu_custom_call.1} parent=1 // loop_body
      %s25 = ssub.s32 %s20, 1
      %s26 = ssub.s32 %s20, 2
      %s27 = sadd.s32 %s20, 1
      %s28 = ssub.s32 %s20, %s27
      %p29 = scmp.eq.s32.totalorder %s28, 0
      %s31 = sadd.s32 %s30, 1
      %s32 = scalar_select %p29, %s30, %s31
      %p35 = pneg %p29
      %p36 = scmp.eq.s32.totalorder %s20, 1
      %p37 = por %p35, %p36
      %p38 = scmp.ne.s32.totalorder %s30, %s33
      %p39 = scmp.eq.s32.totalorder %s20, 0
      %p40 = por %p38, %p39
      %p41 = scmp.ne.s32.totalorder %s30, %s33
      %p42 = scmp.eq.s32.totalorder %s25, 1
      %p43 = por %p41, %p42
      %p44 = scmp.ne.s32.totalorder %s33, %s34
      %p45 = scmp.eq.s32.totalorder %s25, 0
      %p46 = por %p44, %p45
      %p47 = scmp.ne.s32.totalorder %s33, %s34
      %p48 = scmp.eq.s32.totalorder %s26, 1
      %p49 = por %p47, %p48
      %p51 = scmp.ne.s32.totalorder %s34, %s50
      %p52 = scmp.eq.s32.totalorder %s26, 0
      %p53 = por %p51, %p52
      %s55 = sadd.s32 %s54, 1
      %p58 = scmp.eq.s32.totalorder %s20, 1
      %p59 = scmp.ne.s32.totalorder %s54, %s56
      %p60 = scmp.eq.s32.totalorder %s20, 0
      %p61 = por %p59, %p60
      %p62 = scmp.ne.s32.totalorder %s54, %s56
      %p63 = scmp.eq.s32.totalorder %s25, 1
      %p64 = por %p62, %p63
      %p65 = scmp.ne.s32.totalorder %s56, %s57
      %p66 = scmp.eq.s32.totalorder %s25, 0
      %p67 = por %p65, %p66
      %p68 = scmp.ne.s32.totalorder %s56, %s57
      %p69 = scmp.eq.s32.totalorder %s26, 1
      %p70 = por %p68, %p69
      %p72 = scmp.ne.s32.totalorder %s57, %s71
      %p73 = scmp.eq.s32.totalorder %s26, 0
      %p74 = por %p72, %p73
      %s76 = sadd.s32 %s75, 1
      %p79 = scmp.eq.s32.totalorder %s20, 1
      %p80 = scmp.ne.s32.totalorder %s75, %s77
      %p81 = scmp.eq.s32.totalorder %s20, 0
      %p82 = por %p80, %p81
      %p83 = scmp.ne.s32.totalorder %s75, %s77
      %p84 = scmp.eq.s32.totalorder %s25, 1
      %p85 = por %p83, %p84
      %p86 = scmp.ne.s32.totalorder %s77, %s78
      %p87 = scmp.eq.s32.totalorder %s25, 0
      %p88 = por %p86, %p87
      %p89 = scmp.ne.s32.totalorder %s77, %s78
      %p90 = scmp.eq.s32.totalorder %s26, 1
      %p91 = por %p89, %p90
      %p93 = scmp.ne.s32.totalorder %s78, %s92
      %p94 = scmp.eq.s32.totalorder %s26, 0
      %p95 = por %p93, %p94
      %s97 = sadd.s32 %s96, 1
      %p100 = scmp.eq.s32.totalorder %s20, 1
      %p101 = scmp.ne.s32.totalorder %s96, %s98
      %p102 = scmp.eq.s32.totalorder %s20, 0
      %p103 = por %p101, %p102
      %p104 = scmp.ne.s32.totalorder %s96, %s98
      %p105 = scmp.eq.s32.totalorder %s25, 1
      %p106 = por %p104, %p105
      %p107 = scmp.ne.s32.totalorder %s98, %s99
      %p108 = scmp.eq.s32.totalorder %s25, 0
      %p109 = por %p107, %p108
      %p110 = scmp.ne.s32.totalorder %s98, %s99
      %p111 = scmp.eq.s32.totalorder %s26, 1
      %p112 = por %p110, %p111
      %p114 = scmp.ne.s32.totalorder %s99, %s113
      %p115 = scmp.eq.s32.totalorder %s26, 0
      %p116 = por %p114, %p115
      %s118 = sadd.s32 %s117, 1
      %p121 = scmp.eq.s32.totalorder %s20, 1
      %p122 = scmp.ne.s32.totalorder %s117, %s119
      %p123 = scmp.eq.s32.totalorder %s20, 0
      %p124 = por %p122, %p123
      %p125 = scmp.ne.s32.totalorder %s117, %s119
      %p126 = scmp.eq.s32.totalorder %s25, 1
      %p127 = por %p125, %p126
      %p128 = scmp.ne.s32.totalorder %s119, %s120
      %p129 = scmp.eq.s32.totalorder %s25, 0
      %p130 = por %p128, %p129
      %p131 = scmp.ne.s32.totalorder %s119, %s120
      %p132 = scmp.eq.s32.totalorder %s26, 1
      %p133 = por %p131, %p132
      %p135 = scmp.ne.s32.totalorder %s120, %s134
      %p136 = scmp.eq.s32.totalorder %s26, 0
      %p137 = por %p135, %p136
      %s139 = sadd.s32 %s138, 1
      %p142 = scmp.eq.s32.totalorder %s20, 1
      %p143 = scmp.ne.s32.totalorder %s138, %s140
      %p144 = scmp.eq.s32.totalorder %s20, 0
      %p145 = por %p143, %p144
      %p146 = scmp.ne.s32.totalorder %s138, %s140
      %p147 = scmp.eq.s32.totalorder %s25, 1
      %p148 = por %p146, %p147
      %p149 = scmp.ne.s32.totalorder %s140, %s141
      %p150 = scmp.eq.s32.totalorder %s25, 0
      %p151 = por %p149, %p150
      %p152 = scmp.ne.s32.totalorder %s140, %s141
      %p153 = scmp.eq.s32.totalorder %s26, 1
      %p154 = por %p152, %p153
      %p156 = scmp.ne.s32.totalorder %s141, %s155
      %p157 = scmp.eq.s32.totalorder %s26, 0
      %p158 = por %p156, %p157
      %s159 = ssub.s32 %s20, %s27
      %p160 = scmp.eq.s32.totalorder %s159, 0
      %s162 = sadd.s32 %s161, 1
      %s163 = scalar_select %p160, %s161, %s162
      %p166 = pneg %p160
      %p167 = scmp.eq.s32.totalorder %s20, 1
      %p168 = por %p166, %p167
      %p169 = scmp.ne.s32.totalorder %s161, %s164
      %p170 = scmp.eq.s32.totalorder %s20, 0
      %p171 = por %p169, %p170
      %p172 = scmp.ne.s32.totalorder %s161, %s164
      %p173 = scmp.eq.s32.totalorder %s25, 1
      %p174 = por %p172, %p173
      %p175 = scmp.ne.s32.totalorder %s164, %s165
      %p176 = scmp.eq.s32.totalorder %s25, 0
      %p177 = por %p175, %p176
      %p178 = scmp.ne.s32.totalorder %s164, %s165
      %p179 = scmp.eq.s32.totalorder %s26, 1
      %p180 = por %p178, %p179
      %p182 = scmp.ne.s32.totalorder %s165, %s181
      %p183 = scmp.eq.s32.totalorder %s26, 0
      %p184 = por %p182, %p183
      %p185 = scmp.le.s32.totalorder 1, %s20
      %p186 = scmp.lt.s32.totalorder %s20, 3
      %p187 = pnand %p185, %p186
      %p188 = pneg %p187
      // Predicated region
      $region9: #{tpu_custom_call.1} parent=5 // pred_check
        _
      $region10: #{tpu_custom_call.1} parent=5 // pred_check_branch
        %190 = sbr.rel (%p187) target = $region12
      $region11: #{tpu_custom_call.1} parent=5 // pred_region
        %s191 = ssub.s32 %s20, 1
        // Predicated region
        $region13: #{tpu_custom_call.1} parent=11 // pred_check
          %p192 = pneg %p67
        $region14: #{tpu_custom_call.1} parent=11 // pred_check_branch
          %194 = sbr.rel (%p192) target = $region16
        $region15: #{tpu_custom_call.1} parent=11 // pred_region
          _
        $region16: #{tpu_custom_call.1} parent=11 // pred_fallthru
          _
        // Predicated region
        $region17: #{tpu_custom_call.1} parent=11 // pred_check
          %p195 = pneg %p88
        $region18: #{tpu_custom_call.1} parent=11 // pred_check_branch
          %197 = sbr.rel (%p195) target = $region20
        $region19: #{tpu_custom_call.1} parent=11 // pred_region
          %s199 = ssub.s32 16, 16
          %200 = vsyncadd [#allocation8], %s199
          %s202 = sshll.u32 [#allocation7], 4
          %s203 = int_to_ptr.vmem [resolvable:$true] %s202
          %205 = dma.hbm_to_vmem [thread:$0]  %s2, 16, %s203, [#allocation8]
        $region20: #{tpu_custom_call.1} parent=11 // pred_fallthru
          _
        // Predicated region
        $region21: #{tpu_custom_call.1} parent=11 // pred_check
          %p206 = pneg %p109
        $region22: #{tpu_custom_call.1} parent=11 // pred_check_branch
          %208 = sbr.rel (%p206) target = $region24
        $region23: #{tpu_custom_call.1} parent=11 // pred_region
          %s210 = ssub.s32 1024, 1024
          %211 = vsyncadd [#allocation8], %s210
          %s212 = sshll.u32 [#allocation9], 4
          %s213 = int_to_ptr.vmem [resolvable:$true] %s212
          %218 = dma.hbm_to_vmem [thread:$0]  %s3, 1024, %s213, [#allocation8], 128, 128, 8
        $region24: #{tpu_custom_call.1} parent=11 // pred_fallthru
          _
        // Predicated region
        $region25: #{tpu_custom_call.1} parent=11 // pred_check
          %p219 = pneg %p130
        $region26: #{tpu_custom_call.1} parent=11 // pred_check_branch
          %221 = sbr.rel (%p219) target = $region28
        $region27: #{tpu_custom_call.1} parent=11 // pred_region
          %s223 = ssub.s32 131072, 131072
          %224 = vsyncadd [#allocation11], %s223
          %s225 = sshll.u32 [#allocation10], 4
          %s226 = int_to_ptr.vmem [resolvable:$true] %s225
          %231 = dma.hbm_to_vmem [thread:$0]  %s4, 131072, %s226, [#allocation11], 128, 128, 8
        $region28: #{tpu_custom_call.1} parent=11 // pred_fallthru
          _
        // Predicated region
        $region29: #{tpu_custom_call.1} parent=11 // pred_check
          %p232 = pneg %p151
        $region30: #{tpu_custom_call.1} parent=11 // pred_check_branch
          %234 = sbr.rel (%p232) target = $region32
        $region31: #{tpu_custom_call.1} parent=11 // pred_region
          %s236 = ssub.s32 16, 16
          %237 = vsyncadd [#allocation11], %s236
          %s239 = sshll.u32 [#allocation12], 4
          %s240 = int_to_ptr.vmem [resolvable:$true] %s239
          %242 = dma.hbm_to_vmem [thread:$0]  %s5, 16, %s240, [#allocation11]
        $region32: #{tpu_custom_call.1} parent=11 // pred_fallthru
          _
      $region12: #{tpu_custom_call.1} parent=5 // pred_fallthru
        _
      %p243 = scmp.lt.s32.totalorder %s20, 2
      // Predicated region
      $region33: #{tpu_custom_call.1} parent=5 // pred_check
        %p244 = pneg %p243
      $region34: #{tpu_custom_call.1} parent=5 // pred_check_branch
        %246 = sbr.rel (%p244) target = $region36
      $region35: #{tpu_custom_call.1} parent=5 // pred_region
        // Predicated region
        $region37: #{tpu_custom_call.1} parent=35 // pred_check
          %p247 = pneg %p40
        $region38: #{tpu_custom_call.1} parent=35 // pred_check_branch
          %249 = sbr.rel (%p247) target = $region40
        $region39: #{tpu_custom_call.1} parent=35 // pred_region
          %s250 = sand.u32 %s30, 1
          %s251 = scalar_lea.sflag [#allocation5], %s250
          %s252 = sand.u32 %s30, 1
          %s253 = smul.addr %s252, 8
          %s254 = scalar_lea.vmem [#allocation4], %s253
          %s256 = ssub.s32 128, 128
          %257 = vsyncadd %s251, %s256
          %s258 = smul.addr %s20, 128
          %s259 = scalar_lea.hbm %s0, %s258
          %s261 = sshll.u32 %s254, 4
          %s262 = int_to_ptr.vmem [resolvable:$true] %s261
          %264 = dma.hbm_to_vmem [thread:$0]  %s259, 128, %s262, %s251
        $region40: #{tpu_custom_call.1} parent=35 // pred_fallthru
          _
      $region36: #{tpu_custom_call.1} parent=5 // pred_fallthru
        _
      %p265 = scmp.le.s32.totalorder 1, %s20
      %p266 = scmp.lt.s32.totalorder %s20, 3
      %p267 = pnand %p265, %p266
      %p268 = pneg %p267
      // Predicated region
      $region41: #{tpu_custom_call.1} parent=5 // pred_check
        _
      $region42: #{tpu_custom_call.1} parent=5 // pred_check_branch
        %270 = sbr.rel (%p267) target = $region44
      $region43: #{tpu_custom_call.1} parent=5 // pred_region
        %s271 = ssub.s32 %s20, 1
        %s272 = sand.u32 %s33, 1
        %s273 = scalar_lea.sflag [#allocation5], %s272
        %s274 = sand.u32 %s33, 1
        %s275 = smul.addr %s274, 8
        %s276 = scalar_lea.vmem [#allocation4], %s275
        // Predicated region
        $region45: #{tpu_custom_call.1} parent=43 // pred_check
          %p277 = pneg %p46
        $region46: #{tpu_custom_call.1} parent=43 // pred_check_branch
          %279 = sbr.rel (%p277) target = $region48
        $region47: #{tpu_custom_call.1} parent=43 // pred_region
          %280 = dma.done %s273, 128
        $region48: #{tpu_custom_call.1} parent=43 // pred_fallthru
          _
        // Predicated region
        $region49: #{tpu_custom_call.1} parent=43 // pred_check
          %p281 = pneg %p88
        $region50: #{tpu_custom_call.1} parent=43 // pred_check_branch
          %283 = sbr.rel (%p281) target = $region52
        $region51: #{tpu_custom_call.1} parent=43 // pred_region
          %284 = dma.done [#allocation8], 16
        $region52: #{tpu_custom_call.1} parent=43 // pred_fallthru
          _
        // Predicated region
        $region53: #{tpu_custom_call.1} parent=43 // pred_check
          %p285 = pneg %p109
        $region54: #{tpu_custom_call.1} parent=43 // pred_check_branch
          %287 = sbr.rel (%p285) target = $region56
        $region55: #{tpu_custom_call.1} parent=43 // pred_region
          %288 = dma.done [#allocation8], 1024
        $region56: #{tpu_custom_call.1} parent=43 // pred_fallthru
          _
        // Predicated region
        $region57: #{tpu_custom_call.1} parent=43 // pred_check
          %p289 = pneg %p130
        $region58: #{tpu_custom_call.1} parent=43 // pred_check_branch
          %291 = sbr.rel (%p289) target = $region60
        $region59: #{tpu_custom_call.1} parent=43 // pred_region
          %292 = dma.done [#allocation11], 131072
        $region60: #{tpu_custom_call.1} parent=43 // pred_fallthru
          _
        // Predicated region
        $region61: #{tpu_custom_call.1} parent=43 // pred_check
          %p293 = pneg %p151
        $region62: #{tpu_custom_call.1} parent=43 // pred_check_branch
          %295 = sbr.rel (%p293) target = $region64
        $region63: #{tpu_custom_call.1} parent=43 // pred_region
          %296 = dma.done [#allocation11], 16
        $region64: #{tpu_custom_call.1} parent=43 // pred_fallthru
          _
        %s297 = sand.u32 %s33, 1
        %s298 = scalar_lea.sflag [#allocation5], %s297
        %s299 = sand.u32 %s33, 1
        %s300 = smul.addr %s299, 8
        %s301 = scalar_lea.vmem [#allocation4], %s300
        %p302 = pneg %p46
        %p303 = pneg %p43
        %p304 = pneg %p67
        %p305 = pneg %p64
        %p306 = pneg %p88
        %p307 = pneg %p85
        %p308 = pneg %p109
        %p309 = pneg %p106
        %p310 = pneg %p130
        %p311 = pneg %p127
        %p312 = pneg %p151
        %p313 = pneg %p148
        %p314 = pneg %p177
        %p315 = pneg %p174
        %s316 = sand.u32 %s164, 1
        %s317 = scalar_lea.sflag [#allocation6], %s316
        %s318 = sand.u32 %s164, 1
        %s319 = scalar_lea.vmem [#allocation13], %s318
        %v320 = vld [vmem:[%s276] sm:$0xff]
        %v321 = vld [vmem:[%s1] sm:$0xff]
        %v322 = vld [vmem:[%s1 + $0x8] sm:$0xff]
        %v323 = vld [vmem:[%s1 + $0x10] sm:$0xff]
        %v324 = vld [vmem:[%s1 + $0x18] sm:$0xff]
        %v325 = vld [vmem:[%s1 + $0x20] sm:$0xff]
        %v326 = vld [vmem:[%s1 + $0x28] sm:$0xff]
        %v327 = vld [vmem:[%s1 + $0x30] sm:$0xff]
        %v328 = vld [vmem:[%s1 + $0x38] sm:$0xff]
        %v329 = vld [vmem:[%s1 + $0x40] sm:$0xff]
        %v330 = vld [vmem:[%s1 + $0x48] sm:$0xff]
        %v331 = vld [vmem:[%s1 + $0x50] sm:$0xff]
        %v332 = vld [vmem:[%s1 + $0x58] sm:$0xff]
        %v333 = vld [vmem:[%s1 + $0x60] sm:$0xff]
        %v334 = vld [vmem:[%s1 + $0x68] sm:$0xff]
        %v335 = vld [vmem:[%s1 + $0x70] sm:$0xff]
        %v336 = vld [vmem:[%s1 + $0x78] sm:$0xff]
        %v337 = vld [vmem:[#allocation7] sm:$0x1]
        %v339 = vlaneseq
        %v340 = vshrl.u32 %v339, 7
        %v341 = vsub.s32 0, %v340
        %v342 = vrot.slane %v337, %v341
        %344 = vmatprep.subr.mxu0 0.0
        %345 = vmatpush1.msra.mxu0 %v336
        %346 = vmatprep.subr.mxu0 0.0
        %347 = vmatpush1.msra.mxu0 %v335
        %348 = vmatprep.subr.mxu0 0.0
        %349 = vmatpush1.msra.mxu0 %v334
        %350 = vmatprep.subr.mxu0 0.0
        %351 = vmatpush1.msra.mxu0 %v333
        %352 = vmatprep.subr.mxu0 0.0
        %353 = vmatpush1.msra.mxu0 %v332
        %354 = vmatprep.subr.mxu0 0.0
        %355 = vmatpush1.msra.mxu0 %v331
        %356 = vmatprep.subr.mxu0 0.0
        %357 = vmatpush1.msra.mxu0 %v330
        %358 = vmatprep.subr.mxu0 0.0
        %359 = vmatpush1.msra.mxu0 %v329
        %360 = vmatprep.subr.mxu0 0.0
        %361 = vmatpush1.msra.mxu0 %v328
        %362 = vmatprep.subr.mxu0 0.0
        %363 = vmatpush1.msra.mxu0 %v327
        %364 = vmatprep.subr.mxu0 0.0
        %365 = vmatpush1.msra.mxu0 %v326
        %366 = vmatprep.subr.mxu0 0.0
        %367 = vmatpush1.msra.mxu0 %v325
        %368 = vmatprep.subr.mxu0 0.0
        %369 = vmatpush1.msra.mxu0 %v324
        %370 = vmatprep.subr.mxu0 0.0
        %371 = vmatpush1.msra.mxu0 %v323
        %372 = vmatprep.subr.mxu0 0.0
        %373 = vmatpush1.msra.mxu0 %v322
        %374 = vmatprep.subr.mxu0 0.0
        %375 = vmatpush1.msra.mxu0 %v321
        %376 = vmatprep.subr.mxu0 0.0
        %377 = vmatpush2.msra.mxu0 0.0
        %378 = vmatprep.subr.mxu0 0.0
        %379 = vmatpush2.msra.mxu0 0.0
        %380 = vmatprep.subr.mxu0 0.0
        %381 = vmatpush2.msra.mxu0 0.0
        %382 = vmatprep.subr.mxu0 0.0
        %383 = vmatpush2.msra.mxu0 0.0
        %384 = vmatprep.subr.mxu0 0.0
        %385 = vmatpush2.msra.mxu0 0.0
        %386 = vmatprep.subr.mxu0 0.0
        %387 = vmatpush2.msra.mxu0 0.0
        %388 = vmatprep.subr.mxu0 0.0
        %389 = vmatpush2.msra.mxu0 0.0
        %390 = vmatprep.subr.mxu0 0.0
        %391 = vmatpush2.msra.mxu0 0.0
        %392 = vmatprep.subr.mxu0 0.0
        %393 = vmatpush2.msra.mxu0 0.0
        %394 = vmatprep.subr.mxu0 0.0
        %395 = vmatpush2.msra.mxu0 0.0
        %396 = vmatprep.subr.mxu0 0.0
        %397 = vmatpush2.msra.mxu0 0.0
        %398 = vmatprep.subr.mxu0 0.0
        %399 = vmatpush2.msra.mxu0 0.0
        %400 = vmatprep.subr.mxu0 0.0
        %401 = vmatpush2.msra.mxu0 0.0
        %402 = vmatprep.subr.mxu0 0.0
        %403 = vmatpush2.msra.mxu0 0.0
        %404 = vmatprep.subr.mxu0 0.0
        %405 = vmatpush2.msra.mxu0 0.0
        %406 = vmatprep.subr.mxu0 0.0
        %407 = vmatpush2.msra.mxu0 0.0
        %408 = vmatprep.mubr.f32.mxu0 0.0
        %409 = vmatmul.mubr.f32.gmra.mxu0 %v320
        %v410 = vpop.f32.mrf.mxu0
        %v411 = vadd.f32 %v342, %v410
        %v412 = vpop.f32.mrf.mxu0
        %413 = vdwg.mxu0
        %vm414 = vcmask 523264
        %v415 = vsel %vm414, %v411, -inf
        %416 = vmax.xlane.f32.xlu0 %v415
        %v417 = vpop.xlane.xlu0 %416
        %v418 = vsub.f32 %v411, %v417
        %v419 = vmul.f32 %v418, 1.442695
        %v420 = vpow.pop %v419
        %v421 = vsel %vm414, %v420, 0.0
        %422 = vadd.xlane.f32.xlu0 %v421
        %v423 = vpop.xlane.xlu0 %422
        %v424 = vrcp.pop %v423
        %v425 = vmul.f32 %v420, %v424
        %426 = vxpose.xlu0.b32.start [1/16] %v425, 128
        %427 = vxpose.xlu0.b32.cont [2/16] 0.0, 128
        %428 = vxpose.xlu0.b32.cont [3/16] 0.0, 128
        %429 = vxpose.xlu0.b32.cont [4/16] 0.0, 128
        %430 = vxpose.xlu0.b32.cont [5/16] 0.0, 128
        %431 = vxpose.xlu0.b32.cont [6/16] 0.0, 128
        %432 = vxpose.xlu0.b32.cont [7/16] 0.0, 128
        %433 = vxpose.xlu0.b32.cont [8/16] 0.0, 128
        %434 = vxpose.xlu0.b32.cont [9/16] 0.0, 128
        %435 = vxpose.xlu0.b32.cont [10/16] 0.0, 128
        %436 = vxpose.xlu0.b32.cont [11/16] 0.0, 128
        %437 = vxpose.xlu0.b32.cont [12/16] 0.0, 128
        %438 = vxpose.xlu0.b32.cont [13/16] 0.0, 128
        %439 = vxpose.xlu0.b32.cont [14/16] 0.0, 128
        %440 = vxpose.xlu0.b32.cont [15/16] 0.0, 128
        %441 = vxpose.xlu0.b32.end [16/16] 0.0, 128
        %v442 = vpop.trf.xlu0
        %v443 = vpop.trf.xlu0
        %v444 = vpop.trf.xlu0
        %v445 = vpop.trf.xlu0
        %v446 = vpop.trf.xlu0
        %v447 = vpop.trf.xlu0
        %v448 = vpop.trf.xlu0
        %v449 = vpop.trf.xlu0
        %v450 = vpop.trf.xlu0
        %v451 = vpop.trf.xlu0
        %v452 = vpop.trf.xlu0
        %v453 = vpop.trf.xlu0
        %v454 = vpop.trf.xlu0
        %v455 = vpop.trf.xlu0
        %v456 = vpop.trf.xlu0
        %v457 = vpop.trf.xlu0
        %vm458 = vcmask 64512
        %v460 = vsel %vm458, %v442, 0
        %v463 = vsel %vm458, %v443, 0
        %v466 = vsel %vm458, %v444, 0
        %v469 = vsel %vm458, %v445, 0
        %v472 = vsel %vm458, %v446, 0
        %v475 = vsel %vm458, %v447, 0
        %v478 = vsel %vm458, %v448, 0
        %v481 = vsel %vm458, %v449, 0
        %483 = vmatprep.subr.mxu0 0.0
        %484 = vmatpush1.msra.mxu0 0.0
        %485 = vmatprep.subr.mxu0 0.0
        %486 = vmatpush1.msra.mxu0 0.0
        %487 = vmatprep.subr.mxu0 0.0
        %488 = vmatpush1.msra.mxu0 0.0
        %489 = vmatprep.subr.mxu0 0.0
        %490 = vmatpush1.msra.mxu0 0.0
        %491 = vmatprep.subr.mxu0 0.0
        %492 = vmatpush1.msra.mxu0 0.0
        %493 = vmatprep.subr.mxu0 0.0
        %494 = vmatpush1.msra.mxu0 0.0
        %495 = vmatprep.subr.mxu0 0.0
        %496 = vmatpush1.msra.mxu0 0.0
        %497 = vmatprep.subr.mxu0 0.0
        %498 = vmatpush1.msra.mxu0 0.0
        %499 = vmatprep.subr.mxu0 0.0
        %500 = vmatpush1.msra.mxu0 0.0
        %501 = vmatprep.subr.mxu0 0.0
        %502 = vmatpush1.msra.mxu0 0.0
        %503 = vmatprep.subr.mxu0 0.0
        %504 = vmatpush1.msra.mxu0 0.0
        %505 = vmatprep.subr.mxu0 0.0
        %506 = vmatpush1.msra.mxu0 0.0
        %507 = vmatprep.subr.mxu0 0.0
        %508 = vmatpush1.msra.mxu0 0.0
        %509 = vmatprep.subr.mxu0 0.0
        %510 = vmatpush1.msra.mxu0 0.0
        %511 = vmatprep.subr.mxu0 0.0
        %512 = vmatpush1.msra.mxu0 0.0
        %513 = vmatprep.subr.mxu0 0.0
        %514 = vmatpush1.msra.mxu0 %v320
        %515 = vmatprep.subr.mxu0 0.0
        %516 = vmatpush2.msra.mxu0 0.0
        %517 = vmatprep.subr.mxu0 0.0
        %518 = vmatpush2.msra.mxu0 0.0
        %519 = vmatprep.subr.mxu0 0.0
        %520 = vmatpush2.msra.mxu0 0.0
        %521 = vmatprep.subr.mxu0 0.0
        %522 = vmatpush2.msra.mxu0 0.0
        %523 = vmatprep.subr.mxu0 0.0
        %524 = vmatpush2.msra.mxu0 0.0
        %525 = vmatprep.subr.mxu0 0.0
        %526 = vmatpush2.msra.mxu0 0.0
        %527 = vmatprep.subr.mxu0 0.0
        %528 = vmatpush2.msra.mxu0 0.0
        %529 = vmatprep.subr.mxu0 0.0
        %530 = vmatpush2.msra.mxu0 0.0
        %531 = vmatprep.subr.mxu0 0.0
        %532 = vmatpush2.msra.mxu0 0.0
        %533 = vmatprep.subr.mxu0 0.0
        %534 = vmatpush2.msra.mxu0 0.0
        %535 = vmatprep.subr.mxu0 0.0
        %536 = vmatpush2.msra.mxu0 0.0
        %537 = vmatprep.subr.mxu0 0.0
        %538 = vmatpush2.msra.mxu0 0.0
        %539 = vmatprep.subr.mxu0 0.0
        %540 = vmatpush2.msra.mxu0 0.0
        %541 = vmatprep.subr.mxu0 0.0
        %542 = vmatpush2.msra.mxu0 0.0
        %543 = vmatprep.subr.mxu0 0.0
        %544 = vmatpush2.msra.mxu0 0.0
        %545 = vmatprep.subr.mxu0 0.0
        %546 = vmatpush2.msra.mxu0 0.0
        %547 = vmatprep.mubr.f32.mxu0 0.0
        %548 = vmatmul.mubr.f32.gmra.mxu0 %v460
        %v549 = vpop.f32.mrf.mxu0
        %v550 = vadd.f32 0.0, %v549
        %v551 = vpop.f32.mrf.mxu0
        %552 = vmatprep.mubr.f32.mxu0 0.0
        %553 = vmatmul.mubr.f32.gmra.mxu0 %v463
        %v554 = vpop.f32.mrf.mxu0
        %v555 = vadd.f32 0.0, %v554
        %v556 = vpop.f32.mrf.mxu0
        %557 = vmatprep.mubr.f32.mxu0 0.0
        %558 = vmatmul.mubr.f32.gmra.mxu0 %v466
        %v559 = vpop.f32.mrf.mxu0
        %v560 = vadd.f32 0.0, %v559
        %v561 = vpop.f32.mrf.mxu0
        %562 = vmatprep.mubr.f32.mxu0 0.0
        %563 = vmatmul.mubr.f32.gmra.mxu0 %v469
        %v564 = vpop.f32.mrf.mxu0
        %v565 = vadd.f32 0.0, %v564
        %v566 = vpop.f32.mrf.mxu0
        %567 = vmatprep.mubr.f32.mxu0 0.0
        %568 = vmatmul.mubr.f32.gmra.mxu0 %v472
        %v569 = vpop.f32.mrf.mxu0
        %v570 = vadd.f32 0.0, %v569
        %v571 = vpop.f32.mrf.mxu0
        %572 = vmatprep.mubr.f32.mxu0 0.0
        %573 = vmatmul.mubr.f32.gmra.mxu0 %v475
        %v574 = vpop.f32.mrf.mxu0
        %v575 = vadd.f32 0.0, %v574
        %v576 = vpop.f32.mrf.mxu0
        %577 = vmatprep.mubr.f32.mxu0 0.0
        %578 = vmatmul.mubr.f32.gmra.mxu0 %v478
        %v579 = vpop.f32.mrf.mxu0
        %v580 = vadd.f32 0.0, %v579
        %v581 = vpop.f32.mrf.mxu0
        %582 = vmatprep.mubr.f32.mxu0 0.0
        %583 = vmatmul.mubr.f32.gmra.mxu0 %v481
        %v584 = vpop.f32.mrf.mxu0
        %v585 = vadd.f32 0.0, %v584
        %v586 = vpop.f32.mrf.mxu0
        %587 = vdwg.mxu0
        %588 = vmatprep.subr.mxu0 0.0
        %589 = vmatpush1.msra.mxu0 0.0
        %590 = vmatprep.subr.mxu0 0.0
        %591 = vmatpush1.msra.mxu0 0.0
        %592 = vmatprep.subr.mxu0 0.0
        %593 = vmatpush1.msra.mxu0 0.0
        %594 = vmatprep.subr.mxu0 0.0
        %595 = vmatpush1.msra.mxu0 0.0
        %596 = vmatprep.subr.mxu0 0.0
        %597 = vmatpush1.msra.mxu0 0.0
        %598 = vmatprep.subr.mxu0 0.0
        %599 = vmatpush1.msra.mxu0 0.0
        %600 = vmatprep.subr.mxu0 0.0
        %601 = vmatpush1.msra.mxu0 0.0
        %602 = vmatprep.subr.mxu0 0.0
        %603 = vmatpush1.msra.mxu0 0.0
        %604 = vmatprep.subr.mxu0 0.0
        %605 = vmatpush1.msra.mxu0 0.0
        %606 = vmatprep.subr.mxu0 0.0
        %607 = vmatpush1.msra.mxu0 0.0
        %608 = vmatprep.subr.mxu0 0.0
        %609 = vmatpush1.msra.mxu0 0.0
        %610 = vmatprep.subr.mxu0 0.0
        %611 = vmatpush1.msra.mxu0 0.0
        %612 = vmatprep.subr.mxu0 0.0
        %613 = vmatpush1.msra.mxu0 0.0
        %614 = vmatprep.subr.mxu0 0.0
        %615 = vmatpush1.msra.mxu0 0.0
        %616 = vmatprep.subr.mxu0 0.0
        %617 = vmatpush1.msra.mxu0 0.0
        %618 = vmatprep.subr.mxu0 0.0
        %619 = vmatpush1.msra.mxu0 1.0
        %620 = vmatprep.subr.mxu0 0.0
        %621 = vmatpush2.msra.mxu0 0.0
        %622 = vmatprep.subr.mxu0 0.0
        %623 = vmatpush2.msra.mxu0 0.0
        %624 = vmatprep.subr.mxu0 0.0
        %625 = vmatpush2.msra.mxu0 0.0
        %626 = vmatprep.subr.mxu0 0.0
        %627 = vmatpush2.msra.mxu0 0.0
        %628 = vmatprep.subr.mxu0 0.0
        %629 = vmatpush2.msra.mxu0 0.0
        %630 = vmatprep.subr.mxu0 0.0
        %631 = vmatpush2.msra.mxu0 0.0
        %632 = vmatprep.subr.mxu0 0.0
        %633 = vmatpush2.msra.mxu0 0.0
        %634 = vmatprep.subr.mxu0 0.0
        %635 = vmatpush2.msra.mxu0 0.0
        %636 = vmatprep.subr.mxu0 0.0
        %637 = vmatpush2.msra.mxu0 0.0
        %638 = vmatprep.subr.mxu0 0.0
        %639 = vmatpush2.msra.mxu0 0.0
        %640 = vmatprep.subr.mxu0 0.0
        %641 = vmatpush2.msra.mxu0 0.0
        %642 = vmatprep.subr.mxu0 0.0
        %643 = vmatpush2.msra.mxu0 0.0
        %644 = vmatprep.subr.mxu0 0.0
        %645 = vmatpush2.msra.mxu0 0.0
        %646 = vmatprep.subr.mxu0 0.0
        %647 = vmatpush2.msra.mxu0 0.0
        %648 = vmatprep.subr.mxu0 0.0
        %649 = vmatpush2.msra.mxu0 0.0
        %650 = vmatprep.subr.mxu0 0.0
        %651 = vmatpush2.msra.mxu0 0.0
        %652 = vmatprep.mubr.f32.mxu0 0.0
        %653 = vmatmul.mubr.f32.gmra.mxu0 %v460
        %v654 = vpop.f32.mrf.mxu0
        %v655 = vadd.f32 0.0, %v654
        %v656 = vpop.f32.mrf.mxu0
        %657 = vmatprep.mubr.f32.mxu0 0.0
        %658 = vmatmul.mubr.f32.gmra.mxu0 %v463
        %v659 = vpop.f32.mrf.mxu0
        %v660 = vadd.f32 0.0, %v659
        %v661 = vpop.f32.mrf.mxu0
        %662 = vmatprep.mubr.f32.mxu0 0.0
        %663 = vmatmul.mubr.f32.gmra.mxu0 %v466
        %v664 = vpop.f32.mrf.mxu0
        %v665 = vadd.f32 0.0, %v664
        %v666 = vpop.f32.mrf.mxu0
        %667 = vmatprep.mubr.f32.mxu0 0.0
        %668 = vmatmul.mubr.f32.gmra.mxu0 %v469
        %v669 = vpop.f32.mrf.mxu0
        %v670 = vadd.f32 0.0, %v669
        %v671 = vpop.f32.mrf.mxu0
        %672 = vmatprep.mubr.f32.mxu0 0.0
        %673 = vmatmul.mubr.f32.gmra.mxu0 %v472
        %v674 = vpop.f32.mrf.mxu0
        %v675 = vadd.f32 0.0, %v674
        %v676 = vpop.f32.mrf.mxu0
        %677 = vmatprep.mubr.f32.mxu0 0.0
        %678 = vmatmul.mubr.f32.gmra.mxu0 %v475
        %v679 = vpop.f32.mrf.mxu0
        %v680 = vadd.f32 0.0, %v679
        %v681 = vpop.f32.mrf.mxu0
        %682 = vmatprep.mubr.f32.mxu0 0.0
        %683 = vmatmul.mubr.f32.gmra.mxu0 %v478
        %v684 = vpop.f32.mrf.mxu0
        %v685 = vadd.f32 0.0, %v684
        %v686 = vpop.f32.mrf.mxu0
        %687 = vmatprep.mubr.f32.mxu0 0.0
        %688 = vmatmul.mubr.f32.gmra.mxu0 %v481
        %v689 = vpop.f32.mrf.mxu0
        %v690 = vadd.f32 0.0, %v689
        %v691 = vpop.f32.mrf.mxu0
        %692 = vdwg.mxu0
        %v693 = vld [vmem:[#allocation9] sm:$0xff]
        %v694 = vld [vmem:[#allocation9 + $0x8] sm:$0xff]
        %v695 = vld [vmem:[#allocation9 + $0x10] sm:$0xff]
        %v696 = vld [vmem:[#allocation9 + $0x18] sm:$0xff]
        %v697 = vld [vmem:[#allocation9 + $0x20] sm:$0xff]
        %v698 = vld [vmem:[#allocation9 + $0x28] sm:$0xff]
        %v699 = vld [vmem:[#allocation9 + $0x30] sm:$0xff]
        %v700 = vld [vmem:[#allocation9 + $0x38] sm:$0xff]
        %v701 = vmul.f32 %v655, %v693
        %v702 = vmul.f32 %v660, %v694
        %v703 = vmul.f32 %v665, %v695
        %v704 = vmul.f32 %v670, %v696
        %v705 = vmul.f32 %v675, %v697
        %v706 = vmul.f32 %v680, %v698
        %v707 = vmul.f32 %v685, %v699
        %v708 = vmul.f32 %v690, %v700
        %v709 = vsub.f32 %v550, %v701
        %v710 = vsub.f32 %v555, %v702
        %v711 = vsub.f32 %v560, %v703
        %v712 = vsub.f32 %v565, %v704
        %v713 = vsub.f32 %v570, %v705
        %v714 = vsub.f32 %v575, %v706
        %v715 = vsub.f32 %v580, %v707
        %v716 = vsub.f32 %v585, %v708
        %v717 = vmul.f32 %v709, %v709
        %v718 = vmul.f32 %v710, %v710
        %v719 = vmul.f32 %v711, %v711
        %v720 = vmul.f32 %v712, %v712
        %v721 = vmul.f32 %v713, %v713
        %v722 = vmul.f32 %v714, %v714
        %v723 = vmul.f32 %v715, %v715
        %v724 = vmul.f32 %v716, %v716
        %725 = vadd.xlane.f32.xlu0 %v717
        %v726 = vpop.xlane.xlu0 %725
        %727 = vadd.xlane.f32.xlu0 %v718
        %v728 = vpop.xlane.xlu0 %727
        %729 = vadd.xlane.f32.xlu0 %v719
        %v730 = vpop.xlane.xlu0 %729
        %731 = vadd.xlane.f32.xlu0 %v720
        %v732 = vpop.xlane.xlu0 %731
        %733 = vadd.xlane.f32.xlu0 %v721
        %v734 = vpop.xlane.xlu0 %733
        %735 = vadd.xlane.f32.xlu0 %v722
        %v736 = vpop.xlane.xlu0 %735
        %737 = vadd.xlane.f32.xlu0 %v723
        %v738 = vpop.xlane.xlu0 %737
        %739 = vadd.xlane.f32.xlu0 %v724
        %v740 = vpop.xlane.xlu0 %739
        %v741 = vmax.f32 %v726, 1e-24
        %v742 = vmax.f32 %v728, 1e-24
        %v743 = vmax.f32 %v730, 1e-24
        %v744 = vmax.f32 %v732, 1e-24
        %v745 = vmax.f32 %v734, 1e-24
        %v746 = vmax.f32 %v736, 1e-24
        %v747 = vmax.f32 %v738, 1e-24
        %v748 = vmax.f32 %v740, 1e-24
        %v749 = vrsqrt.pop %v741
        %v750 = vrsqrt.pop %v742
        %v751 = vrsqrt.pop %v743
        %v752 = vrsqrt.pop %v744
        %v753 = vrsqrt.pop %v745
        %v754 = vrsqrt.pop %v746
        %v755 = vrsqrt.pop %v747
        %v756 = vrsqrt.pop %v748
        %v757 = vmul.f32 %v709, %v749
        %v758 = vmul.f32 %v710, %v750
        %v759 = vmul.f32 %v711, %v751
        %v760 = vmul.f32 %v712, %v752
        %v761 = vmul.f32 %v713, %v753
        %v762 = vmul.f32 %v714, %v754
        %v763 = vmul.f32 %v715, %v755
        %v764 = vmul.f32 %v716, %v756
        %v765 = vmul.f32 %v757, %v757
        %v766 = vmul.f32 %v758, %v758
        %v767 = vmul.f32 %v759, %v759
        %v768 = vmul.f32 %v760, %v760
        %v769 = vmul.f32 %v761, %v761
        %v770 = vmul.f32 %v762, %v762
        %v771 = vmul.f32 %v763, %v763
        %v772 = vmul.f32 %v764, %v764
        %v773 = vadd.f32 %v765, %v766
        %v774 = vadd.f32 %v773, %v767
        %v775 = vadd.f32 %v774, %v768
        %v776 = vadd.f32 %v775, %v769
        %v777 = vadd.f32 %v776, %v770
        %v778 = vadd.f32 %v777, %v771
        %v779 = vadd.f32 %v778, %v772
        %780 = vadd.xlane.f32.xlu0 %v779
        %v781 = vpop.xlane.xlu0 %780
        %v782 = vrot.slane %v781, 4
        %v783 = vadd.f32 %v781, %v782
        %v784 = vrot.slane %v783, 2
        %v785 = vadd.f32 %v783, %v784
        %v786 = vrot.slane %v785, 1
        %v787 = vadd.f32 %v785, %v786
        %s788 = vtos %v787
        %s789 = smax.f32 %s788, 1e-24
        %v790 = vstv %s789
        %v791 = vrsqrt.pop %v790
        %s792 = vtos %v791
        %v793 = vstv %s792
        %v794 = vmul.f32 %v757, %v793
        %v795 = vmul.f32 %v758, %v793
        %v796 = vmul.f32 %v759, %v793
        %v797 = vmul.f32 %v760, %v793
        %v798 = vmul.f32 %v761, %v793
        %v799 = vmul.f32 %v762, %v793
        %v800 = vmul.f32 %v763, %v793
        %v801 = vmul.f32 %v764, %v793
        %802 = vst [vmem:[#allocation2] sm:$0xff] %v794
        %803 = vst [vmem:[#allocation2 + $0x8] sm:$0xff] %v795
        %804 = vst [vmem:[#allocation2 + $0x10] sm:$0xff] %v796
        %805 = vst [vmem:[#allocation2 + $0x18] sm:$0xff] %v797
        %806 = vst [vmem:[#allocation2 + $0x20] sm:$0xff] %v798
        %807 = vst [vmem:[#allocation2 + $0x28] sm:$0xff] %v799
        %808 = vst [vmem:[#allocation2 + $0x30] sm:$0xff] %v800
        %809 = vst [vmem:[#allocation2 + $0x38] sm:$0xff] %v801
        %v810 = vld [vmem:[#allocation2] sm:$0x1]
        %v811 = vlaneseq
        %vm812 = vcmp.ge.s32.totalorder %v811, 0
        %vm813 = vcmp.lt.s32.totalorder %v811, 128
        %vm814 = vmand %vm812, %vm813
        %815 = vst.msk [vmem:[#allocation3] sm:$0x1] %vm814, %v810
        %v816 = vld [vmem:[#allocation2 + $0x1] sm:$0x1]
        %817 = vst.msk [vmem:[#allocation3 + $0x1] sm:$0x1] %vm814, %v816
        %v818 = vld [vmem:[#allocation2 + $0x2] sm:$0x1]
        %819 = vst.msk [vmem:[#allocation3 + $0x2] sm:$0x1] %vm814, %v818
        %v820 = vld [vmem:[#allocation2 + $0x3] sm:$0x1]
        %821 = vst.msk [vmem:[#allocation3 + $0x3] sm:$0x1] %vm814, %v820
        %v822 = vld [vmem:[#allocation2 + $0x4] sm:$0x1]
        %823 = vst.msk [vmem:[#allocation3 + $0x4] sm:$0x1] %vm814, %v822
        %v824 = vld [vmem:[#allocation2 + $0x5] sm:$0x1]
        %825 = vst.msk [vmem:[#allocation3 + $0x5] sm:$0x1] %vm814, %v824
        %v826 = vld [vmem:[#allocation2 + $0x6] sm:$0x1]
        %827 = vst.msk [vmem:[#allocation3 + $0x6] sm:$0x1] %vm814, %v826
        %v828 = vld [vmem:[#allocation2 + $0x7] sm:$0x1]
        %829 = vst.msk [vmem:[#allocation3 + $0x7] sm:$0x1] %vm814, %v828
        %v830 = vld [vmem:[#allocation2 + $0x8] sm:$0x1]
        %831 = vst.msk [vmem:[#allocation3 + $0x8] sm:$0x1] %vm814, %v830
        %v832 = vld [vmem:[#allocation2 + $0x9] sm:$0x1]
        %833 = vst.msk [vmem:[#allocation3 + $0x9] sm:$0x1] %vm814, %v832
        %v834 = vld [vmem:[#allocation2 + $0xa] sm:$0x1]
        %835 = vst.msk [vmem:[#allocation3 + $0xa] sm:$0x1] %vm814, %v834
        %v836 = vld [vmem:[#allocation2 + $0xb] sm:$0x1]
        %837 = vst.msk [vmem:[#allocation3 + $0xb] sm:$0x1] %vm814, %v836
        %v838 = vld [vmem:[#allocation2 + $0xc] sm:$0x1]
        %839 = vst.msk [vmem:[#allocation3 + $0xc] sm:$0x1] %vm814, %v838
        %v840 = vld [vmem:[#allocation2 + $0xd] sm:$0x1]
        %841 = vst.msk [vmem:[#allocation3 + $0xd] sm:$0x1] %vm814, %v840
        %v842 = vld [vmem:[#allocation2 + $0xe] sm:$0x1]
        %843 = vst.msk [vmem:[#allocation3 + $0xe] sm:$0x1] %vm814, %v842
        %v844 = vld [vmem:[#allocation2 + $0xf] sm:$0x1]
        %845 = vst.msk [vmem:[#allocation3 + $0xf] sm:$0x1] %vm814, %v844
        %v846 = vld [vmem:[#allocation2 + $0x10] sm:$0x1]
        %847 = vst.msk [vmem:[#allocation3 + $0x10] sm:$0x1] %vm814, %v846
        %v848 = vld [vmem:[#allocation2 + $0x11] sm:$0x1]
        %849 = vst.msk [vmem:[#allocation3 + $0x11] sm:$0x1] %vm814, %v848
        %v850 = vld [vmem:[#allocation2 + $0x12] sm:$0x1]
        %851 = vst.msk [vmem:[#allocation3 + $0x12] sm:$0x1] %vm814, %v850
        %v852 = vld [vmem:[#allocation2 + $0x13] sm:$0x1]
        %853 = vst.msk [vmem:[#allocation3 + $0x13] sm:$0x1] %vm814, %v852
        %v854 = vld [vmem:[#allocation2 + $0x14] sm:$0x1]
        %855 = vst.msk [vmem:[#allocation3 + $0x14] sm:$0x1] %vm814, %v854
        %v856 = vld [vmem:[#allocation2 + $0x15] sm:$0x1]
        %857 = vst.msk [vmem:[#allocation3 + $0x15] sm:$0x1] %vm814, %v856
        %v858 = vld [vmem:[#allocation2 + $0x16] sm:$0x1]
        %859 = vst.msk [vmem:[#allocation3 + $0x16] sm:$0x1] %vm814, %v858
        %v860 = vld [vmem:[#allocation2 + $0x17] sm:$0x1]
        %861 = vst.msk [vmem:[#allocation3 + $0x17] sm:$0x1] %vm814, %v860
        %v862 = vld [vmem:[#allocation2 + $0x18] sm:$0x1]
        %863 = vst.msk [vmem:[#allocation3 + $0x18] sm:$0x1] %vm814, %v862
        %v864 = vld [vmem:[#allocation2 + $0x19] sm:$0x1]
        %865 = vst.msk [vmem:[#allocation3 + $0x19] sm:$0x1] %vm814, %v864
        %v866 = vld [vmem:[#allocation2 + $0x1a] sm:$0x1]
        %867 = vst.msk [vmem:[#allocation3 + $0x1a] sm:$0x1] %vm814, %v866
        %v868 = vld [vmem:[#allocation2 + $0x1b] sm:$0x1]
        %869 = vst.msk [vmem:[#allocation3 + $0x1b] sm:$0x1] %vm814, %v868
        %v870 = vld [vmem:[#allocation2 + $0x1c] sm:$0x1]
        %871 = vst.msk [vmem:[#allocation3 + $0x1c] sm:$0x1] %vm814, %v870
        %v872 = vld [vmem:[#allocation2 + $0x1d] sm:$0x1]
        %873 = vst.msk [vmem:[#allocation3 + $0x1d] sm:$0x1] %vm814, %v872
        %v874 = vld [vmem:[#allocation2 + $0x1e] sm:$0x1]
        %875 = vst.msk [vmem:[#allocation3 + $0x1e] sm:$0x1] %vm814, %v874
        %v876 = vld [vmem:[#allocation2 + $0x1f] sm:$0x1]
        %877 = vst.msk [vmem:[#allocation3 + $0x1f] sm:$0x1] %vm814, %v876
        %v878 = vld [vmem:[#allocation2 + $0x20] sm:$0x1]
        %879 = vst.msk [vmem:[#allocation3 + $0x20] sm:$0x1] %vm814, %v878
        %v880 = vld [vmem:[#allocation2 + $0x21] sm:$0x1]
        %881 = vst.msk [vmem:[#allocation3 + $0x21] sm:$0x1] %vm814, %v880
        %v882 = vld [vmem:[#allocation2 + $0x22] sm:$0x1]
        %883 = vst.msk [vmem:[#allocation3 + $0x22] sm:$0x1] %vm814, %v882
        %v884 = vld [vmem:[#allocation2 + $0x23] sm:$0x1]
        %885 = vst.msk [vmem:[#allocation3 + $0x23] sm:$0x1] %vm814, %v884
        %v886 = vld [vmem:[#allocation2 + $0x24] sm:$0x1]
        %887 = vst.msk [vmem:[#allocation3 + $0x24] sm:$0x1] %vm814, %v886
        %v888 = vld [vmem:[#allocation2 + $0x25] sm:$0x1]
        %889 = vst.msk [vmem:[#allocation3 + $0x25] sm:$0x1] %vm814, %v888
        %v890 = vld [vmem:[#allocation2 + $0x26] sm:$0x1]
        %891 = vst.msk [vmem:[#allocation3 + $0x26] sm:$0x1] %vm814, %v890
        %v892 = vld [vmem:[#allocation2 + $0x27] sm:$0x1]
        %893 = vst.msk [vmem:[#allocation3 + $0x27] sm:$0x1] %vm814, %v892
        %v894 = vld [vmem:[#allocation2 + $0x28] sm:$0x1]
        %895 = vst.msk [vmem:[#allocation3 + $0x28] sm:$0x1] %vm814, %v894
        %v896 = vld [vmem:[#allocation2 + $0x29] sm:$0x1]
        %897 = vst.msk [vmem:[#allocation3 + $0x29] sm:$0x1] %vm814, %v896
        %v898 = vld [vmem:[#allocation2 + $0x2a] sm:$0x1]
        %899 = vst.msk [vmem:[#allocation3 + $0x2a] sm:$0x1] %vm814, %v898
        %v900 = vld [vmem:[#allocation2 + $0x2b] sm:$0x1]
        %901 = vst.msk [vmem:[#allocation3 + $0x2b] sm:$0x1] %vm814, %v900
        %v902 = vld [vmem:[#allocation2 + $0x2c] sm:$0x1]
        %903 = vst.msk [vmem:[#allocation3 + $0x2c] sm:$0x1] %vm814, %v902
        %v904 = vld [vmem:[#allocation2 + $0x2d] sm:$0x1]
        %905 = vst.msk [vmem:[#allocation3 + $0x2d] sm:$0x1] %vm814, %v904
        %v906 = vld [vmem:[#allocation2 + $0x2e] sm:$0x1]
        %907 = vst.msk [vmem:[#allocation3 + $0x2e] sm:$0x1] %vm814, %v906
        %v908 = vld [vmem:[#allocation2 + $0x2f] sm:$0x1]
        %909 = vst.msk [vmem:[#allocation3 + $0x2f] sm:$0x1] %vm814, %v908
        %v910 = vld [vmem:[#allocation2 + $0x30] sm:$0x1]
        %911 = vst.msk [vmem:[#allocation3 + $0x30] sm:$0x1] %vm814, %v910
        %v912 = vld [vmem:[#allocation2 + $0x31] sm:$0x1]
        %913 = vst.msk [vmem:[#allocation3 + $0x31] sm:$0x1] %vm814, %v912
        %v914 = vld [vmem:[#allocation2 + $0x32] sm:$0x1]
        %915 = vst.msk [vmem:[#allocation3 + $0x32] sm:$0x1] %vm814, %v914
        %v916 = vld [vmem:[#allocation2 + $0x33] sm:$0x1]
        %917 = vst.msk [vmem:[#allocation3 + $0x33] sm:$0x1] %vm814, %v916
        %v918 = vld [vmem:[#allocation2 + $0x34] sm:$0x1]
        %919 = vst.msk [vmem:[#allocation3 + $0x34] sm:$0x1] %vm814, %v918
        %v920 = vld [vmem:[#allocation2 + $0x35] sm:$0x1]
        %921 = vst.msk [vmem:[#allocation3 + $0x35] sm:$0x1] %vm814, %v920
        %v922 = vld [vmem:[#allocation2 + $0x36] sm:$0x1]
        %923 = vst.msk [vmem:[#allocation3 + $0x36] sm:$0x1] %vm814, %v922
        %v924 = vld [vmem:[#allocation2 + $0x37] sm:$0x1]
        %925 = vst.msk [vmem:[#allocation3 + $0x37] sm:$0x1] %vm814, %v924
        %v926 = vld [vmem:[#allocation2 + $0x38] sm:$0x1]
        %927 = vst.msk [vmem:[#allocation3 + $0x38] sm:$0x1] %vm814, %v926
        %v928 = vld [vmem:[#allocation2 + $0x39] sm:$0x1]
        %929 = vst.msk [vmem:[#allocation3 + $0x39] sm:$0x1] %vm814, %v928
        %v930 = vld [vmem:[#allocation2 + $0x3a] sm:$0x1]
        %931 = vst.msk [vmem:[#allocation3 + $0x3a] sm:$0x1] %vm814, %v930
        %v932 = vld [vmem:[#allocation2 + $0x3b] sm:$0x1]
        %933 = vst.msk [vmem:[#allocation3 + $0x3b] sm:$0x1] %vm814, %v932
        %v934 = vld [vmem:[#allocation2 + $0x3c] sm:$0x1]
        %935 = vst.msk [vmem:[#allocation3 + $0x3c] sm:$0x1] %vm814, %v934
        %v936 = vld [vmem:[#allocation2 + $0x3d] sm:$0x1]
        %937 = vst.msk [vmem:[#allocation3 + $0x3d] sm:$0x1] %vm814, %v936
        %v938 = vld [vmem:[#allocation2 + $0x3e] sm:$0x1]
        %939 = vst.msk [vmem:[#allocation3 + $0x3e] sm:$0x1] %vm814, %v938
        %v940 = vld [vmem:[#allocation2 + $0x3f] sm:$0x1]
        %941 = vst.msk [vmem:[#allocation3 + $0x3f] sm:$0x1] %vm814, %v940
        %v942 = vld [vmem:[#allocation3] sm:$0xff]
        %v943 = vld [vmem:[#allocation3 + $0x8] sm:$0xff]
        %v944 = vld [vmem:[#allocation3 + $0x10] sm:$0xff]
        %v945 = vld [vmem:[#allocation3 + $0x18] sm:$0xff]
        %v946 = vld [vmem:[#allocation3 + $0x20] sm:$0xff]
        %v947 = vld [vmem:[#allocation3 + $0x28] sm:$0xff]
        %v948 = vld [vmem:[#allocation3 + $0x30] sm:$0xff]
        %v949 = vld [vmem:[#allocation3 + $0x38] sm:$0xff]
        %v950 = vld [vmem:[#allocation10] sm:$0xff]
        %v951 = vld [vmem:[#allocation10 + $0x8] sm:$0xff]
        %v952 = vld [vmem:[#allocation10 + $0x10] sm:$0xff]
        %v953 = vld [vmem:[#allocation10 + $0x18] sm:$0xff]
        %v954 = vld [vmem:[#allocation10 + $0x20] sm:$0xff]
        %v955 = vld [vmem:[#allocation10 + $0x28] sm:$0xff]
        %v956 = vld [vmem:[#allocation10 + $0x30] sm:$0xff]
        %v957 = vld [vmem:[#allocation10 + $0x38] sm:$0xff]
        %v958 = vld [vmem:[#allocation10 + $0x40] sm:$0xff]
        %v959 = vld [vmem:[#allocation10 + $0x48] sm:$0xff]
        %v960 = vld [vmem:[#allocation10 + $0x50] sm:$0xff]
        %v961 = vld [vmem:[#allocation10 + $0x58] sm:$0xff]
        %v962 = vld [vmem:[#allocation10 + $0x60] sm:$0xff]
        %v963 = vld [vmem:[#allocation10 + $0x68] sm:$0xff]
        %v964 = vld [vmem:[#allocation10 + $0x70] sm:$0xff]
        %v965 = vld [vmem:[#allocation10 + $0x78] sm:$0xff]
        %v966 = vld [vmem:[#allocation10 + $0x80] sm:$0xff]
        %v967 = vld [vmem:[#allocation10 + $0x88] sm:$0xff]
        %v968 = vld [vmem:[#allocation10 + $0x90] sm:$0xff]
        %v969 = vld [vmem:[#allocation10 + $0x98] sm:$0xff]
        %v970 = vld [vmem:[#allocation10 + $0xa0] sm:$0xff]
        %v971 = vld [vmem:[#allocation10 + $0xa8] sm:$0xff]
        %v972 = vld [vmem:[#allocation10 + $0xb0] sm:$0xff]
        %v973 = vld [vmem:[#allocation10 + $0xb8] sm:$0xff]
        %v974 = vld [vmem:[#allocation10 + $0xc0] sm:$0xff]
        %v975 = vld [vmem:[#allocation10 + $0xc8] sm:$0xff]
        %v976 = vld [vmem:[#allocation10 + $0xd0] sm:$0xff]
        %v977 = vld [vmem:[#allocation10 + $0xd8] sm:$0xff]
        %v978 = vld [vmem:[#allocation10 + $0xe0] sm:$0xff]
        %v979 = vld [vmem:[#allocation10 + $0xe8] sm:$0xff]
        %v980 = vld [vmem:[#allocation10 + $0xf0] sm:$0xff]
        %v981 = vld [vmem:[#allocation10 + $0xf8] sm:$0xff]
        %v982 = vld [vmem:[#allocation10 + $0x100] sm:$0xff]
        %v983 = vld [vmem:[#allocation10 + $0x108] sm:$0xff]
        %v984 = vld [vmem:[#allocation10 + $0x110] sm:$0xff]
        %v985 = vld [vmem:[#allocation10 + $0x118] sm:$0xff]
        %v986 = vld [vmem:[#allocation10 + $0x120] sm:$0xff]
        %v987 = vld [vmem:[#allocation10 + $0x128] sm:$0xff]
        %v988 = vld [vmem:[#allocation10 + $0x130] sm:$0xff]
        %v989 = vld [vmem:[#allocation10 + $0x138] sm:$0xff]
        %v990 = vld [vmem:[#allocation10 + $0x140] sm:$0xff]
        %v991 = vld [vmem:[#allocation10 + $0x148] sm:$0xff]
        %v992 = vld [vmem:[#allocation10 + $0x150] sm:$0xff]
        %v993 = vld [vmem:[#allocation10 + $0x158] sm:$0xff]
        %v994 = vld [vmem:[#allocation10 + $0x160] sm:$0xff]
        %v995 = vld [vmem:[#allocation10 + $0x168] sm:$0xff]
        %v996 = vld [vmem:[#allocation10 + $0x170] sm:$0xff]
        %v997 = vld [vmem:[#allocation10 + $0x178] sm:$0xff]
        %v998 = vld [vmem:[#allocation10 + $0x180] sm:$0xff]
        %v999 = vld [vmem:[#allocation10 + $0x188] sm:$0xff]
        %v1000 = vld [vmem:[#allocation10 + $0x190] sm:$0xff]
        %v1001 = vld [vmem:[#allocation10 + $0x198] sm:$0xff]
        %v1002 = vld [vmem:[#allocation10 + $0x1a0] sm:$0xff]
        %v1003 = vld [vmem:[#allocation10 + $0x1a8] sm:$0xff]
        %v1004 = vld [vmem:[#allocation10 + $0x1b0] sm:$0xff]
        %v1005 = vld [vmem:[#allocation10 + $0x1b8] sm:$0xff]
        %v1006 = vld [vmem:[#allocation10 + $0x1c0] sm:$0xff]
        %v1007 = vld [vmem:[#allocation10 + $0x1c8] sm:$0xff]
        %v1008 = vld [vmem:[#allocation10 + $0x1d0] sm:$0xff]
        %v1009 = vld [vmem:[#allocation10 + $0x1d8] sm:$0xff]
        %v1010 = vld [vmem:[#allocation10 + $0x1e0] sm:$0xff]
        %v1011 = vld [vmem:[#allocation10 + $0x1e8] sm:$0xff]
        %v1012 = vld [vmem:[#allocation10 + $0x1f0] sm:$0xff]
        %v1013 = vld [vmem:[#allocation10 + $0x1f8] sm:$0xff]
        %v1014 = vld [vmem:[#allocation10 + $0x200] sm:$0xff]
        %v1015 = vld [vmem:[#allocation10 + $0x208] sm:$0xff]
        %v1016 = vld [vmem:[#allocation10 + $0x210] sm:$0xff]
        %v1017 = vld [vmem:[#allocation10 + $0x218] sm:$0xff]
        %v1018 = vld [vmem:[#allocation10 + $0x220] sm:$0xff]
        %v1019 = vld [vmem:[#allocation10 + $0x228] sm:$0xff]
        %v1020 = vld [vmem:[#allocation10 + $0x230] sm:$0xff]
        %v1021 = vld [vmem:[#allocation10 + $0x238] sm:$0xff]
        %v1022 = vld [vmem:[#allocation10 + $0x240] sm:$0xff]
        %v1023 = vld [vmem:[#allocation10 + $0x248] sm:$0xff]
        %v1024 = vld [vmem:[#allocation10 + $0x250] sm:$0xff]
        %v1025 = vld [vmem:[#allocation10 + $0x258] sm:$0xff]
        %v1026 = vld [vmem:[#allocation10 + $0x260] sm:$0xff]
        %v1027 = vld [vmem:[#allocation10 + $0x268] sm:$0xff]
        %v1028 = vld [vmem:[#allocation10 + $0x270] sm:$0xff]
        %v1029 = vld [vmem:[#allocation10 + $0x278] sm:$0xff]
        %v1030 = vld [vmem:[#allocation10 + $0x280] sm:$0xff]
        %v1031 = vld [vmem:[#allocation10 + $0x288] sm:$0xff]
        %v1032 = vld [vmem:[#allocation10 + $0x290] sm:$0xff]
        %v1033 = vld [vmem:[#allocation10 + $0x298] sm:$0xff]
        %v1034 = vld [vmem:[#allocation10 + $0x2a0] sm:$0xff]
        %v1035 = vld [vmem:[#allocation10 + $0x2a8] sm:$0xff]
        %v1036 = vld [vmem:[#allocation10 + $0x2b0] sm:$0xff]
        %v1037 = vld [vmem:[#allocation10 + $0x2b8] sm:$0xff]
        %v1038 = vld [vmem:[#allocation10 + $0x2c0] sm:$0xff]
        %v1039 = vld [vmem:[#allocation10 + $0x2c8] sm:$0xff]
        %v1040 = vld [vmem:[#allocation10 + $0x2d0] sm:$0xff]
        %v1041 = vld [vmem:[#allocation10 + $0x2d8] sm:$0xff]
        %v1042 = vld [vmem:[#allocation10 + $0x2e0] sm:$0xff]
        %v1043 = vld [vmem:[#allocation10 + $0x2e8] sm:$0xff]
        %v1044 = vld [vmem:[#allocation10 + $0x2f0] sm:$0xff]
        %v1045 = vld [vmem:[#allocation10 + $0x2f8] sm:$0xff]
        %v1046 = vld [vmem:[#allocation10 + $0x300] sm:$0xff]
        %v1047 = vld [vmem:[#allocation10 + $0x308] sm:$0xff]
        %v1048 = vld [vmem:[#allocation10 + $0x310] sm:$0xff]
        %v1049 = vld [vmem:[#allocation10 + $0x318] sm:$0xff]
        %v1050 = vld [vmem:[#allocation10 + $0x320] sm:$0xff]
        %v1051 = vld [vmem:[#allocation10 + $0x328] sm:$0xff]
        %v1052 = vld [vmem:[#allocation10 + $0x330] sm:$0xff]
        %v1053 = vld [vmem:[#allocation10 + $0x338] sm:$0xff]
        %v1054 = vld [vmem:[#allocation10 + $0x340] sm:$0xff]
        %v1055 = vld [vmem:[#allocation10 + $0x348] sm:$0xff]
        %v1056 = vld [vmem:[#allocation10 + $0x350] sm:$0xff]
        %v1057 = vld [vmem:[#allocation10 + $0x358] sm:$0xff]
        %v1058 = vld [vmem:[#allocation10 + $0x360] sm:$0xff]
        %v1059 = vld [vmem:[#allocation10 + $0x368] sm:$0xff]
        %v1060 = vld [vmem:[#allocation10 + $0x370] sm:$0xff]
        %v1061 = vld [vmem:[#allocation10 + $0x378] sm:$0xff]
        %v1062 = vld [vmem:[#allocation10 + $0x380] sm:$0xff]
        %v1063 = vld [vmem:[#allocation10 + $0x388] sm:$0xff]
        %v1064 = vld [vmem:[#allocation10 + $0x390] sm:$0xff]
        %v1065 = vld [vmem:[#allocation10 + $0x398] sm:$0xff]
        %v1066 = vld [vmem:[#allocation10 + $0x3a0] sm:$0xff]
        %v1067 = vld [vmem:[#allocation10 + $0x3a8] sm:$0xff]
        %v1068 = vld [vmem:[#allocation10 + $0x3b0] sm:$0xff]
        %v1069 = vld [vmem:[#allocation10 + $0x3b8] sm:$0xff]
        %v1070 = vld [vmem:[#allocation10 + $0x3c0] sm:$0xff]
        %v1071 = vld [vmem:[#allocation10 + $0x3c8] sm:$0xff]
        %v1072 = vld [vmem:[#allocation10 + $0x3d0] sm:$0xff]
        %v1073 = vld [vmem:[#allocation10 + $0x3d8] sm:$0xff]
        %v1074 = vld [vmem:[#allocation10 + $0x3e0] sm:$0xff]
        %v1075 = vld [vmem:[#allocation10 + $0x3e8] sm:$0xff]
        %v1076 = vld [vmem:[#allocation10 + $0x3f0] sm:$0xff]
        %v1077 = vld [vmem:[#allocation10 + $0x3f8] sm:$0xff]
        %v1078 = vld [vmem:[#allocation10 + $0x400] sm:$0xff]
        %v1079 = vld [vmem:[#allocation10 + $0x408] sm:$0xff]
        %v1080 = vld [vmem:[#allocation10 + $0x410] sm:$0xff]
        %v1081 = vld [vmem:[#allocation10 + $0x418] sm:$0xff]
        %v1082 = vld [vmem:[#allocation10 + $0x420] sm:$0xff]
        %v1083 = vld [vmem:[#allocation10 + $0x428] sm:$0xff]
        %v1084 = vld [vmem:[#allocation10 + $0x430] sm:$0xff]
        %v1085 = vld [vmem:[#allocation10 + $0x438] sm:$0xff]
        %v1086 = vld [vmem:[#allocation10 + $0x440] sm:$0xff]
        %v1087 = vld [vmem:[#allocation10 + $0x448] sm:$0xff]
        %v1088 = vld [vmem:[#allocation10 + $0x450] sm:$0xff]
        %v1089 = vld [vmem:[#allocation10 + $0x458] sm:$0xff]
        %v1090 = vld [vmem:[#allocation10 + $0x460] sm:$0xff]
        %v1091 = vld [vmem:[#allocation10 + $0x468] sm:$0xff]
        %v1092 = vld [vmem:[#allocation10 + $0x470] sm:$0xff]
        %v1093 = vld [vmem:[#allocation10 + $0x478] sm:$0xff]
        %v1094 = vld [vmem:[#allocation10 + $0x480] sm:$0xff]
        %v1095 = vld [vmem:[#allocation10 + $0x488] sm:$0xff]
        %v1096 = vld [vmem:[#allocation10 + $0x490] sm:$0xff]
        %v1097 = vld [vmem:[#allocation10 + $0x498] sm:$0xff]
        %v1098 = vld [vmem:[#allocation10 + $0x4a0] sm:$0xff]
        %v1099 = vld [vmem:[#allocation10 + $0x4a8] sm:$0xff]
        %v1100 = vld [vmem:[#allocation10 + $0x4b0] sm:$0xff]
        %v1101 = vld [vmem:[#allocation10 + $0x4b8] sm:$0xff]
        %v1102 = vld [vmem:[#allocation10 + $0x4c0] sm:$0xff]
        %v1103 = vld [vmem:[#allocation10 + $0x4c8] sm:$0xff]
        %v1104 = vld [vmem:[#allocation10 + $0x4d0] sm:$0xff]
        %v1105 = vld [vmem:[#allocation10 + $0x4d8] sm:$0xff]
        %v1106 = vld [vmem:[#allocation10 + $0x4e0] sm:$0xff]
        %v1107 = vld [vmem:[#allocation10 + $0x4e8] sm:$0xff]
        %v1108 = vld [vmem:[#allocation10 + $0x4f0] sm:$0xff]
        %v1109 = vld [vmem:[#allocation10 + $0x4f8] sm:$0xff]
        %v1110 = vld [vmem:[#allocation10 + $0x500] sm:$0xff]
        %v1111 = vld [vmem:[#allocation10 + $0x508] sm:$0xff]
        %v1112 = vld [vmem:[#allocation10 + $0x510] sm:$0xff]
        %v1113 = vld [vmem:[#allocation10 + $0x518] sm:$0xff]
        %v1114 = vld [vmem:[#allocation10 + $0x520] sm:$0xff]
        %v1115 = vld [vmem:[#allocation10 + $0x528] sm:$0xff]
        %v1116 = vld [vmem:[#allocation10 + $0x530] sm:$0xff]
        %v1117 = vld [vmem:[#allocation10 + $0x538] sm:$0xff]
        %v1118 = vld [vmem:[#allocation10 + $0x540] sm:$0xff]
        %v1119 = vld [vmem:[#allocation10 + $0x548] sm:$0xff]
        %v1120 = vld [vmem:[#allocation10 + $0x550] sm:$0xff]
        %v1121 = vld [vmem:[#allocation10 + $0x558] sm:$0xff]
        %v1122 = vld [vmem:[#allocation10 + $0x560] sm:$0xff]
        %v1123 = vld [vmem:[#allocation10 + $0x568] sm:$0xff]
        %v1124 = vld [vmem:[#allocation10 + $0x570] sm:$0xff]
        %v1125 = vld [vmem:[#allocation10 + $0x578] sm:$0xff]
        %v1126 = vld [vmem:[#allocation10 + $0x580] sm:$0xff]
        %v1127 = vld [vmem:[#allocation10 + $0x588] sm:$0xff]
        %v1128 = vld [vmem:[#allocation10 + $0x590] sm:$0xff]
        %v1129 = vld [vmem:[#allocation10 + $0x598] sm:$0xff]
        %v1130 = vld [vmem:[#allocation10 + $0x5a0] sm:$0xff]
        %v1131 = vld [vmem:[#allocation10 + $0x5a8] sm:$0xff]
        %v1132 = vld [vmem:[#allocation10 + $0x5b0] sm:$0xff]
        %v1133 = vld [vmem:[#allocation10 + $0x5b8] sm:$0xff]
        %v1134 = vld [vmem:[#allocation10 + $0x5c0] sm:$0xff]
        %v1135 = vld [vmem:[#allocation10 + $0x5c8] sm:$0xff]
        %v1136 = vld [vmem:[#allocation10 + $0x5d0] sm:$0xff]
        %v1137 = vld [vmem:[#allocation10 + $0x5d8] sm:$0xff]
        %v1138 = vld [vmem:[#allocation10 + $0x5e0] sm:$0xff]
        %v1139 = vld [vmem:[#allocation10 + $0x5e8] sm:$0xff]
        %v1140 = vld [vmem:[#allocation10 + $0x5f0] sm:$0xff]
        %v1141 = vld [vmem:[#allocation10 + $0x5f8] sm:$0xff]
        %v1142 = vld [vmem:[#allocation10 + $0x600] sm:$0xff]
        %v1143 = vld [vmem:[#allocation10 + $0x608] sm:$0xff]
        %v1144 = vld [vmem:[#allocation10 + $0x610] sm:$0xff]
        %v1145 = vld [vmem:[#allocation10 + $0x618] sm:$0xff]
        %v1146 = vld [vmem:[#allocation10 + $0x620] sm:$0xff]
        %v1147 = vld [vmem:[#allocation10 + $0x628] sm:$0xff]
        %v1148 = vld [vmem:[#allocation10 + $0x630] sm:$0xff]
        %v1149 = vld [vmem:[#allocation10 + $0x638] sm:$0xff]
        %v1150 = vld [vmem:[#allocation10 + $0x640] sm:$0xff]
        %v1151 = vld [vmem:[#allocation10 + $0x648] sm:$0xff]
        %v1152 = vld [vmem:[#allocation10 + $0x650] sm:$0xff]
        %v1153 = vld [vmem:[#allocation10 + $0x658] sm:$0xff]
        %v1154 = vld [vmem:[#allocation10 + $0x660] sm:$0xff]
        %v1155 = vld [vmem:[#allocation10 + $0x668] sm:$0xff]
        %v1156 = vld [vmem:[#allocation10 + $0x670] sm:$0xff]
        %v1157 = vld [vmem:[#allocation10 + $0x678] sm:$0xff]
        %v1158 = vld [vmem:[#allocation10 + $0x680] sm:$0xff]
        %v1159 = vld [vmem:[#allocation10 + $0x688] sm:$0xff]
        %v1160 = vld [vmem:[#allocation10 + $0x690] sm:$0xff]
        %v1161 = vld [vmem:[#allocation10 + $0x698] sm:$0xff]
        %v1162 = vld [vmem:[#allocation10 + $0x6a0] sm:$0xff]
        %v1163 = vld [vmem:[#allocation10 + $0x6a8] sm:$0xff]
        %v1164 = vld [vmem:[#allocation10 + $0x6b0] sm:$0xff]
        %v1165 = vld [vmem:[#allocation10 + $0x6b8] sm:$0xff]
        %v1166 = vld [vmem:[#allocation10 + $0x6c0] sm:$0xff]
        %v1167 = vld [vmem:[#allocation10 + $0x6c8] sm:$0xff]
        %v1168 = vld [vmem:[#allocation10 + $0x6d0] sm:$0xff]
        %v1169 = vld [vmem:[#allocation10 + $0x6d8] sm:$0xff]
        %v1170 = vld [vmem:[#allocation10 + $0x6e0] sm:$0xff]
        %v1171 = vld [vmem:[#allocation10 + $0x6e8] sm:$0xff]
        %v1172 = vld [vmem:[#allocation10 + $0x6f0] sm:$0xff]
        %v1173 = vld [vmem:[#allocation10 + $0x6f8] sm:$0xff]
        %v1174 = vld [vmem:[#allocation10 + $0x700] sm:$0xff]
        %v1175 = vld [vmem:[#allocation10 + $0x708] sm:$0xff]
        %v1176 = vld [vmem:[#allocation10 + $0x710] sm:$0xff]
        %v1177 = vld [vmem:[#allocation10 + $0x718] sm:$0xff]
        %v1178 = vld [vmem:[#allocation10 + $0x720] sm:$0xff]
        %v1179 = vld [vmem:[#allocation10 + $0x728] sm:$0xff]
        %v1180 = vld [vmem:[#allocation10 + $0x730] sm:$0xff]
        %v1181 = vld [vmem:[#allocation10 + $0x738] sm:$0xff]
        %v1182 = vld [vmem:[#allocation10 + $0x740] sm:$0xff]
        %v1183 = vld [vmem:[#allocation10 + $0x748] sm:$0xff]
        %v1184 = vld [vmem:[#allocation10 + $0x750] sm:$0xff]
        %v1185 = vld [vmem:[#allocation10 + $0x758] sm:$0xff]
        %v1186 = vld [vmem:[#allocation10 + $0x760] sm:$0xff]
        %v1187 = vld [vmem:[#allocation10 + $0x768] sm:$0xff]
        %v1188 = vld [vmem:[#allocation10 + $0x770] sm:$0xff]
        %v1189 = vld [vmem:[#allocation10 + $0x778] sm:$0xff]
        %v1190 = vld [vmem:[#allocation10 + $0x780] sm:$0xff]
        %v1191 = vld [vmem:[#allocation10 + $0x788] sm:$0xff]
        %v1192 = vld [vmem:[#allocation10 + $0x790] sm:$0xff]
        %v1193 = vld [vmem:[#allocation10 + $0x798] sm:$0xff]
        %v1194 = vld [vmem:[#allocation10 + $0x7a0] sm:$0xff]
        %v1195 = vld [vmem:[#allocation10 + $0x7a8] sm:$0xff]
        %v1196 = vld [vmem:[#allocation10 + $0x7b0] sm:$0xff]
        %v1197 = vld [vmem:[#allocation10 + $0x7b8] sm:$0xff]
        %v1198 = vld [vmem:[#allocation10 + $0x7c0] sm:$0xff]
        %v1199 = vld [vmem:[#allocation10 + $0x7c8] sm:$0xff]
        %v1200 = vld [vmem:[#allocation10 + $0x7d0] sm:$0xff]
        %v1201 = vld [vmem:[#allocation10 + $0x7d8] sm:$0xff]
        %v1202 = vld [vmem:[#allocation10 + $0x7e0] sm:$0xff]
        %v1203 = vld [vmem:[#allocation10 + $0x7e8] sm:$0xff]
        %v1204 = vld [vmem:[#allocation10 + $0x7f0] sm:$0xff]
        %v1205 = vld [vmem:[#allocation10 + $0x7f8] sm:$0xff]
        %v1206 = vld [vmem:[#allocation10 + $0x800] sm:$0xff]
        %v1207 = vld [vmem:[#allocation10 + $0x808] sm:$0xff]
        %v1208 = vld [vmem:[#allocation10 + $0x810] sm:$0xff]
        %v1209 = vld [vmem:[#allocation10 + $0x818] sm:$0xff]
        %v1210 = vld [vmem:[#allocation10 + $0x820] sm:$0xff]
        %v1211 = vld [vmem:[#allocation10 + $0x828] sm:$0xff]
        %v1212 = vld [vmem:[#allocation10 + $0x830] sm:$0xff]
        %v1213 = vld [vmem:[#allocation10 + $0x838] sm:$0xff]
        %v1214 = vld [vmem:[#allocation10 + $0x840] sm:$0xff]
        %v1215 = vld [vmem:[#allocation10 + $0x848] sm:$0xff]
        %v1216 = vld [vmem:[#allocation10 + $0x850] sm:$0xff]
        %v1217 = vld [vmem:[#allocation10 + $0x858] sm:$0xff]
        %v1218 = vld [vmem:[#allocation10 + $0x860] sm:$0xff]
        %v1219 = vld [vmem:[#allocation10 + $0x868] sm:$0xff]
        %v1220 = vld [vmem:[#allocation10 + $0x870] sm:$0xff]
        %v1221 = vld [vmem:[#allocation10 + $0x878] sm:$0xff]
        %v1222 = vld [vmem:[#allocation10 + $0x880] sm:$0xff]
        %v1223 = vld [vmem:[#allocation10 + $0x888] sm:$0xff]
        %v1224 = vld [vmem:[#allocation10 + $0x890] sm:$0xff]
        %v1225 = vld [vmem:[#allocation10 + $0x898] sm:$0xff]
        %v1226 = vld [vmem:[#allocation10 + $0x8a0] sm:$0xff]
        %v1227 = vld [vmem:[#allocation10 + $0x8a8] sm:$0xff]
        %v1228 = vld [vmem:[#allocation10 + $0x8b0] sm:$0xff]
        %v1229 = vld [vmem:[#allocation10 + $0x8b8] sm:$0xff]
        %v1230 = vld [vmem:[#allocation10 + $0x8c0] sm:$0xff]
        %v1231 = vld [vmem:[#allocation10 + $0x8c8] sm:$0xff]
        %v1232 = vld [vmem:[#allocation10 + $0x8d0] sm:$0xff]
        %v1233 = vld [vmem:[#allocation10 + $0x8d8] sm:$0xff]
        %v1234 = vld [vmem:[#allocation10 + $0x8e0] sm:$0xff]
        %v1235 = vld [vmem:[#allocation10 + $0x8e8] sm:$0xff]
        %v1236 = vld [vmem:[#allocation10 + $0x8f0] sm:$0xff]
        %v1237 = vld [vmem:[#allocation10 + $0x8f8] sm:$0xff]
        %v1238 = vld [vmem:[#allocation10 + $0x900] sm:$0xff]
        %v1239 = vld [vmem:[#allocation10 + $0x908] sm:$0xff]
        %v1240 = vld [vmem:[#allocation10 + $0x910] sm:$0xff]
        %v1241 = vld [vmem:[#allocation10 + $0x918] sm:$0xff]
        %v1242 = vld [vmem:[#allocation10 + $0x920] sm:$0xff]
        %v1243 = vld [vmem:[#allocation10 + $0x928] sm:$0xff]
        %v1244 = vld [vmem:[#allocation10 + $0x930] sm:$0xff]
        %v1245 = vld [vmem:[#allocation10 + $0x938] sm:$0xff]
        %v1246 = vld [vmem:[#allocation10 + $0x940] sm:$0xff]
        %v1247 = vld [vmem:[#allocation10 + $0x948] sm:$0xff]
        %v1248 = vld [vmem:[#allocation10 + $0x950] sm:$0xff]
        %v1249 = vld [vmem:[#allocation10 + $0x958] sm:$0xff]
        %v1250 = vld [vmem:[#allocation10 + $0x960] sm:$0xff]
        %v1251 = vld [vmem:[#allocation10 + $0x968] sm:$0xff]
        %v1252 = vld [vmem:[#allocation10 + $0x970] sm:$0xff]
        %v1253 = vld [vmem:[#allocation10 + $0x978] sm:$0xff]
        %v1254 = vld [vmem:[#allocation10 + $0x980] sm:$0xff]
        %v1255 = vld [vmem:[#allocation10 + $0x988] sm:$0xff]
        %v1256 = vld [vmem:[#allocation10 + $0x990] sm:$0xff]
        %v1257 = vld [vmem:[#allocation10 + $0x998] sm:$0xff]
        %v1258 = vld [vmem:[#allocation10 + $0x9a0] sm:$0xff]
        %v1259 = vld [vmem:[#allocation10 + $0x9a8] sm:$0xff]
        %v1260 = vld [vmem:[#allocation10 + $0x9b0] sm:$0xff]
        %v1261 = vld [vmem:[#allocation10 + $0x9b8] sm:$0xff]
        %v1262 = vld [vmem:[#allocation10 + $0x9c0] sm:$0xff]
        %v1263 = vld [vmem:[#allocation10 + $0x9c8] sm:$0xff]
        %v1264 = vld [vmem:[#allocation10 + $0x9d0] sm:$0xff]
        %v1265 = vld [vmem:[#allocation10 + $0x9d8] sm:$0xff]
        %v1266 = vld [vmem:[#allocation10 + $0x9e0] sm:$0xff]
        %v1267 = vld [vmem:[#allocation10 + $0x9e8] sm:$0xff]
        %v1268 = vld [vmem:[#allocation10 + $0x9f0] sm:$0xff]
        %v1269 = vld [vmem:[#allocation10 + $0x9f8] sm:$0xff]
        %v1270 = vld [vmem:[#allocation10 + $0xa00] sm:$0xff]
        %v1271 = vld [vmem:[#allocation10 + $0xa08] sm:$0xff]
        %v1272 = vld [vmem:[#allocation10 + $0xa10] sm:$0xff]
        %v1273 = vld [vmem:[#allocation10 + $0xa18] sm:$0xff]
        %v1274 = vld [vmem:[#allocation10 + $0xa20] sm:$0xff]
        %v1275 = vld [vmem:[#allocation10 + $0xa28] sm:$0xff]
        %v1276 = vld [vmem:[#allocation10 + $0xa30] sm:$0xff]
        %v1277 = vld [vmem:[#allocation10 + $0xa38] sm:$0xff]
        %v1278 = vld [vmem:[#allocation10 + $0xa40] sm:$0xff]
        %v1279 = vld [vmem:[#allocation10 + $0xa48] sm:$0xff]
        %v1280 = vld [vmem:[#allocation10 + $0xa50] sm:$0xff]
        %v1281 = vld [vmem:[#allocation10 + $0xa58] sm:$0xff]
        %v1282 = vld [vmem:[#allocation10 + $0xa60] sm:$0xff]
        %v1283 = vld [vmem:[#allocation10 + $0xa68] sm:$0xff]
        %v1284 = vld [vmem:[#allocation10 + $0xa70] sm:$0xff]
        %v1285 = vld [vmem:[#allocation10 + $0xa78] sm:$0xff]
        %v1286 = vld [vmem:[#allocation10 + $0xa80] sm:$0xff]
        %v1287 = vld [vmem:[#allocation10 + $0xa88] sm:$0xff]
        %v1288 = vld [vmem:[#allocation10 + $0xa90] sm:$0xff]
        %v1289 = vld [vmem:[#allocation10 + $0xa98] sm:$0xff]
        %v1290 = vld [vmem:[#allocation10 + $0xaa0] sm:$0xff]
        %v1291 = vld [vmem:[#allocation10 + $0xaa8] sm:$0xff]
        %v1292 = vld [vmem:[#allocation10 + $0xab0] sm:$0xff]
        %v1293 = vld [vmem:[#allocation10 + $0xab8] sm:$0xff]
        %v1294 = vld [vmem:[#allocation10 + $0xac0] sm:$0xff]
        %v1295 = vld [vmem:[#allocation10 + $0xac8] sm:$0xff]
        %v1296 = vld [vmem:[#allocation10 + $0xad0] sm:$0xff]
        %v1297 = vld [vmem:[#allocation10 + $0xad8] sm:$0xff]
        %v1298 = vld [vmem:[#allocation10 + $0xae0] sm:$0xff]
        %v1299 = vld [vmem:[#allocation10 + $0xae8] sm:$0xff]
        %v1300 = vld [vmem:[#allocation10 + $0xaf0] sm:$0xff]
        %v1301 = vld [vmem:[#allocation10 + $0xaf8] sm:$0xff]
        %v1302 = vld [vmem:[#allocation10 + $0xb00] sm:$0xff]
        %v1303 = vld [vmem:[#allocation10 + $0xb08] sm:$0xff]
        %v1304 = vld [vmem:[#allocation10 + $0xb10] sm:$0xff]
        %v1305 = vld [vmem:[#allocation10 + $0xb18] sm:$0xff]
        %v1306 = vld [vmem:[#allocation10 + $0xb20] sm:$0xff]
        %v1307 = vld [vmem:[#allocation10 + $0xb28] sm:$0xff]
        %v1308 = vld [vmem:[#allocation10 + $0xb30] sm:$0xff]
        %v1309 = vld [vmem:[#allocation10 + $0xb38] sm:$0xff]
        %v1310 = vld [vmem:[#allocation10 + $0xb40] sm:$0xff]
        %v1311 = vld [vmem:[#allocation10 + $0xb48] sm:$0xff]
        %v1312 = vld [vmem:[#allocation10 + $0xb50] sm:$0xff]
        %v1313 = vld [vmem:[#allocation10 + $0xb58] sm:$0xff]
        %v1314 = vld [vmem:[#allocation10 + $0xb60] sm:$0xff]
        %v1315 = vld [vmem:[#allocation10 + $0xb68] sm:$0xff]
        %v1316 = vld [vmem:[#allocation10 + $0xb70] sm:$0xff]
        %v1317 = vld [vmem:[#allocation10 + $0xb78] sm:$0xff]
        %v1318 = vld [vmem:[#allocation10 + $0xb80] sm:$0xff]
        %v1319 = vld [vmem:[#allocation10 + $0xb88] sm:$0xff]
        %v1320 = vld [vmem:[#allocation10 + $0xb90] sm:$0xff]
        %v1321 = vld [vmem:[#allocation10 + $0xb98] sm:$0xff]
        %v1322 = vld [vmem:[#allocation10 + $0xba0] sm:$0xff]
        %v1323 = vld [vmem:[#allocation10 + $0xba8] sm:$0xff]
        %v1324 = vld [vmem:[#allocation10 + $0xbb0] sm:$0xff]
        %v1325 = vld [vmem:[#allocation10 + $0xbb8] sm:$0xff]
        %v1326 = vld [vmem:[#allocation10 + $0xbc0] sm:$0xff]
        %v1327 = vld [vmem:[#allocation10 + $0xbc8] sm:$0xff]
        %v1328 = vld [vmem:[#allocation10 + $0xbd0] sm:$0xff]
        %v1329 = vld [vmem:[#allocation10 + $0xbd8] sm:$0xff]
        %v1330 = vld [vmem:[#allocation10 + $0xbe0] sm:$0xff]
        %v1331 = vld [vmem:[#allocation10 + $0xbe8] sm:$0xff]
        %v1332 = vld [vmem:[#allocation10 + $0xbf0] sm:$0xff]
        %v1333 = vld [vmem:[#allocation10 + $0xbf8] sm:$0xff]
        %v1334 = vld [vmem:[#allocation10 + $0xc00] sm:$0xff]
        %v1335 = vld [vmem:[#allocation10 + $0xc08] sm:$0xff]
        %v1336 = vld [vmem:[#allocation10 + $0xc10] sm:$0xff]
        %v1337 = vld [vmem:[#allocation10 + $0xc18] sm:$0xff]
        %v1338 = vld [vmem:[#allocation10 + $0xc20] sm:$0xff]
        %v1339 = vld [vmem:[#allocation10 + $0xc28] sm:$0xff]
        %v1340 = vld [vmem:[#allocation10 + $0xc30] sm:$0xff]
        %v1341 = vld [vmem:[#allocation10 + $0xc38] sm:$0xff]
        %v1342 = vld [vmem:[#allocation10 + $0xc40] sm:$0xff]
        %v1343 = vld [vmem:[#allocation10 + $0xc48] sm:$0xff]
        %v1344 = vld [vmem:[#allocation10 + $0xc50] sm:$0xff]
        %v1345 = vld [vmem:[#allocation10 + $0xc58] sm:$0xff]
        %v1346 = vld [vmem:[#allocation10 + $0xc60] sm:$0xff]
        %v1347 = vld [vmem:[#allocation10 + $0xc68] sm:$0xff]
        %v1348 = vld [vmem:[#allocation10 + $0xc70] sm:$0xff]
        %v1349 = vld [vmem:[#allocation10 + $0xc78] sm:$0xff]
        %v1350 = vld [vmem:[#allocation10 + $0xc80] sm:$0xff]
        %v1351 = vld [vmem:[#allocation10 + $0xc88] sm:$0xff]
        %v1352 = vld [vmem:[#allocation10 + $0xc90] sm:$0xff]
        %v1353 = vld [vmem:[#allocation10 + $0xc98] sm:$0xff]
        %v1354 = vld [vmem:[#allocation10 + $0xca0] sm:$0xff]
        %v1355 = vld [vmem:[#allocation10 + $0xca8] sm:$0xff]
        %v1356 = vld [vmem:[#allocation10 + $0xcb0] sm:$0xff]
        %v1357 = vld [vmem:[#allocation10 + $0xcb8] sm:$0xff]
        %v1358 = vld [vmem:[#allocation10 + $0xcc0] sm:$0xff]
        %v1359 = vld [vmem:[#allocation10 + $0xcc8] sm:$0xff]
        %v1360 = vld [vmem:[#allocation10 + $0xcd0] sm:$0xff]
        %v1361 = vld [vmem:[#allocation10 + $0xcd8] sm:$0xff]
        %v1362 = vld [vmem:[#allocation10 + $0xce0] sm:$0xff]
        %v1363 = vld [vmem:[#allocation10 + $0xce8] sm:$0xff]
        %v1364 = vld [vmem:[#allocation10 + $0xcf0] sm:$0xff]
        %v1365 = vld [vmem:[#allocation10 + $0xcf8] sm:$0xff]
        %v1366 = vld [vmem:[#allocation10 + $0xd00] sm:$0xff]
        %v1367 = vld [vmem:[#allocation10 + $0xd08] sm:$0xff]
        %v1368 = vld [vmem:[#allocation10 + $0xd10] sm:$0xff]
        %v1369 = vld [vmem:[#allocation10 + $0xd18] sm:$0xff]
        %v1370 = vld [vmem:[#allocation10 + $0xd20] sm:$0xff]
        %v1371 = vld [vmem:[#allocation10 + $0xd28] sm:$0xff]
        %v1372 = vld [vmem:[#allocation10 + $0xd30] sm:$0xff]
        %v1373 = vld [vmem:[#allocation10 + $0xd38] sm:$0xff]
        %v1374 = vld [vmem:[#allocation10 + $0xd40] sm:$0xff]
        %v1375 = vld [vmem:[#allocation10 + $0xd48] sm:$0xff]
        %v1376 = vld [vmem:[#allocation10 + $0xd50] sm:$0xff]
        %v1377 = vld [vmem:[#allocation10 + $0xd58] sm:$0xff]
        %v1378 = vld [vmem:[#allocation10 + $0xd60] sm:$0xff]
        %v1379 = vld [vmem:[#allocation10 + $0xd68] sm:$0xff]
        %v1380 = vld [vmem:[#allocation10 + $0xd70] sm:$0xff]
        %v1381 = vld [vmem:[#allocation10 + $0xd78] sm:$0xff]
        %v1382 = vld [vmem:[#allocation10 + $0xd80] sm:$0xff]
        %v1383 = vld [vmem:[#allocation10 + $0xd88] sm:$0xff]
        %v1384 = vld [vmem:[#allocation10 + $0xd90] sm:$0xff]
        %v1385 = vld [vmem:[#allocation10 + $0xd98] sm:$0xff]
        %v1386 = vld [vmem:[#allocation10 + $0xda0] sm:$0xff]
        %v1387 = vld [vmem:[#allocation10 + $0xda8] sm:$0xff]
        %v1388 = vld [vmem:[#allocation10 + $0xdb0] sm:$0xff]
        %v1389 = vld [vmem:[#allocation10 + $0xdb8] sm:$0xff]
        %v1390 = vld [vmem:[#allocation10 + $0xdc0] sm:$0xff]
        %v1391 = vld [vmem:[#allocation10 + $0xdc8] sm:$0xff]
        %v1392 = vld [vmem:[#allocation10 + $0xdd0] sm:$0xff]
        %v1393 = vld [vmem:[#allocation10 + $0xdd8] sm:$0xff]
        %v1394 = vld [vmem:[#allocation10 + $0xde0] sm:$0xff]
        %v1395 = vld [vmem:[#allocation10 + $0xde8] sm:$0xff]
        %v1396 = vld [vmem:[#allocation10 + $0xdf0] sm:$0xff]
        %v1397 = vld [vmem:[#allocation10 + $0xdf8] sm:$0xff]
        %v1398 = vld [vmem:[#allocation10 + $0xe00] sm:$0xff]
        %v1399 = vld [vmem:[#allocation10 + $0xe08] sm:$0xff]
        %v1400 = vld [vmem:[#allocation10 + $0xe10] sm:$0xff]
        %v1401 = vld [vmem:[#allocation10 + $0xe18] sm:$0xff]
        %v1402 = vld [vmem:[#allocation10 + $0xe20] sm:$0xff]
        %v1403 = vld [vmem:[#allocation10 + $0xe28] sm:$0xff]
        %v1404 = vld [vmem:[#allocation10 + $0xe30] sm:$0xff]
        %v1405 = vld [vmem:[#allocation10 + $0xe38] sm:$0xff]
        %v1406 = vld [vmem:[#allocation10 + $0xe40] sm:$0xff]
        %v1407 = vld [vmem:[#allocation10 + $0xe48] sm:$0xff]
        %v1408 = vld [vmem:[#allocation10 + $0xe50] sm:$0xff]
        %v1409 = vld [vmem:[#allocation10 + $0xe58] sm:$0xff]
        %v1410 = vld [vmem:[#allocation10 + $0xe60] sm:$0xff]
        %v1411 = vld [vmem:[#allocation10 + $0xe68] sm:$0xff]
        %v1412 = vld [vmem:[#allocation10 + $0xe70] sm:$0xff]
        %v1413 = vld [vmem:[#allocation10 + $0xe78] sm:$0xff]
        %v1414 = vld [vmem:[#allocation10 + $0xe80] sm:$0xff]
        %v1415 = vld [vmem:[#allocation10 + $0xe88] sm:$0xff]
        %v1416 = vld [vmem:[#allocation10 + $0xe90] sm:$0xff]
        %v1417 = vld [vmem:[#allocation10 + $0xe98] sm:$0xff]
        %v1418 = vld [vmem:[#allocation10 + $0xea0] sm:$0xff]
        %v1419 = vld [vmem:[#allocation10 + $0xea8] sm:$0xff]
        %v1420 = vld [vmem:[#allocation10 + $0xeb0] sm:$0xff]
        %v1421 = vld [vmem:[#allocation10 + $0xeb8] sm:$0xff]
        %v1422 = vld [vmem:[#allocation10 + $0xec0] sm:$0xff]
        %v1423 = vld [vmem:[#allocation10 + $0xec8] sm:$0xff]
        %v1424 = vld [vmem:[#allocation10 + $0xed0] sm:$0xff]
        %v1425 = vld [vmem:[#allocation10 + $0xed8] sm:$0xff]
        %v1426 = vld [vmem:[#allocation10 + $0xee0] sm:$0xff]
        %v1427 = vld [vmem:[#allocation10 + $0xee8] sm:$0xff]
        %v1428 = vld [vmem:[#allocation10 + $0xef0] sm:$0xff]
        %v1429 = vld [vmem:[#allocation10 + $0xef8] sm:$0xff]
        %v1430 = vld [vmem:[#allocation10 + $0xf00] sm:$0xff]
        %v1431 = vld [vmem:[#allocation10 + $0xf08] sm:$0xff]
        %v1432 = vld [vmem:[#allocation10 + $0xf10] sm:$0xff]
        %v1433 = vld [vmem:[#allocation10 + $0xf18] sm:$0xff]
        %v1434 = vld [vmem:[#allocation10 + $0xf20] sm:$0xff]
        %v1435 = vld [vmem:[#allocation10 + $0xf28] sm:$0xff]
        %v1436 = vld [vmem:[#allocation10 + $0xf30] sm:$0xff]
        %v1437 = vld [vmem:[#allocation10 + $0xf38] sm:$0xff]
        %v1438 = vld [vmem:[#allocation10 + $0xf40] sm:$0xff]
        %v1439 = vld [vmem:[#allocation10 + $0xf48] sm:$0xff]
        %v1440 = vld [vmem:[#allocation10 + $0xf50] sm:$0xff]
        %v1441 = vld [vmem:[#allocation10 + $0xf58] sm:$0xff]
        %v1442 = vld [vmem:[#allocation10 + $0xf60] sm:$0xff]
        %v1443 = vld [vmem:[#allocation10 + $0xf68] sm:$0xff]
        %v1444 = vld [vmem:[#allocation10 + $0xf70] sm:$0xff]
        %v1445 = vld [vmem:[#allocation10 + $0xf78] sm:$0xff]
        %v1446 = vld [vmem:[#allocation10 + $0xf80] sm:$0xff]
        %v1447 = vld [vmem:[#allocation10 + $0xf88] sm:$0xff]
        %v1448 = vld [vmem:[#allocation10 + $0xf90] sm:$0xff]
        %v1449 = vld [vmem:[#allocation10 + $0xf98] sm:$0xff]
        %v1450 = vld [vmem:[#allocation10 + $0xfa0] sm:$0xff]
        %v1451 = vld [vmem:[#allocation10 + $0xfa8] sm:$0xff]
        %v1452 = vld [vmem:[#allocation10 + $0xfb0] sm:$0xff]
        %v1453 = vld [vmem:[#allocation10 + $0xfb8] sm:$0xff]
        %v1454 = vld [vmem:[#allocation10 + $0xfc0] sm:$0xff]
        %v1455 = vld [vmem:[#allocation10 + $0xfc8] sm:$0xff]
        %v1456 = vld [vmem:[#allocation10 + $0xfd0] sm:$0xff]
        %v1457 = vld [vmem:[#allocation10 + $0xfd8] sm:$0xff]
        %v1458 = vld [vmem:[#allocation10 + $0xfe0] sm:$0xff]
        %v1459 = vld [vmem:[#allocation10 + $0xfe8] sm:$0xff]
        %v1460 = vld [vmem:[#allocation10 + $0xff0] sm:$0xff]
        %v1461 = vld [vmem:[#allocation10 + $0xff8] sm:$0xff]
        %v1462 = vld [vmem:[#allocation10 + $0x1000] sm:$0xff]
        %v1463 = vld [vmem:[#allocation10 + $0x1008] sm:$0xff]
        %v1464 = vld [vmem:[#allocation10 + $0x1010] sm:$0xff]
        %v1465 = vld [vmem:[#allocation10 + $0x1018] sm:$0xff]
        %v1466 = vld [vmem:[#allocation10 + $0x1020] sm:$0xff]
        %v1467 = vld [vmem:[#allocation10 + $0x1028] sm:$0xff]
        %v1468 = vld [vmem:[#allocation10 + $0x1030] sm:$0xff]
        %v1469 = vld [vmem:[#allocation10 + $0x1038] sm:$0xff]
        %v1470 = vld [vmem:[#allocation10 + $0x1040] sm:$0xff]
        %v1471 = vld [vmem:[#allocation10 + $0x1048] sm:$0xff]
        %v1472 = vld [vmem:[#allocation10 + $0x1050] sm:$0xff]
        %v1473 = vld [vmem:[#allocation10 + $0x1058] sm:$0xff]
        %v1474 = vld [vmem:[#allocation10 + $0x1060] sm:$0xff]
        %v1475 = vld [vmem:[#allocation10 + $0x1068] sm:$0xff]
        %v1476 = vld [vmem:[#allocation10 + $0x1070] sm:$0xff]
        %v1477 = vld [vmem:[#allocation10 + $0x1078] sm:$0xff]
        %v1478 = vld [vmem:[#allocation10 + $0x1080] sm:$0xff]
        %v1479 = vld [vmem:[#allocation10 + $0x1088] sm:$0xff]
        %v1480 = vld [vmem:[#allocation10 + $0x1090] sm:$0xff]
        %v1481 = vld [vmem:[#allocation10 + $0x1098] sm:$0xff]
        %v1482 = vld [vmem:[#allocation10 + $0x10a0] sm:$0xff]
        %v1483 = vld [vmem:[#allocation10 + $0x10a8] sm:$0xff]
        %v1484 = vld [vmem:[#allocation10 + $0x10b0] sm:$0xff]
        %v1485 = vld [vmem:[#allocation10 + $0x10b8] sm:$0xff]
        %v1486 = vld [vmem:[#allocation10 + $0x10c0] sm:$0xff]
        %v1487 = vld [vmem:[#allocation10 + $0x10c8] sm:$0xff]
        %v1488 = vld [vmem:[#allocation10 + $0x10d0] sm:$0xff]
        %v1489 = vld [vmem:[#allocation10 + $0x10d8] sm:$0xff]
        %v1490 = vld [vmem:[#allocation10 + $0x10e0] sm:$0xff]
        %v1491 = vld [vmem:[#allocation10 + $0x10e8] sm:$0xff]
        %v1492 = vld [vmem:[#allocation10 + $0x10f0] sm:$0xff]
        %v1493 = vld [vmem:[#allocation10 + $0x10f8] sm:$0xff]
        %v1494 = vld [vmem:[#allocation10 + $0x1100] sm:$0xff]
        %v1495 = vld [vmem:[#allocation10 + $0x1108] sm:$0xff]
        %v1496 = vld [vmem:[#allocation10 + $0x1110] sm:$0xff]
        %v1497 = vld [vmem:[#allocation10 + $0x1118] sm:$0xff]
        %v1498 = vld [vmem:[#allocation10 + $0x1120] sm:$0xff]
        %v1499 = vld [vmem:[#allocation10 + $0x1128] sm:$0xff]
        %v1500 = vld [vmem:[#allocation10 + $0x1130] sm:$0xff]
        %v1501 = vld [vmem:[#allocation10 + $0x1138] sm:$0xff]
        %v1502 = vld [vmem:[#allocation10 + $0x1140] sm:$0xff]
        %v1503 = vld [vmem:[#allocation10 + $0x1148] sm:$0xff]
        %v1504 = vld [vmem:[#allocation10 + $0x1150] sm:$0xff]
        %v1505 = vld [vmem:[#allocation10 + $0x1158] sm:$0xff]
        %v1506 = vld [vmem:[#allocation10 + $0x1160] sm:$0xff]
        %v1507 = vld [vmem:[#allocation10 + $0x1168] sm:$0xff]
        %v1508 = vld [vmem:[#allocation10 + $0x1170] sm:$0xff]
        %v1509 = vld [vmem:[#allocation10 + $0x1178] sm:$0xff]
        %v1510 = vld [vmem:[#allocation10 + $0x1180] sm:$0xff]
        %v1511 = vld [vmem:[#allocation10 + $0x1188] sm:$0xff]
        %v1512 = vld [vmem:[#allocation10 + $0x1190] sm:$0xff]
        %v1513 = vld [vmem:[#allocation10 + $0x1198] sm:$0xff]
        %v1514 = vld [vmem:[#allocation10 + $0x11a0] sm:$0xff]
        %v1515 = vld [vmem:[#allocation10 + $0x11a8] sm:$0xff]
        %v1516 = vld [vmem:[#allocation10 + $0x11b0] sm:$0xff]
        %v1517 = vld [vmem:[#allocation10 + $0x11b8] sm:$0xff]
        %v1518 = vld [vmem:[#allocation10 + $0x11c0] sm:$0xff]
        %v1519 = vld [vmem:[#allocation10 + $0x11c8] sm:$0xff]
        %v1520 = vld [vmem:[#allocation10 + $0x11d0] sm:$0xff]
        %v1521 = vld [vmem:[#allocation10 + $0x11d8] sm:$0xff]
        %v1522 = vld [vmem:[#allocation10 + $0x11e0] sm:$0xff]
        %v1523 = vld [vmem:[#allocation10 + $0x11e8] sm:$0xff]
        %v1524 = vld [vmem:[#allocation10 + $0x11f0] sm:$0xff]
        %v1525 = vld [vmem:[#allocation10 + $0x11f8] sm:$0xff]
        %v1526 = vld [vmem:[#allocation10 + $0x1200] sm:$0xff]
        %v1527 = vld [vmem:[#allocation10 + $0x1208] sm:$0xff]
        %v1528 = vld [vmem:[#allocation10 + $0x1210] sm:$0xff]
        %v1529 = vld [vmem:[#allocation10 + $0x1218] sm:$0xff]
        %v1530 = vld [vmem:[#allocation10 + $0x1220] sm:$0xff]
        %v1531 = vld [vmem:[#allocation10 + $0x1228] sm:$0xff]
        %v1532 = vld [vmem:[#allocation10 + $0x1230] sm:$0xff]
        %v1533 = vld [vmem:[#allocation10 + $0x1238] sm:$0xff]
        %v1534 = vld [vmem:[#allocation10 + $0x1240] sm:$0xff]
        %v1535 = vld [vmem:[#allocation10 + $0x1248] sm:$0xff]
        %v1536 = vld [vmem:[#allocation10 + $0x1250] sm:$0xff]
        %v1537 = vld [vmem:[#allocation10 + $0x1258] sm:$0xff]
        %v1538 = vld [vmem:[#allocation10 + $0x1260] sm:$0xff]
        %v1539 = vld [vmem:[#allocation10 + $0x1268] sm:$0xff]
        %v1540 = vld [vmem:[#allocation10 + $0x1270] sm:$0xff]
        %v1541 = vld [vmem:[#allocation10 + $0x1278] sm:$0xff]
        %v1542 = vld [vmem:[#allocation10 + $0x1280] sm:$0xff]
        %v1543 = vld [vmem:[#allocation10 + $0x1288] sm:$0xff]
        %v1544 = vld [vmem:[#allocation10 + $0x1290] sm:$0xff]
        %v1545 = vld [vmem:[#allocation10 + $0x1298] sm:$0xff]
        %v1546 = vld [vmem:[#allocation10 + $0x12a0] sm:$0xff]
        %v1547 = vld [vmem:[#allocation10 + $0x12a8] sm:$0xff]
        %v1548 = vld [vmem:[#allocation10 + $0x12b0] sm:$0xff]
        %v1549 = vld [vmem:[#allocation10 + $0x12b8] sm:$0xff]
        %v1550 = vld [vmem:[#allocation10 + $0x12c0] sm:$0xff]
        %v1551 = vld [vmem:[#allocation10 + $0x12c8] sm:$0xff]
        %v1552 = vld [vmem:[#allocation10 + $0x12d0] sm:$0xff]
        %v1553 = vld [vmem:[#allocation10 + $0x12d8] sm:$0xff]
        %v1554 = vld [vmem:[#allocation10 + $0x12e0] sm:$0xff]
        %v1555 = vld [vmem:[#allocation10 + $0x12e8] sm:$0xff]
        %v1556 = vld [vmem:[#allocation10 + $0x12f0] sm:$0xff]
        %v1557 = vld [vmem:[#allocation10 + $0x12f8] sm:$0xff]
        %v1558 = vld [vmem:[#allocation10 + $0x1300] sm:$0xff]
        %v1559 = vld [vmem:[#allocation10 + $0x1308] sm:$0xff]
        %v1560 = vld [vmem:[#allocation10 + $0x1310] sm:$0xff]
        %v1561 = vld [vmem:[#allocation10 + $0x1318] sm:$0xff]
        %v1562 = vld [vmem:[#allocation10 + $0x1320] sm:$0xff]
        %v1563 = vld [vmem:[#allocation10 + $0x1328] sm:$0xff]
        %v1564 = vld [vmem:[#allocation10 + $0x1330] sm:$0xff]
        %v1565 = vld [vmem:[#allocation10 + $0x1338] sm:$0xff]
        %v1566 = vld [vmem:[#allocation10 + $0x1340] sm:$0xff]
        %v1567 = vld [vmem:[#allocation10 + $0x1348] sm:$0xff]
        %v1568 = vld [vmem:[#allocation10 + $0x1350] sm:$0xff]
        %v1569 = vld [vmem:[#allocation10 + $0x1358] sm:$0xff]
        %v1570 = vld [vmem:[#allocation10 + $0x1360] sm:$0xff]
        %v1571 = vld [vmem:[#allocation10 + $0x1368] sm:$0xff]
        %v1572 = vld [vmem:[#allocation10 + $0x1370] sm:$0xff]
        %v1573 = vld [vmem:[#allocation10 + $0x1378] sm:$0xff]
        %v1574 = vld [vmem:[#allocation10 + $0x1380] sm:$0xff]
        %v1575 = vld [vmem:[#allocation10 + $0x1388] sm:$0xff]
        %v1576 = vld [vmem:[#allocation10 + $0x1390] sm:$0xff]
        %v1577 = vld [vmem:[#allocation10 + $0x1398] sm:$0xff]
        %v1578 = vld [vmem:[#allocation10 + $0x13a0] sm:$0xff]
        %v1579 = vld [vmem:[#allocation10 + $0x13a8] sm:$0xff]
        %v1580 = vld [vmem:[#allocation10 + $0x13b0] sm:$0xff]
        %v1581 = vld [vmem:[#allocation10 + $0x13b8] sm:$0xff]
        %v1582 = vld [vmem:[#allocation10 + $0x13c0] sm:$0xff]
        %v1583 = vld [vmem:[#allocation10 + $0x13c8] sm:$0xff]
        %v1584 = vld [vmem:[#allocation10 + $0x13d0] sm:$0xff]
        %v1585 = vld [vmem:[#allocation10 + $0x13d8] sm:$0xff]
        %v1586 = vld [vmem:[#allocation10 + $0x13e0] sm:$0xff]
        %v1587 = vld [vmem:[#allocation10 + $0x13e8] sm:$0xff]
        %v1588 = vld [vmem:[#allocation10 + $0x13f0] sm:$0xff]
        %v1589 = vld [vmem:[#allocation10 + $0x13f8] sm:$0xff]
        %v1590 = vld [vmem:[#allocation10 + $0x1400] sm:$0xff]
        %v1591 = vld [vmem:[#allocation10 + $0x1408] sm:$0xff]
        %v1592 = vld [vmem:[#allocation10 + $0x1410] sm:$0xff]
        %v1593 = vld [vmem:[#allocation10 + $0x1418] sm:$0xff]
        %v1594 = vld [vmem:[#allocation10 + $0x1420] sm:$0xff]
        %v1595 = vld [vmem:[#allocation10 + $0x1428] sm:$0xff]
        %v1596 = vld [vmem:[#allocation10 + $0x1430] sm:$0xff]
        %v1597 = vld [vmem:[#allocation10 + $0x1438] sm:$0xff]
        %v1598 = vld [vmem:[#allocation10 + $0x1440] sm:$0xff]
        %v1599 = vld [vmem:[#allocation10 + $0x1448] sm:$0xff]
        %v1600 = vld [vmem:[#allocation10 + $0x1450] sm:$0xff]
        %v1601 = vld [vmem:[#allocation10 + $0x1458] sm:$0xff]
        %v1602 = vld [vmem:[#allocation10 + $0x1460] sm:$0xff]
        %v1603 = vld [vmem:[#allocation10 + $0x1468] sm:$0xff]
        %v1604 = vld [vmem:[#allocation10 + $0x1470] sm:$0xff]
        %v1605 = vld [vmem:[#allocation10 + $0x1478] sm:$0xff]
        %v1606 = vld [vmem:[#allocation10 + $0x1480] sm:$0xff]
        %v1607 = vld [vmem:[#allocation10 + $0x1488] sm:$0xff]
        %v1608 = vld [vmem:[#allocation10 + $0x1490] sm:$0xff]
        %v1609 = vld [vmem:[#allocation10 + $0x1498] sm:$0xff]
        %v1610 = vld [vmem:[#allocation10 + $0x14a0] sm:$0xff]
        %v1611 = vld [vmem:[#allocation10 + $0x14a8] sm:$0xff]
        %v1612 = vld [vmem:[#allocation10 + $0x14b0] sm:$0xff]
        %v1613 = vld [vmem:[#allocation10 + $0x14b8] sm:$0xff]
        %v1614 = vld [vmem:[#allocation10 + $0x14c0] sm:$0xff]
        %v1615 = vld [vmem:[#allocation10 + $0x14c8] sm:$0xff]
        %v1616 = vld [vmem:[#allocation10 + $0x14d0] sm:$0xff]
        %v1617 = vld [vmem:[#allocation10 + $0x14d8] sm:$0xff]
        %v1618 = vld [vmem:[#allocation10 + $0x14e0] sm:$0xff]
        %v1619 = vld [vmem:[#allocation10 + $0x14e8] sm:$0xff]
        %v1620 = vld [vmem:[#allocation10 + $0x14f0] sm:$0xff]
        %v1621 = vld [vmem:[#allocation10 + $0x14f8] sm:$0xff]
        %v1622 = vld [vmem:[#allocation10 + $0x1500] sm:$0xff]
        %v1623 = vld [vmem:[#allocation10 + $0x1508] sm:$0xff]
        %v1624 = vld [vmem:[#allocation10 + $0x1510] sm:$0xff]
        %v1625 = vld [vmem:[#allocation10 + $0x1518] sm:$0xff]
        %v1626 = vld [vmem:[#allocation10 + $0x1520] sm:$0xff]
        %v1627 = vld [vmem:[#allocation10 + $0x1528] sm:$0xff]
        %v1628 = vld [vmem:[#allocation10 + $0x1530] sm:$0xff]
        %v1629 = vld [vmem:[#allocation10 + $0x1538] sm:$0xff]
        %v1630 = vld [vmem:[#allocation10 + $0x1540] sm:$0xff]
        %v1631 = vld [vmem:[#allocation10 + $0x1548] sm:$0xff]
        %v1632 = vld [vmem:[#allocation10 + $0x1550] sm:$0xff]
        %v1633 = vld [vmem:[#allocation10 + $0x1558] sm:$0xff]
        %v1634 = vld [vmem:[#allocation10 + $0x1560] sm:$0xff]
        %v1635 = vld [vmem:[#allocation10 + $0x1568] sm:$0xff]
        %v1636 = vld [vmem:[#allocation10 + $0x1570] sm:$0xff]
        %v1637 = vld [vmem:[#allocation10 + $0x1578] sm:$0xff]
        %v1638 = vld [vmem:[#allocation10 + $0x1580] sm:$0xff]
        %v1639 = vld [vmem:[#allocation10 + $0x1588] sm:$0xff]
        %v1640 = vld [vmem:[#allocation10 + $0x1590] sm:$0xff]
        %v1641 = vld [vmem:[#allocation10 + $0x1598] sm:$0xff]
        %v1642 = vld [vmem:[#allocation10 + $0x15a0] sm:$0xff]
        %v1643 = vld [vmem:[#allocation10 + $0x15a8] sm:$0xff]
        %v1644 = vld [vmem:[#allocation10 + $0x15b0] sm:$0xff]
        %v1645 = vld [vmem:[#allocation10 + $0x15b8] sm:$0xff]
        %v1646 = vld [vmem:[#allocation10 + $0x15c0] sm:$0xff]
        %v1647 = vld [vmem:[#allocation10 + $0x15c8] sm:$0xff]
        %v1648 = vld [vmem:[#allocation10 + $0x15d0] sm:$0xff]
        %v1649 = vld [vmem:[#allocation10 + $0x15d8] sm:$0xff]
        %v1650 = vld [vmem:[#allocation10 + $0x15e0] sm:$0xff]
        %v1651 = vld [vmem:[#allocation10 + $0x15e8] sm:$0xff]
        %v1652 = vld [vmem:[#allocation10 + $0x15f0] sm:$0xff]
        %v1653 = vld [vmem:[#allocation10 + $0x15f8] sm:$0xff]
        %v1654 = vld [vmem:[#allocation10 + $0x1600] sm:$0xff]
        %v1655 = vld [vmem:[#allocation10 + $0x1608] sm:$0xff]
        %v1656 = vld [vmem:[#allocation10 + $0x1610] sm:$0xff]
        %v1657 = vld [vmem:[#allocation10 + $0x1618] sm:$0xff]
        %v1658 = vld [vmem:[#allocation10 + $0x1620] sm:$0xff]
        %v1659 = vld [vmem:[#allocation10 + $0x1628] sm:$0xff]
        %v1660 = vld [vmem:[#allocation10 + $0x1630] sm:$0xff]
        %v1661 = vld [vmem:[#allocation10 + $0x1638] sm:$0xff]
        %v1662 = vld [vmem:[#allocation10 + $0x1640] sm:$0xff]
        %v1663 = vld [vmem:[#allocation10 + $0x1648] sm:$0xff]
        %v1664 = vld [vmem:[#allocation10 + $0x1650] sm:$0xff]
        %v1665 = vld [vmem:[#allocation10 + $0x1658] sm:$0xff]
        %v1666 = vld [vmem:[#allocation10 + $0x1660] sm:$0xff]
        %v1667 = vld [vmem:[#allocation10 + $0x1668] sm:$0xff]
        %v1668 = vld [vmem:[#allocation10 + $0x1670] sm:$0xff]
        %v1669 = vld [vmem:[#allocation10 + $0x1678] sm:$0xff]
        %v1670 = vld [vmem:[#allocation10 + $0x1680] sm:$0xff]
        %v1671 = vld [vmem:[#allocation10 + $0x1688] sm:$0xff]
        %v1672 = vld [vmem:[#allocation10 + $0x1690] sm:$0xff]
        %v1673 = vld [vmem:[#allocation10 + $0x1698] sm:$0xff]
        %v1674 = vld [vmem:[#allocation10 + $0x16a0] sm:$0xff]
        %v1675 = vld [vmem:[#allocation10 + $0x16a8] sm:$0xff]
        %v1676 = vld [vmem:[#allocation10 + $0x16b0] sm:$0xff]
        %v1677 = vld [vmem:[#allocation10 + $0x16b8] sm:$0xff]
        %v1678 = vld [vmem:[#allocation10 + $0x16c0] sm:$0xff]
        %v1679 = vld [vmem:[#allocation10 + $0x16c8] sm:$0xff]
        %v1680 = vld [vmem:[#allocation10 + $0x16d0] sm:$0xff]
        %v1681 = vld [vmem:[#allocation10 + $0x16d8] sm:$0xff]
        %v1682 = vld [vmem:[#allocation10 + $0x16e0] sm:$0xff]
        %v1683 = vld [vmem:[#allocation10 + $0x16e8] sm:$0xff]
        %v1684 = vld [vmem:[#allocation10 + $0x16f0] sm:$0xff]
        %v1685 = vld [vmem:[#allocation10 + $0x16f8] sm:$0xff]
        %v1686 = vld [vmem:[#allocation10 + $0x1700] sm:$0xff]
        %v1687 = vld [vmem:[#allocation10 + $0x1708] sm:$0xff]
        %v1688 = vld [vmem:[#allocation10 + $0x1710] sm:$0xff]
        %v1689 = vld [vmem:[#allocation10 + $0x1718] sm:$0xff]
        %v1690 = vld [vmem:[#allocation10 + $0x1720] sm:$0xff]
        %v1691 = vld [vmem:[#allocation10 + $0x1728] sm:$0xff]
        %v1692 = vld [vmem:[#allocation10 + $0x1730] sm:$0xff]
        %v1693 = vld [vmem:[#allocation10 + $0x1738] sm:$0xff]
        %v1694 = vld [vmem:[#allocation10 + $0x1740] sm:$0xff]
        %v1695 = vld [vmem:[#allocation10 + $0x1748] sm:$0xff]
        %v1696 = vld [vmem:[#allocation10 + $0x1750] sm:$0xff]
        %v1697 = vld [vmem:[#allocation10 + $0x1758] sm:$0xff]
        %v1698 = vld [vmem:[#allocation10 + $0x1760] sm:$0xff]
        %v1699 = vld [vmem:[#allocation10 + $0x1768] sm:$0xff]
        %v1700 = vld [vmem:[#allocation10 + $0x1770] sm:$0xff]
        %v1701 = vld [vmem:[#allocation10 + $0x1778] sm:$0xff]
        %v1702 = vld [vmem:[#allocation10 + $0x1780] sm:$0xff]
        %v1703 = vld [vmem:[#allocation10 + $0x1788] sm:$0xff]
        %v1704 = vld [vmem:[#allocation10 + $0x1790] sm:$0xff]
        %v1705 = vld [vmem:[#allocation10 + $0x1798] sm:$0xff]
        %v1706 = vld [vmem:[#allocation10 + $0x17a0] sm:$0xff]
        %v1707 = vld [vmem:[#allocation10 + $0x17a8] sm:$0xff]
        %v1708 = vld [vmem:[#allocation10 + $0x17b0] sm:$0xff]
        %v1709 = vld [vmem:[#allocation10 + $0x17b8] sm:$0xff]
        %v1710 = vld [vmem:[#allocation10 + $0x17c0] sm:$0xff]
        %v1711 = vld [vmem:[#allocation10 + $0x17c8] sm:$0xff]
        %v1712 = vld [vmem:[#allocation10 + $0x17d0] sm:$0xff]
        %v1713 = vld [vmem:[#allocation10 + $0x17d8] sm:$0xff]
        %v1714 = vld [vmem:[#allocation10 + $0x17e0] sm:$0xff]
        %v1715 = vld [vmem:[#allocation10 + $0x17e8] sm:$0xff]
        %v1716 = vld [vmem:[#allocation10 + $0x17f0] sm:$0xff]
        %v1717 = vld [vmem:[#allocation10 + $0x17f8] sm:$0xff]
        %v1718 = vld [vmem:[#allocation10 + $0x1800] sm:$0xff]
        %v1719 = vld [vmem:[#allocation10 + $0x1808] sm:$0xff]
        %v1720 = vld [vmem:[#allocation10 + $0x1810] sm:$0xff]
        %v1721 = vld [vmem:[#allocation10 + $0x1818] sm:$0xff]
        %v1722 = vld [vmem:[#allocation10 + $0x1820] sm:$0xff]
        %v1723 = vld [vmem:[#allocation10 + $0x1828] sm:$0xff]
        %v1724 = vld [vmem:[#allocation10 + $0x1830] sm:$0xff]
        %v1725 = vld [vmem:[#allocation10 + $0x1838] sm:$0xff]
        %v1726 = vld [vmem:[#allocation10 + $0x1840] sm:$0xff]
        %v1727 = vld [vmem:[#allocation10 + $0x1848] sm:$0xff]
        %v1728 = vld [vmem:[#allocation10 + $0x1850] sm:$0xff]
        %v1729 = vld [vmem:[#allocation10 + $0x1858] sm:$0xff]
        %v1730 = vld [vmem:[#allocation10 + $0x1860] sm:$0xff]
        %v1731 = vld [vmem:[#allocation10 + $0x1868] sm:$0xff]
        %v1732 = vld [vmem:[#allocation10 + $0x1870] sm:$0xff]
        %v1733 = vld [vmem:[#allocation10 + $0x1878] sm:$0xff]
        %v1734 = vld [vmem:[#allocation10 + $0x1880] sm:$0xff]
        %v1735 = vld [vmem:[#allocation10 + $0x1888] sm:$0xff]
        %v1736 = vld [vmem:[#allocation10 + $0x1890] sm:$0xff]
        %v1737 = vld [vmem:[#allocation10 + $0x1898] sm:$0xff]
        %v1738 = vld [vmem:[#allocation10 + $0x18a0] sm:$0xff]
        %v1739 = vld [vmem:[#allocation10 + $0x18a8] sm:$0xff]
        %v1740 = vld [vmem:[#allocation10 + $0x18b0] sm:$0xff]
        %v1741 = vld [vmem:[#allocation10 + $0x18b8] sm:$0xff]
        %v1742 = vld [vmem:[#allocation10 + $0x18c0] sm:$0xff]
        %v1743 = vld [vmem:[#allocation10 + $0x18c8] sm:$0xff]
        %v1744 = vld [vmem:[#allocation10 + $0x18d0] sm:$0xff]
        %v1745 = vld [vmem:[#allocation10 + $0x18d8] sm:$0xff]
        %v1746 = vld [vmem:[#allocation10 + $0x18e0] sm:$0xff]
        %v1747 = vld [vmem:[#allocation10 + $0x18e8] sm:$0xff]
        %v1748 = vld [vmem:[#allocation10 + $0x18f0] sm:$0xff]
        %v1749 = vld [vmem:[#allocation10 + $0x18f8] sm:$0xff]
        %v1750 = vld [vmem:[#allocation10 + $0x1900] sm:$0xff]
        %v1751 = vld [vmem:[#allocation10 + $0x1908] sm:$0xff]
        %v1752 = vld [vmem:[#allocation10 + $0x1910] sm:$0xff]
        %v1753 = vld [vmem:[#allocation10 + $0x1918] sm:$0xff]
        %v1754 = vld [vmem:[#allocation10 + $0x1920] sm:$0xff]
        %v1755 = vld [vmem:[#allocation10 + $0x1928] sm:$0xff]
        %v1756 = vld [vmem:[#allocation10 + $0x1930] sm:$0xff]
        %v1757 = vld [vmem:[#allocation10 + $0x1938] sm:$0xff]
        %v1758 = vld [vmem:[#allocation10 + $0x1940] sm:$0xff]
        %v1759 = vld [vmem:[#allocation10 + $0x1948] sm:$0xff]
        %v1760 = vld [vmem:[#allocation10 + $0x1950] sm:$0xff]
        %v1761 = vld [vmem:[#allocation10 + $0x1958] sm:$0xff]
        %v1762 = vld [vmem:[#allocation10 + $0x1960] sm:$0xff]
        %v1763 = vld [vmem:[#allocation10 + $0x1968] sm:$0xff]
        %v1764 = vld [vmem:[#allocation10 + $0x1970] sm:$0xff]
        %v1765 = vld [vmem:[#allocation10 + $0x1978] sm:$0xff]
        %v1766 = vld [vmem:[#allocation10 + $0x1980] sm:$0xff]
        %v1767 = vld [vmem:[#allocation10 + $0x1988] sm:$0xff]
        %v1768 = vld [vmem:[#allocation10 + $0x1990] sm:$0xff]
        %v1769 = vld [vmem:[#allocation10 + $0x1998] sm:$0xff]
        %v1770 = vld [vmem:[#allocation10 + $0x19a0] sm:$0xff]
        %v1771 = vld [vmem:[#allocation10 + $0x19a8] sm:$0xff]
        %v1772 = vld [vmem:[#allocation10 + $0x19b0] sm:$0xff]
        %v1773 = vld [vmem:[#allocation10 + $0x19b8] sm:$0xff]
        %v1774 = vld [vmem:[#allocation10 + $0x19c0] sm:$0xff]
        %v1775 = vld [vmem:[#allocation10 + $0x19c8] sm:$0xff]
        %v1776 = vld [vmem:[#allocation10 + $0x19d0] sm:$0xff]
        %v1777 = vld [vmem:[#allocation10 + $0x19d8] sm:$0xff]
        %v1778 = vld [vmem:[#allocation10 + $0x19e0] sm:$0xff]
        %v1779 = vld [vmem:[#allocation10 + $0x19e8] sm:$0xff]
        %v1780 = vld [vmem:[#allocation10 + $0x19f0] sm:$0xff]
        %v1781 = vld [vmem:[#allocation10 + $0x19f8] sm:$0xff]
        %v1782 = vld [vmem:[#allocation10 + $0x1a00] sm:$0xff]
        %v1783 = vld [vmem:[#allocation10 + $0x1a08] sm:$0xff]
        %v1784 = vld [vmem:[#allocation10 + $0x1a10] sm:$0xff]
        %v1785 = vld [vmem:[#allocation10 + $0x1a18] sm:$0xff]
        %v1786 = vld [vmem:[#allocation10 + $0x1a20] sm:$0xff]
        %v1787 = vld [vmem:[#allocation10 + $0x1a28] sm:$0xff]
        %v1788 = vld [vmem:[#allocation10 + $0x1a30] sm:$0xff]
        %v1789 = vld [vmem:[#allocation10 + $0x1a38] sm:$0xff]
        %v1790 = vld [vmem:[#allocation10 + $0x1a40] sm:$0xff]
        %v1791 = vld [vmem:[#allocation10 + $0x1a48] sm:$0xff]
        %v1792 = vld [vmem:[#allocation10 + $0x1a50] sm:$0xff]
        %v1793 = vld [vmem:[#allocation10 + $0x1a58] sm:$0xff]
        %v1794 = vld [vmem:[#allocation10 + $0x1a60] sm:$0xff]
        %v1795 = vld [vmem:[#allocation10 + $0x1a68] sm:$0xff]
        %v1796 = vld [vmem:[#allocation10 + $0x1a70] sm:$0xff]
        %v1797 = vld [vmem:[#allocation10 + $0x1a78] sm:$0xff]
        %v1798 = vld [vmem:[#allocation10 + $0x1a80] sm:$0xff]
        %v1799 = vld [vmem:[#allocation10 + $0x1a88] sm:$0xff]
        %v1800 = vld [vmem:[#allocation10 + $0x1a90] sm:$0xff]
        %v1801 = vld [vmem:[#allocation10 + $0x1a98] sm:$0xff]
        %v1802 = vld [vmem:[#allocation10 + $0x1aa0] sm:$0xff]
        %v1803 = vld [vmem:[#allocation10 + $0x1aa8] sm:$0xff]
        %v1804 = vld [vmem:[#allocation10 + $0x1ab0] sm:$0xff]
        %v1805 = vld [vmem:[#allocation10 + $0x1ab8] sm:$0xff]
        %v1806 = vld [vmem:[#allocation10 + $0x1ac0] sm:$0xff]
        %v1807 = vld [vmem:[#allocation10 + $0x1ac8] sm:$0xff]
        %v1808 = vld [vmem:[#allocation10 + $0x1ad0] sm:$0xff]
        %v1809 = vld [vmem:[#allocation10 + $0x1ad8] sm:$0xff]
        %v1810 = vld [vmem:[#allocation10 + $0x1ae0] sm:$0xff]
        %v1811 = vld [vmem:[#allocation10 + $0x1ae8] sm:$0xff]
        %v1812 = vld [vmem:[#allocation10 + $0x1af0] sm:$0xff]
        %v1813 = vld [vmem:[#allocation10 + $0x1af8] sm:$0xff]
        %v1814 = vld [vmem:[#allocation10 + $0x1b00] sm:$0xff]
        %v1815 = vld [vmem:[#allocation10 + $0x1b08] sm:$0xff]
        %v1816 = vld [vmem:[#allocation10 + $0x1b10] sm:$0xff]
        %v1817 = vld [vmem:[#allocation10 + $0x1b18] sm:$0xff]
        %v1818 = vld [vmem:[#allocation10 + $0x1b20] sm:$0xff]
        %v1819 = vld [vmem:[#allocation10 + $0x1b28] sm:$0xff]
        %v1820 = vld [vmem:[#allocation10 + $0x1b30] sm:$0xff]
        %v1821 = vld [vmem:[#allocation10 + $0x1b38] sm:$0xff]
        %v1822 = vld [vmem:[#allocation10 + $0x1b40] sm:$0xff]
        %v1823 = vld [vmem:[#allocation10 + $0x1b48] sm:$0xff]
        %v1824 = vld [vmem:[#allocation10 + $0x1b50] sm:$0xff]
        %v1825 = vld [vmem:[#allocation10 + $0x1b58] sm:$0xff]
        %v1826 = vld [vmem:[#allocation10 + $0x1b60] sm:$0xff]
        %v1827 = vld [vmem:[#allocation10 + $0x1b68] sm:$0xff]
        %v1828 = vld [vmem:[#allocation10 + $0x1b70] sm:$0xff]
        %v1829 = vld [vmem:[#allocation10 + $0x1b78] sm:$0xff]
        %v1830 = vld [vmem:[#allocation10 + $0x1b80] sm:$0xff]
        %v1831 = vld [vmem:[#allocation10 + $0x1b88] sm:$0xff]
        %v1832 = vld [vmem:[#allocation10 + $0x1b90] sm:$0xff]
        %v1833 = vld [vmem:[#allocation10 + $0x1b98] sm:$0xff]
        %v1834 = vld [vmem:[#allocation10 + $0x1ba0] sm:$0xff]
        %v1835 = vld [vmem:[#allocation10 + $0x1ba8] sm:$0xff]
        %v1836 = vld [vmem:[#allocation10 + $0x1bb0] sm:$0xff]
        %v1837 = vld [vmem:[#allocation10 + $0x1bb8] sm:$0xff]
        %v1838 = vld [vmem:[#allocation10 + $0x1bc0] sm:$0xff]
        %v1839 = vld [vmem:[#allocation10 + $0x1bc8] sm:$0xff]
        %v1840 = vld [vmem:[#allocation10 + $0x1bd0] sm:$0xff]
        %v1841 = vld [vmem:[#allocation10 + $0x1bd8] sm:$0xff]
        %v1842 = vld [vmem:[#allocation10 + $0x1be0] sm:$0xff]
        %v1843 = vld [vmem:[#allocation10 + $0x1be8] sm:$0xff]
        %v1844 = vld [vmem:[#allocation10 + $0x1bf0] sm:$0xff]
        %v1845 = vld [vmem:[#allocation10 + $0x1bf8] sm:$0xff]
        %v1846 = vld [vmem:[#allocation10 + $0x1c00] sm:$0xff]
        %v1847 = vld [vmem:[#allocation10 + $0x1c08] sm:$0xff]
        %v1848 = vld [vmem:[#allocation10 + $0x1c10] sm:$0xff]
        %v1849 = vld [vmem:[#allocation10 + $0x1c18] sm:$0xff]
        %v1850 = vld [vmem:[#allocation10 + $0x1c20] sm:$0xff]
        %v1851 = vld [vmem:[#allocation10 + $0x1c28] sm:$0xff]
        %v1852 = vld [vmem:[#allocation10 + $0x1c30] sm:$0xff]
        %v1853 = vld [vmem:[#allocation10 + $0x1c38] sm:$0xff]
        %v1854 = vld [vmem:[#allocation10 + $0x1c40] sm:$0xff]
        %v1855 = vld [vmem:[#allocation10 + $0x1c48] sm:$0xff]
        %v1856 = vld [vmem:[#allocation10 + $0x1c50] sm:$0xff]
        %v1857 = vld [vmem:[#allocation10 + $0x1c58] sm:$0xff]
        %v1858 = vld [vmem:[#allocation10 + $0x1c60] sm:$0xff]
        %v1859 = vld [vmem:[#allocation10 + $0x1c68] sm:$0xff]
        %v1860 = vld [vmem:[#allocation10 + $0x1c70] sm:$0xff]
        %v1861 = vld [vmem:[#allocation10 + $0x1c78] sm:$0xff]
        %v1862 = vld [vmem:[#allocation10 + $0x1c80] sm:$0xff]
        %v1863 = vld [vmem:[#allocation10 + $0x1c88] sm:$0xff]
        %v1864 = vld [vmem:[#allocation10 + $0x1c90] sm:$0xff]
        %v1865 = vld [vmem:[#allocation10 + $0x1c98] sm:$0xff]
        %v1866 = vld [vmem:[#allocation10 + $0x1ca0] sm:$0xff]
        %v1867 = vld [vmem:[#allocation10 + $0x1ca8] sm:$0xff]
        %v1868 = vld [vmem:[#allocation10 + $0x1cb0] sm:$0xff]
        %v1869 = vld [vmem:[#allocation10 + $0x1cb8] sm:$0xff]
        %v1870 = vld [vmem:[#allocation10 + $0x1cc0] sm:$0xff]
        %v1871 = vld [vmem:[#allocation10 + $0x1cc8] sm:$0xff]
        %v1872 = vld [vmem:[#allocation10 + $0x1cd0] sm:$0xff]
        %v1873 = vld [vmem:[#allocation10 + $0x1cd8] sm:$0xff]
        %v1874 = vld [vmem:[#allocation10 + $0x1ce0] sm:$0xff]
        %v1875 = vld [vmem:[#allocation10 + $0x1ce8] sm:$0xff]
        %v1876 = vld [vmem:[#allocation10 + $0x1cf0] sm:$0xff]
        %v1877 = vld [vmem:[#allocation10 + $0x1cf8] sm:$0xff]
        %v1878 = vld [vmem:[#allocation10 + $0x1d00] sm:$0xff]
        %v1879 = vld [vmem:[#allocation10 + $0x1d08] sm:$0xff]
        %v1880 = vld [vmem:[#allocation10 + $0x1d10] sm:$0xff]
        %v1881 = vld [vmem:[#allocation10 + $0x1d18] sm:$0xff]
        %v1882 = vld [vmem:[#allocation10 + $0x1d20] sm:$0xff]
        %v1883 = vld [vmem:[#allocation10 + $0x1d28] sm:$0xff]
        %v1884 = vld [vmem:[#allocation10 + $0x1d30] sm:$0xff]
        %v1885 = vld [vmem:[#allocation10 + $0x1d38] sm:$0xff]
        %v1886 = vld [vmem:[#allocation10 + $0x1d40] sm:$0xff]
        %v1887 = vld [vmem:[#allocation10 + $0x1d48] sm:$0xff]
        %v1888 = vld [vmem:[#allocation10 + $0x1d50] sm:$0xff]
        %v1889 = vld [vmem:[#allocation10 + $0x1d58] sm:$0xff]
        %v1890 = vld [vmem:[#allocation10 + $0x1d60] sm:$0xff]
        %v1891 = vld [vmem:[#allocation10 + $0x1d68] sm:$0xff]
        %v1892 = vld [vmem:[#allocation10 + $0x1d70] sm:$0xff]
        %v1893 = vld [vmem:[#allocation10 + $0x1d78] sm:$0xff]
        %v1894 = vld [vmem:[#allocation10 + $0x1d80] sm:$0xff]
        %v1895 = vld [vmem:[#allocation10 + $0x1d88] sm:$0xff]
        %v1896 = vld [vmem:[#allocation10 + $0x1d90] sm:$0xff]
        %v1897 = vld [vmem:[#allocation10 + $0x1d98] sm:$0xff]
        %v1898 = vld [vmem:[#allocation10 + $0x1da0] sm:$0xff]
        %v1899 = vld [vmem:[#allocation10 + $0x1da8] sm:$0xff]
        %v1900 = vld [vmem:[#allocation10 + $0x1db0] sm:$0xff]
        %v1901 = vld [vmem:[#allocation10 + $0x1db8] sm:$0xff]
        %v1902 = vld [vmem:[#allocation10 + $0x1dc0] sm:$0xff]
        %v1903 = vld [vmem:[#allocation10 + $0x1dc8] sm:$0xff]
        %v1904 = vld [vmem:[#allocation10 + $0x1dd0] sm:$0xff]
        %v1905 = vld [vmem:[#allocation10 + $0x1dd8] sm:$0xff]
        %v1906 = vld [vmem:[#allocation10 + $0x1de0] sm:$0xff]
        %v1907 = vld [vmem:[#allocation10 + $0x1de8] sm:$0xff]
        %v1908 = vld [vmem:[#allocation10 + $0x1df0] sm:$0xff]
        %v1909 = vld [vmem:[#allocation10 + $0x1df8] sm:$0xff]
        %v1910 = vld [vmem:[#allocation10 + $0x1e00] sm:$0xff]
        %v1911 = vld [vmem:[#allocation10 + $0x1e08] sm:$0xff]
        %v1912 = vld [vmem:[#allocation10 + $0x1e10] sm:$0xff]
        %v1913 = vld [vmem:[#allocation10 + $0x1e18] sm:$0xff]
        %v1914 = vld [vmem:[#allocation10 + $0x1e20] sm:$0xff]
        %v1915 = vld [vmem:[#allocation10 + $0x1e28] sm:$0xff]
        %v1916 = vld [vmem:[#allocation10 + $0x1e30] sm:$0xff]
        %v1917 = vld [vmem:[#allocation10 + $0x1e38] sm:$0xff]
        %v1918 = vld [vmem:[#allocation10 + $0x1e40] sm:$0xff]
        %v1919 = vld [vmem:[#allocation10 + $0x1e48] sm:$0xff]
        %v1920 = vld [vmem:[#allocation10 + $0x1e50] sm:$0xff]
        %v1921 = vld [vmem:[#allocation10 + $0x1e58] sm:$0xff]
        %v1922 = vld [vmem:[#allocation10 + $0x1e60] sm:$0xff]
        %v1923 = vld [vmem:[#allocation10 + $0x1e68] sm:$0xff]
        %v1924 = vld [vmem:[#allocation10 + $0x1e70] sm:$0xff]
        %v1925 = vld [vmem:[#allocation10 + $0x1e78] sm:$0xff]
        %v1926 = vld [vmem:[#allocation10 + $0x1e80] sm:$0xff]
        %v1927 = vld [vmem:[#allocation10 + $0x1e88] sm:$0xff]
        %v1928 = vld [vmem:[#allocation10 + $0x1e90] sm:$0xff]
        %v1929 = vld [vmem:[#allocation10 + $0x1e98] sm:$0xff]
        %v1930 = vld [vmem:[#allocation10 + $0x1ea0] sm:$0xff]
        %v1931 = vld [vmem:[#allocation10 + $0x1ea8] sm:$0xff]
        %v1932 = vld [vmem:[#allocation10 + $0x1eb0] sm:$0xff]
        %v1933 = vld [vmem:[#allocation10 + $0x1eb8] sm:$0xff]
        %v1934 = vld [vmem:[#allocation10 + $0x1ec0] sm:$0xff]
        %v1935 = vld [vmem:[#allocation10 + $0x1ec8] sm:$0xff]
        %v1936 = vld [vmem:[#allocation10 + $0x1ed0] sm:$0xff]
        %v1937 = vld [vmem:[#allocation10 + $0x1ed8] sm:$0xff]
        %v1938 = vld [vmem:[#allocation10 + $0x1ee0] sm:$0xff]
        %v1939 = vld [vmem:[#allocation10 + $0x1ee8] sm:$0xff]
        %v1940 = vld [vmem:[#allocation10 + $0x1ef0] sm:$0xff]
        %v1941 = vld [vmem:[#allocation10 + $0x1ef8] sm:$0xff]
        %v1942 = vld [vmem:[#allocation10 + $0x1f00] sm:$0xff]
        %v1943 = vld [vmem:[#allocation10 + $0x1f08] sm:$0xff]
        %v1944 = vld [vmem:[#allocation10 + $0x1f10] sm:$0xff]
        %v1945 = vld [vmem:[#allocation10 + $0x1f18] sm:$0xff]
        %v1946 = vld [vmem:[#allocation10 + $0x1f20] sm:$0xff]
        %v1947 = vld [vmem:[#allocation10 + $0x1f28] sm:$0xff]
        %v1948 = vld [vmem:[#allocation10 + $0x1f30] sm:$0xff]
        %v1949 = vld [vmem:[#allocation10 + $0x1f38] sm:$0xff]
        %v1950 = vld [vmem:[#allocation10 + $0x1f40] sm:$0xff]
        %v1951 = vld [vmem:[#allocation10 + $0x1f48] sm:$0xff]
        %v1952 = vld [vmem:[#allocation10 + $0x1f50] sm:$0xff]
        %v1953 = vld [vmem:[#allocation10 + $0x1f58] sm:$0xff]
        %v1954 = vld [vmem:[#allocation10 + $0x1f60] sm:$0xff]
        %v1955 = vld [vmem:[#allocation10 + $0x1f68] sm:$0xff]
        %v1956 = vld [vmem:[#allocation10 + $0x1f70] sm:$0xff]
        %v1957 = vld [vmem:[#allocation10 + $0x1f78] sm:$0xff]
        %v1958 = vld [vmem:[#allocation10 + $0x1f80] sm:$0xff]
        %v1959 = vld [vmem:[#allocation10 + $0x1f88] sm:$0xff]
        %v1960 = vld [vmem:[#allocation10 + $0x1f90] sm:$0xff]
        %v1961 = vld [vmem:[#allocation10 + $0x1f98] sm:$0xff]
        %v1962 = vld [vmem:[#allocation10 + $0x1fa0] sm:$0xff]
        %v1963 = vld [vmem:[#allocation10 + $0x1fa8] sm:$0xff]
        %v1964 = vld [vmem:[#allocation10 + $0x1fb0] sm:$0xff]
        %v1965 = vld [vmem:[#allocation10 + $0x1fb8] sm:$0xff]
        %v1966 = vld [vmem:[#allocation10 + $0x1fc0] sm:$0xff]
        %v1967 = vld [vmem:[#allocation10 + $0x1fc8] sm:$0xff]
        %v1968 = vld [vmem:[#allocation10 + $0x1fd0] sm:$0xff]
        %v1969 = vld [vmem:[#allocation10 + $0x1fd8] sm:$0xff]
        %v1970 = vld [vmem:[#allocation10 + $0x1fe0] sm:$0xff]
        %v1971 = vld [vmem:[#allocation10 + $0x1fe8] sm:$0xff]
        %v1972 = vld [vmem:[#allocation10 + $0x1ff0] sm:$0xff]
        %v1973 = vld [vmem:[#allocation10 + $0x1ff8] sm:$0xff]
        %v1974 = vld [vmem:[#allocation12] sm:$0x1]
        %v1983 = vlaneseq
        %v1984 = vshrl.u32 %v1983, 7
        %v1985 = vsub.s32 0, %v1984
        %v1986 = vrot.slane %v942, %v1985
        %v1987 = vlaneseq
        %v1988 = vshrl.u32 %v1987, 7
        %v1989 = vsub.s32 1, %v1988
        %v1990 = vrot.slane %v942, %v1989
        %v1991 = vlaneseq
        %v1992 = vshrl.u32 %v1991, 7
        %v1993 = vsub.s32 2, %v1992
        %v1994 = vrot.slane %v942, %v1993
        %v1995 = vlaneseq
        %v1996 = vshrl.u32 %v1995, 7
        %v1997 = vsub.s32 3, %v1996
        %v1998 = vrot.slane %v942, %v1997
        %v1999 = vlaneseq
        %v2000 = vshrl.u32 %v1999, 7
        %v2001 = vsub.s32 4, %v2000
        %v2002 = vrot.slane %v942, %v2001
        %v2003 = vlaneseq
        %v2004 = vshrl.u32 %v2003, 7
        %v2005 = vsub.s32 5, %v2004
        %v2006 = vrot.slane %v942, %v2005
        %v2007 = vlaneseq
        %v2008 = vshrl.u32 %v2007, 7
        %v2009 = vsub.s32 6, %v2008
        %v2010 = vrot.slane %v942, %v2009
        %v2011 = vlaneseq
        %v2012 = vshrl.u32 %v2011, 7
        %v2013 = vsub.s32 7, %v2012
        %v2014 = vrot.slane %v942, %v2013
        %v2015 = vlaneseq
        %v2016 = vshrl.u32 %v2015, 7
        %v2017 = vsub.s32 0, %v2016
        %v2018 = vrot.slane %v943, %v2017
        %v2019 = vlaneseq
        %v2020 = vshrl.u32 %v2019, 7
        %v2021 = vsub.s32 1, %v2020
        %v2022 = vrot.slane %v943, %v2021
        %v2023 = vlaneseq
        %v2024 = vshrl.u32 %v2023, 7
        %v2025 = vsub.s32 2, %v2024
        %v2026 = vrot.slane %v943, %v2025
        %v2027 = vlaneseq
        %v2028 = vshrl.u32 %v2027, 7
        %v2029 = vsub.s32 3, %v2028
        %v2030 = vrot.slane %v943, %v2029
        %v2031 = vlaneseq
        %v2032 = vshrl.u32 %v2031, 7
        %v2033 = vsub.s32 4, %v2032
        %v2034 = vrot.slane %v943, %v2033
        %v2035 = vlaneseq
        %v2036 = vshrl.u32 %v2035, 7
        %v2037 = vsub.s32 5, %v2036
        %v2038 = vrot.slane %v943, %v2037
        %v2039 = vlaneseq
        %v2040 = vshrl.u32 %v2039, 7
        %v2041 = vsub.s32 6, %v2040
        %v2042 = vrot.slane %v943, %v2041
        %v2043 = vlaneseq
        %v2044 = vshrl.u32 %v2043, 7
        %v2045 = vsub.s32 7, %v2044
        %v2046 = vrot.slane %v943, %v2045
        %v2047 = vlaneseq
        %v2048 = vshrl.u32 %v2047, 7
        %v2049 = vsub.s32 0, %v2048
        %v2050 = vrot.slane %v944, %v2049
        %v2051 = vlaneseq
        %v2052 = vshrl.u32 %v2051, 7
        %v2053 = vsub.s32 1, %v2052
        %v2054 = vrot.slane %v944, %v2053
        %v2055 = vlaneseq
        %v2056 = vshrl.u32 %v2055, 7
        %v2057 = vsub.s32 2, %v2056
        %v2058 = vrot.slane %v944, %v2057
        %v2059 = vlaneseq
        %v2060 = vshrl.u32 %v2059, 7
        %v2061 = vsub.s32 3, %v2060
        %v2062 = vrot.slane %v944, %v2061
        %v2063 = vlaneseq
        %v2064 = vshrl.u32 %v2063, 7
        %v2065 = vsub.s32 4, %v2064
        %v2066 = vrot.slane %v944, %v2065
        %v2067 = vlaneseq
        %v2068 = vshrl.u32 %v2067, 7
        %v2069 = vsub.s32 5, %v2068
        %v2070 = vrot.slane %v944, %v2069
        %v2071 = vlaneseq
        %v2072 = vshrl.u32 %v2071, 7
        %v2073 = vsub.s32 6, %v2072
        %v2074 = vrot.slane %v944, %v2073
        %v2075 = vlaneseq
        %v2076 = vshrl.u32 %v2075, 7
        %v2077 = vsub.s32 7, %v2076
        %v2078 = vrot.slane %v944, %v2077
        %v2079 = vlaneseq
        %v2080 = vshrl.u32 %v2079, 7
        %v2081 = vsub.s32 0, %v2080
        %v2082 = vrot.slane %v945, %v2081
        %v2083 = vlaneseq
        %v2084 = vshrl.u32 %v2083, 7
        %v2085 = vsub.s32 1, %v2084
        %v2086 = vrot.slane %v945, %v2085
        %v2087 = vlaneseq
        %v2088 = vshrl.u32 %v2087, 7
        %v2089 = vsub.s32 2, %v2088
        %v2090 = vrot.slane %v945, %v2089
        %v2091 = vlaneseq
        %v2092 = vshrl.u32 %v2091, 7
        %v2093 = vsub.s32 3, %v2092
        %v2094 = vrot.slane %v945, %v2093
        %v2095 = vlaneseq
        %v2096 = vshrl.u32 %v2095, 7
        %v2097 = vsub.s32 4, %v2096
        %v2098 = vrot.slane %v945, %v2097
        %v2099 = vlaneseq
        %v2100 = vshrl.u32 %v2099, 7
        %v2101 = vsub.s32 5, %v2100
        %v2102 = vrot.slane %v945, %v2101
        %v2103 = vlaneseq
        %v2104 = vshrl.u32 %v2103, 7
        %v2105 = vsub.s32 6, %v2104
        %v2106 = vrot.slane %v945, %v2105
        %v2107 = vlaneseq
        %v2108 = vshrl.u32 %v2107, 7
        %v2109 = vsub.s32 7, %v2108
        %v2110 = vrot.slane %v945, %v2109
        %v2111 = vlaneseq
        %v2112 = vshrl.u32 %v2111, 7
        %v2113 = vsub.s32 0, %v2112
        %v2114 = vrot.slane %v946, %v2113
        %v2115 = vlaneseq
        %v2116 = vshrl.u32 %v2115, 7
        %v2117 = vsub.s32 1, %v2116
        %v2118 = vrot.slane %v946, %v2117
        %v2119 = vlaneseq
        %v2120 = vshrl.u32 %v2119, 7
        %v2121 = vsub.s32 2, %v2120
        %v2122 = vrot.slane %v946, %v2121
        %v2123 = vlaneseq
        %v2124 = vshrl.u32 %v2123, 7
        %v2125 = vsub.s32 3, %v2124
        %v2126 = vrot.slane %v946, %v2125
        %v2127 = vlaneseq
        %v2128 = vshrl.u32 %v2127, 7
        %v2129 = vsub.s32 4, %v2128
        %v2130 = vrot.slane %v946, %v2129
        %v2131 = vlaneseq
        %v2132 = vshrl.u32 %v2131, 7
        %v2133 = vsub.s32 5, %v2132
        %v2134 = vrot.slane %v946, %v2133
        %v2135 = vlaneseq
        %v2136 = vshrl.u32 %v2135, 7
        %v2137 = vsub.s32 6, %v2136
        %v2138 = vrot.slane %v946, %v2137
        %v2139 = vlaneseq
        %v2140 = vshrl.u32 %v2139, 7
        %v2141 = vsub.s32 7, %v2140
        %v2142 = vrot.slane %v946, %v2141
        %v2143 = vlaneseq
        %v2144 = vshrl.u32 %v2143, 7
        %v2145 = vsub.s32 0, %v2144
        %v2146 = vrot.slane %v947, %v2145
        %v2147 = vlaneseq
        %v2148 = vshrl.u32 %v2147, 7
        %v2149 = vsub.s32 1, %v2148
        %v2150 = vrot.slane %v947, %v2149
        %v2151 = vlaneseq
        %v2152 = vshrl.u32 %v2151, 7
        %v2153 = vsub.s32 2, %v2152
        %v2154 = vrot.slane %v947, %v2153
        %v2155 = vlaneseq
        %v2156 = vshrl.u32 %v2155, 7
        %v2157 = vsub.s32 3, %v2156
        %v2158 = vrot.slane %v947, %v2157
        %v2159 = vlaneseq
        %v2160 = vshrl.u32 %v2159, 7
        %v2161 = vsub.s32 4, %v2160
        %v2162 = vrot.slane %v947, %v2161
        %v2163 = vlaneseq
        %v2164 = vshrl.u32 %v2163, 7
        %v2165 = vsub.s32 5, %v2164
        %v2166 = vrot.slane %v947, %v2165
        %v2167 = vlaneseq
        %v2168 = vshrl.u32 %v2167, 7
        %v2169 = vsub.s32 6, %v2168
        %v2170 = vrot.slane %v947, %v2169
        %v2171 = vlaneseq
        %v2172 = vshrl.u32 %v2171, 7
        %v2173 = vsub.s32 7, %v2172
        %v2174 = vrot.slane %v947, %v2173
        %v2175 = vlaneseq
        %v2176 = vshrl.u32 %v2175, 7
        %v2177 = vsub.s32 0, %v2176
        %v2178 = vrot.slane %v948, %v2177
        %v2179 = vlaneseq
        %v2180 = vshrl.u32 %v2179, 7
        %v2181 = vsub.s32 1, %v2180
        %v2182 = vrot.slane %v948, %v2181
        %v2183 = vlaneseq
        %v2184 = vshrl.u32 %v2183, 7
        %v2185 = vsub.s32 2, %v2184
        %v2186 = vrot.slane %v948, %v2185
        %v2187 = vlaneseq
        %v2188 = vshrl.u32 %v2187, 7
        %v2189 = vsub.s32 3, %v2188
        %v2190 = vrot.slane %v948, %v2189
        %v2191 = vlaneseq
        %v2192 = vshrl.u32 %v2191, 7
        %v2193 = vsub.s32 4, %v2192
        %v2194 = vrot.slane %v948, %v2193
        %v2195 = vlaneseq
        %v2196 = vshrl.u32 %v2195, 7
        %v2197 = vsub.s32 5, %v2196
        %v2198 = vrot.slane %v948, %v2197
        %v2199 = vlaneseq
        %v2200 = vshrl.u32 %v2199, 7
        %v2201 = vsub.s32 6, %v2200
        %v2202 = vrot.slane %v948, %v2201
        %v2203 = vlaneseq
        %v2204 = vshrl.u32 %v2203, 7
        %v2205 = vsub.s32 7, %v2204
        %v2206 = vrot.slane %v948, %v2205
        %v2207 = vlaneseq
        %v2208 = vshrl.u32 %v2207, 7
        %v2209 = vsub.s32 0, %v2208
        %v2210 = vrot.slane %v949, %v2209
        %v2211 = vlaneseq
        %v2212 = vshrl.u32 %v2211, 7
        %v2213 = vsub.s32 1, %v2212
        %v2214 = vrot.slane %v949, %v2213
        %v2215 = vlaneseq
        %v2216 = vshrl.u32 %v2215, 7
        %v2217 = vsub.s32 2, %v2216
        %v2218 = vrot.slane %v949, %v2217
        %v2219 = vlaneseq
        %v2220 = vshrl.u32 %v2219, 7
        %v2221 = vsub.s32 3, %v2220
        %v2222 = vrot.slane %v949, %v2221
        %v2223 = vlaneseq
        %v2224 = vshrl.u32 %v2223, 7
        %v2225 = vsub.s32 4, %v2224
        %v2226 = vrot.slane %v949, %v2225
        %v2227 = vlaneseq
        %v2228 = vshrl.u32 %v2227, 7
        %v2229 = vsub.s32 5, %v2228
        %v2230 = vrot.slane %v949, %v2229
        %v2231 = vlaneseq
        %v2232 = vshrl.u32 %v2231, 7
        %v2233 = vsub.s32 6, %v2232
        %v2234 = vrot.slane %v949, %v2233
        %v2235 = vlaneseq
        %v2236 = vshrl.u32 %v2235, 7
        %v2237 = vsub.s32 7, %v2236
        %v2238 = vrot.slane %v949, %v2237
        %2303 = vmatprep.subr.mxu0 0.0
        %2304 = vmatpush1.msra.mxu0 %v965
        %2305 = vmatprep.subr.mxu0 0.0
        %2306 = vmatpush1.msra.mxu0 %v964
        %2307 = vmatprep.subr.mxu0 0.0
        %2308 = vmatpush1.msra.mxu0 %v963
        %2309 = vmatprep.subr.mxu0 0.0
        %2310 = vmatpush1.msra.mxu0 %v962
        %2311 = vmatprep.subr.mxu0 0.0
        %2312 = vmatpush1.msra.mxu0 %v961
        %2313 = vmatprep.subr.mxu0 0.0
        %2314 = vmatpush1.msra.mxu0 %v960
        %2315 = vmatprep.subr.mxu0 0.0
        %2316 = vmatpush1.msra.mxu0 %v959
        %2317 = vmatprep.subr.mxu0 0.0
        %2318 = vmatpush1.msra.mxu0 %v958
        %2319 = vmatprep.subr.mxu0 0.0
        %2320 = vmatpush1.msra.mxu0 %v957
        %2321 = vmatprep.subr.mxu0 0.0
        %2322 = vmatpush1.msra.mxu0 %v956
        %2323 = vmatprep.subr.mxu0 0.0
        %2324 = vmatpush1.msra.mxu0 %v955
        %2325 = vmatprep.subr.mxu0 0.0
        %2326 = vmatpush1.msra.mxu0 %v954
        %2327 = vmatprep.subr.mxu0 0.0
        %2328 = vmatpush1.msra.mxu0 %v953
        %2329 = vmatprep.subr.mxu0 0.0
        %2330 = vmatpush1.msra.mxu0 %v952
        %2331 = vmatprep.subr.mxu0 0.0
        %2332 = vmatpush1.msra.mxu0 %v951
        %2333 = vmatprep.subr.mxu0 0.0
        %2334 = vmatpush1.msra.mxu0 %v950
        %2335 = vmatprep.subr.mxu0 0.0
        %2336 = vmatpush2.msra.mxu0 %v981
        %2337 = vmatprep.subr.mxu0 0.0
        %2338 = vmatpush2.msra.mxu0 %v980
        %2339 = vmatprep.subr.mxu0 0.0
        %2340 = vmatpush2.msra.mxu0 %v979
        %2341 = vmatprep.subr.mxu0 0.0
        %2342 = vmatpush2.msra.mxu0 %v978
        %2343 = vmatprep.subr.mxu0 0.0
        %2344 = vmatpush2.msra.mxu0 %v977
        %2345 = vmatprep.subr.mxu0 0.0
        %2346 = vmatpush2.msra.mxu0 %v976
        %2347 = vmatprep.subr.mxu0 0.0
        %2348 = vmatpush2.msra.mxu0 %v975
        %2349 = vmatprep.subr.mxu0 0.0
        %2350 = vmatpush2.msra.mxu0 %v974
        %2351 = vmatprep.subr.mxu0 0.0
        %2352 = vmatpush2.msra.mxu0 %v973
        %2353 = vmatprep.subr.mxu0 0.0
        %2354 = vmatpush2.msra.mxu0 %v972
        %2355 = vmatprep.subr.mxu0 0.0
        %2356 = vmatpush2.msra.mxu0 %v971
        %2357 = vmatprep.subr.mxu0 0.0
        %2358 = vmatpush2.msra.mxu0 %v970
        %2359 = vmatprep.subr.mxu0 0.0
        %2360 = vmatpush2.msra.mxu0 %v969
        %2361 = vmatprep.subr.mxu0 0.0
        %2362 = vmatpush2.msra.mxu0 %v968
        %2363 = vmatprep.subr.mxu0 0.0
        %2364 = vmatpush2.msra.mxu0 %v967
        %2365 = vmatprep.subr.mxu0 0.0
        %2366 = vmatpush2.msra.mxu0 %v966
        %2367 = vmatprep.mubr.f32.mxu0 %v1990
        %2368 = vmatmul.mubr.f32.gmra.mxu0 %v1986
        %v2369 = vpop.f32.mrf.mxu0
        %v2370 = vadd.f32 %v1974, %v2369
        %v2371 = vpop.f32.mrf.mxu0
        %2372 = vdwg.mxu0
        %2373 = vmatprep.subr.mxu0 0.0
        %2374 = vmatpush1.msra.mxu0 %v997
        %2375 = vmatprep.subr.mxu0 0.0
        %2376 = vmatpush1.msra.mxu0 %v996
        %2377 = vmatprep.subr.mxu0 0.0
        %2378 = vmatpush1.msra.mxu0 %v995
        %2379 = vmatprep.subr.mxu0 0.0
        %2380 = vmatpush1.msra.mxu0 %v994
        %2381 = vmatprep.subr.mxu0 0.0
        %2382 = vmatpush1.msra.mxu0 %v993
        %2383 = vmatprep.subr.mxu0 0.0
        %2384 = vmatpush1.msra.mxu0 %v992
        %2385 = vmatprep.subr.mxu0 0.0
        %2386 = vmatpush1.msra.mxu0 %v991
        %2387 = vmatprep.subr.mxu0 0.0
        %2388 = vmatpush1.msra.mxu0 %v990
        %2389 = vmatprep.subr.mxu0 0.0
        %2390 = vmatpush1.msra.mxu0 %v989
        %2391 = vmatprep.subr.mxu0 0.0
        %2392 = vmatpush1.msra.mxu0 %v988
        %2393 = vmatprep.subr.mxu0 0.0
        %2394 = vmatpush1.msra.mxu0 %v987
        %2395 = vmatprep.subr.mxu0 0.0
        %2396 = vmatpush1.msra.mxu0 %v986
        %2397 = vmatprep.subr.mxu0 0.0
        %2398 = vmatpush1.msra.mxu0 %v985
        %2399 = vmatprep.subr.mxu0 0.0
        %2400 = vmatpush1.msra.mxu0 %v984
        %2401 = vmatprep.subr.mxu0 0.0
        %2402 = vmatpush1.msra.mxu0 %v983
        %2403 = vmatprep.subr.mxu0 0.0
        %2404 = vmatpush1.msra.mxu0 %v982
        %2405 = vmatprep.subr.mxu0 0.0
        %2406 = vmatpush2.msra.mxu0 %v1013
        %2407 = vmatprep.subr.mxu0 0.0
        %2408 = vmatpush2.msra.mxu0 %v1012
        %2409 = vmatprep.subr.mxu0 0.0
        %2410 = vmatpush2.msra.mxu0 %v1011
        %2411 = vmatprep.subr.mxu0 0.0
        %2412 = vmatpush2.msra.mxu0 %v1010
        %2413 = vmatprep.subr.mxu0 0.0
        %2414 = vmatpush2.msra.mxu0 %v1009
        %2415 = vmatprep.subr.mxu0 0.0
        %2416 = vmatpush2.msra.mxu0 %v1008
        %2417 = vmatprep.subr.mxu0 0.0
        %2418 = vmatpush2.msra.mxu0 %v1007
        %2419 = vmatprep.subr.mxu0 0.0
        %2420 = vmatpush2.msra.mxu0 %v1006
        %2421 = vmatprep.subr.mxu0 0.0
        %2422 = vmatpush2.msra.mxu0 %v1005
        %2423 = vmatprep.subr.mxu0 0.0
        %2424 = vmatpush2.msra.mxu0 %v1004
        %2425 = vmatprep.subr.mxu0 0.0
        %2426 = vmatpush2.msra.mxu0 %v1003
        %2427 = vmatprep.subr.mxu0 0.0
        %2428 = vmatpush2.msra.mxu0 %v1002
        %2429 = vmatprep.subr.mxu0 0.0
        %2430 = vmatpush2.msra.mxu0 %v1001
        %2431 = vmatprep.subr.mxu0 0.0
        %2432 = vmatpush2.msra.mxu0 %v1000
        %2433 = vmatprep.subr.mxu0 0.0
        %2434 = vmatpush2.msra.mxu0 %v999
        %2435 = vmatprep.subr.mxu0 0.0
        %2436 = vmatpush2.msra.mxu0 %v998
        %2437 = vmatprep.mubr.f32.mxu0 %v1998
        %2438 = vmatmul.mubr.f32.gmra.mxu0 %v1994
        %v2439 = vpop.f32.mrf.mxu0
        %v2440 = vadd.f32 %v2370, %v2439
        %v2441 = vpop.f32.mrf.mxu0
        %2442 = vdwg.mxu0
        %2443 = vmatprep.subr.mxu0 0.0
        %2444 = vmatpush1.msra.mxu0 %v1029
        %2445 = vmatprep.subr.mxu0 0.0
        %2446 = vmatpush1.msra.mxu0 %v1028
        %2447 = vmatprep.subr.mxu0 0.0
        %2448 = vmatpush1.msra.mxu0 %v1027
        %2449 = vmatprep.subr.mxu0 0.0
        %2450 = vmatpush1.msra.mxu0 %v1026
        %2451 = vmatprep.subr.mxu0 0.0
        %2452 = vmatpush1.msra.mxu0 %v1025
        %2453 = vmatprep.subr.mxu0 0.0
        %2454 = vmatpush1.msra.mxu0 %v1024
        %2455 = vmatprep.subr.mxu0 0.0
        %2456 = vmatpush1.msra.mxu0 %v1023
        %2457 = vmatprep.subr.mxu0 0.0
        %2458 = vmatpush1.msra.mxu0 %v1022
        %2459 = vmatprep.subr.mxu0 0.0
        %2460 = vmatpush1.msra.mxu0 %v1021
        %2461 = vmatprep.subr.mxu0 0.0
        %2462 = vmatpush1.msra.mxu0 %v1020
        %2463 = vmatprep.subr.mxu0 0.0
        %2464 = vmatpush1.msra.mxu0 %v1019
        %2465 = vmatprep.subr.mxu0 0.0
        %2466 = vmatpush1.msra.mxu0 %v1018
        %2467 = vmatprep.subr.mxu0 0.0
        %2468 = vmatpush1.msra.mxu0 %v1017
        %2469 = vmatprep.subr.mxu0 0.0
        %2470 = vmatpush1.msra.mxu0 %v1016
        %2471 = vmatprep.subr.mxu0 0.0
        %2472 = vmatpush1.msra.mxu0 %v1015
        %2473 = vmatprep.subr.mxu0 0.0
        %2474 = vmatpush1.msra.mxu0 %v1014
        %2475 = vmatprep.subr.mxu0 0.0
        %2476 = vmatpush2.msra.mxu0 %v1045
        %2477 = vmatprep.subr.mxu0 0.0
        %2478 = vmatpush2.msra.mxu0 %v1044
        %2479 = vmatprep.subr.mxu0 0.0
        %2480 = vmatpush2.msra.mxu0 %v1043
        %2481 = vmatprep.subr.mxu0 0.0
        %2482 = vmatpush2.msra.mxu0 %v1042
        %2483 = vmatprep.subr.mxu0 0.0
        %2484 = vmatpush2.msra.mxu0 %v1041
        %2485 = vmatprep.subr.mxu0 0.0
        %2486 = vmatpush2.msra.mxu0 %v1040
        %2487 = vmatprep.subr.mxu0 0.0
        %2488 = vmatpush2.msra.mxu0 %v1039
        %2489 = vmatprep.subr.mxu0 0.0
        %2490 = vmatpush2.msra.mxu0 %v1038
        %2491 = vmatprep.subr.mxu0 0.0
        %2492 = vmatpush2.msra.mxu0 %v1037
        %2493 = vmatprep.subr.mxu0 0.0
        %2494 = vmatpush2.msra.mxu0 %v1036
        %2495 = vmatprep.subr.mxu0 0.0
        %2496 = vmatpush2.msra.mxu0 %v1035
        %2497 = vmatprep.subr.mxu0 0.0
        %2498 = vmatpush2.msra.mxu0 %v1034
        %2499 = vmatprep.subr.mxu0 0.0
        %2500 = vmatpush2.msra.mxu0 %v1033
        %2501 = vmatprep.subr.mxu0 0.0
        %2502 = vmatpush2.msra.mxu0 %v1032
        %2503 = vmatprep.subr.mxu0 0.0
        %2504 = vmatpush2.msra.mxu0 %v1031
        %2505 = vmatprep.subr.mxu0 0.0
        %2506 = vmatpush2.msra.mxu0 %v1030
        %2507 = vmatprep.mubr.f32.mxu0 %v2006
        %2508 = vmatmul.mubr.f32.gmra.mxu0 %v2002
        %v2509 = vpop.f32.mrf.mxu0
        %v2510 = vadd.f32 %v2440, %v2509
        %v2511 = vpop.f32.mrf.mxu0
        %2512 = vdwg.mxu0
        %2513 = vmatprep.subr.mxu0 0.0
        %2514 = vmatpush1.msra.mxu0 %v1061
        %2515 = vmatprep.subr.mxu0 0.0
        %2516 = vmatpush1.msra.mxu0 %v1060
        %2517 = vmatprep.subr.mxu0 0.0
        %2518 = vmatpush1.msra.mxu0 %v1059
        %2519 = vmatprep.subr.mxu0 0.0
        %2520 = vmatpush1.msra.mxu0 %v1058
        %2521 = vmatprep.subr.mxu0 0.0
        %2522 = vmatpush1.msra.mxu0 %v1057
        %2523 = vmatprep.subr.mxu0 0.0
        %2524 = vmatpush1.msra.mxu0 %v1056
        %2525 = vmatprep.subr.mxu0 0.0
        %2526 = vmatpush1.msra.mxu0 %v1055
        %2527 = vmatprep.subr.mxu0 0.0
        %2528 = vmatpush1.msra.mxu0 %v1054
        %2529 = vmatprep.subr.mxu0 0.0
        %2530 = vmatpush1.msra.mxu0 %v1053
        %2531 = vmatprep.subr.mxu0 0.0
        %2532 = vmatpush1.msra.mxu0 %v1052
        %2533 = vmatprep.subr.mxu0 0.0
        %2534 = vmatpush1.msra.mxu0 %v1051
        %2535 = vmatprep.subr.mxu0 0.0
        %2536 = vmatpush1.msra.mxu0 %v1050
        %2537 = vmatprep.subr.mxu0 0.0
        %2538 = vmatpush1.msra.mxu0 %v1049
        %2539 = vmatprep.subr.mxu0 0.0
        %2540 = vmatpush1.msra.mxu0 %v1048
        %2541 = vmatprep.subr.mxu0 0.0
        %2542 = vmatpush1.msra.mxu0 %v1047
        %2543 = vmatprep.subr.mxu0 0.0
        %2544 = vmatpush1.msra.mxu0 %v1046
        %2545 = vmatprep.subr.mxu0 0.0
        %2546 = vmatpush2.msra.mxu0 %v1077
        %2547 = vmatprep.subr.mxu0 0.0
        %2548 = vmatpush2.msra.mxu0 %v1076
        %2549 = vmatprep.subr.mxu0 0.0
        %2550 = vmatpush2.msra.mxu0 %v1075
        %2551 = vmatprep.subr.mxu0 0.0
        %2552 = vmatpush2.msra.mxu0 %v1074
        %2553 = vmatprep.subr.mxu0 0.0
        %2554 = vmatpush2.msra.mxu0 %v1073
        %2555 = vmatprep.subr.mxu0 0.0
        %2556 = vmatpush2.msra.mxu0 %v1072
        %2557 = vmatprep.subr.mxu0 0.0
        %2558 = vmatpush2.msra.mxu0 %v1071
        %2559 = vmatprep.subr.mxu0 0.0
        %2560 = vmatpush2.msra.mxu0 %v1070
        %2561 = vmatprep.subr.mxu0 0.0
        %2562 = vmatpush2.msra.mxu0 %v1069
        %2563 = vmatprep.subr.mxu0 0.0
        %2564 = vmatpush2.msra.mxu0 %v1068
        %2565 = vmatprep.subr.mxu0 0.0
        %2566 = vmatpush2.msra.mxu0 %v1067
        %2567 = vmatprep.subr.mxu0 0.0
        %2568 = vmatpush2.msra.mxu0 %v1066
        %2569 = vmatprep.subr.mxu0 0.0
        %2570 = vmatpush2.msra.mxu0 %v1065
        %2571 = vmatprep.subr.mxu0 0.0
        %2572 = vmatpush2.msra.mxu0 %v1064
        %2573 = vmatprep.subr.mxu0 0.0
        %2574 = vmatpush2.msra.mxu0 %v1063
        %2575 = vmatprep.subr.mxu0 0.0
        %2576 = vmatpush2.msra.mxu0 %v1062
        %2577 = vmatprep.mubr.f32.mxu0 %v2014
        %2578 = vmatmul.mubr.f32.gmra.mxu0 %v2010
        %v2579 = vpop.f32.mrf.mxu0
        %v2580 = vadd.f32 %v2510, %v2579
        %v2581 = vpop.f32.mrf.mxu0
        %2582 = vdwg.mxu0
        %2583 = vmatprep.subr.mxu0 0.0
        %2584 = vmatpush1.msra.mxu0 %v1093
        %2585 = vmatprep.subr.mxu0 0.0
        %2586 = vmatpush1.msra.mxu0 %v1092
        %2587 = vmatprep.subr.mxu0 0.0
        %2588 = vmatpush1.msra.mxu0 %v1091
        %2589 = vmatprep.subr.mxu0 0.0
        %2590 = vmatpush1.msra.mxu0 %v1090
        %2591 = vmatprep.subr.mxu0 0.0
        %2592 = vmatpush1.msra.mxu0 %v1089
        %2593 = vmatprep.subr.mxu0 0.0
        %2594 = vmatpush1.msra.mxu0 %v1088
        %2595 = vmatprep.subr.mxu0 0.0
        %2596 = vmatpush1.msra.mxu0 %v1087
        %2597 = vmatprep.subr.mxu0 0.0
        %2598 = vmatpush1.msra.mxu0 %v1086
        %2599 = vmatprep.subr.mxu0 0.0
        %2600 = vmatpush1.msra.mxu0 %v1085
        %2601 = vmatprep.subr.mxu0 0.0
        %2602 = vmatpush1.msra.mxu0 %v1084
        %2603 = vmatprep.subr.mxu0 0.0
        %2604 = vmatpush1.msra.mxu0 %v1083
        %2605 = vmatprep.subr.mxu0 0.0
        %2606 = vmatpush1.msra.mxu0 %v1082
        %2607 = vmatprep.subr.mxu0 0.0
        %2608 = vmatpush1.msra.mxu0 %v1081
        %2609 = vmatprep.subr.mxu0 0.0
        %2610 = vmatpush1.msra.mxu0 %v1080
        %2611 = vmatprep.subr.mxu0 0.0
        %2612 = vmatpush1.msra.mxu0 %v1079
        %2613 = vmatprep.subr.mxu0 0.0
        %2614 = vmatpush1.msra.mxu0 %v1078
        %2615 = vmatprep.subr.mxu0 0.0
        %2616 = vmatpush2.msra.mxu0 %v1109
        %2617 = vmatprep.subr.mxu0 0.0
        %2618 = vmatpush2.msra.mxu0 %v1108
        %2619 = vmatprep.subr.mxu0 0.0
        %2620 = vmatpush2.msra.mxu0 %v1107
        %2621 = vmatprep.subr.mxu0 0.0
        %2622 = vmatpush2.msra.mxu0 %v1106
        %2623 = vmatprep.subr.mxu0 0.0
        %2624 = vmatpush2.msra.mxu0 %v1105
        %2625 = vmatprep.subr.mxu0 0.0
        %2626 = vmatpush2.msra.mxu0 %v1104
        %2627 = vmatprep.subr.mxu0 0.0
        %2628 = vmatpush2.msra.mxu0 %v1103
        %2629 = vmatprep.subr.mxu0 0.0
        %2630 = vmatpush2.msra.mxu0 %v1102
        %2631 = vmatprep.subr.mxu0 0.0
        %2632 = vmatpush2.msra.mxu0 %v1101
        %2633 = vmatprep.subr.mxu0 0.0
        %2634 = vmatpush2.msra.mxu0 %v1100
        %2635 = vmatprep.subr.mxu0 0.0
        %2636 = vmatpush2.msra.mxu0 %v1099
        %2637 = vmatprep.subr.mxu0 0.0
        %2638 = vmatpush2.msra.mxu0 %v1098
        %2639 = vmatprep.subr.mxu0 0.0
        %2640 = vmatpush2.msra.mxu0 %v1097
        %2641 = vmatprep.subr.mxu0 0.0
        %2642 = vmatpush2.msra.mxu0 %v1096
        %2643 = vmatprep.subr.mxu0 0.0
        %2644 = vmatpush2.msra.mxu0 %v1095
        %2645 = vmatprep.subr.mxu0 0.0
        %2646 = vmatpush2.msra.mxu0 %v1094
        %2647 = vmatprep.mubr.f32.mxu0 %v2022
        %2648 = vmatmul.mubr.f32.gmra.mxu0 %v2018
        %v2649 = vpop.f32.mrf.mxu0
        %v2650 = vadd.f32 %v2580, %v2649
        %v2651 = vpop.f32.mrf.mxu0
        %2652 = vdwg.mxu0
        %2653 = vmatprep.subr.mxu0 0.0
        %2654 = vmatpush1.msra.mxu0 %v1125
        %2655 = vmatprep.subr.mxu0 0.0
        %2656 = vmatpush1.msra.mxu0 %v1124
        %2657 = vmatprep.subr.mxu0 0.0
        %2658 = vmatpush1.msra.mxu0 %v1123
        %2659 = vmatprep.subr.mxu0 0.0
        %2660 = vmatpush1.msra.mxu0 %v1122
        %2661 = vmatprep.subr.mxu0 0.0
        %2662 = vmatpush1.msra.mxu0 %v1121
        %2663 = vmatprep.subr.mxu0 0.0
        %2664 = vmatpush1.msra.mxu0 %v1120
        %2665 = vmatprep.subr.mxu0 0.0
        %2666 = vmatpush1.msra.mxu0 %v1119
        %2667 = vmatprep.subr.mxu0 0.0
        %2668 = vmatpush1.msra.mxu0 %v1118
        %2669 = vmatprep.subr.mxu0 0.0
        %2670 = vmatpush1.msra.mxu0 %v1117
        %2671 = vmatprep.subr.mxu0 0.0
        %2672 = vmatpush1.msra.mxu0 %v1116
        %2673 = vmatprep.subr.mxu0 0.0
        %2674 = vmatpush1.msra.mxu0 %v1115
        %2675 = vmatprep.subr.mxu0 0.0
        %2676 = vmatpush1.msra.mxu0 %v1114
        %2677 = vmatprep.subr.mxu0 0.0
        %2678 = vmatpush1.msra.mxu0 %v1113
        %2679 = vmatprep.subr.mxu0 0.0
        %2680 = vmatpush1.msra.mxu0 %v1112
        %2681 = vmatprep.subr.mxu0 0.0
        %2682 = vmatpush1.msra.mxu0 %v1111
        %2683 = vmatprep.subr.mxu0 0.0
        %2684 = vmatpush1.msra.mxu0 %v1110
        %2685 = vmatprep.subr.mxu0 0.0
        %2686 = vmatpush2.msra.mxu0 %v1141
        %2687 = vmatprep.subr.mxu0 0.0
        %2688 = vmatpush2.msra.mxu0 %v1140
        %2689 = vmatprep.subr.mxu0 0.0
        %2690 = vmatpush2.msra.mxu0 %v1139
        %2691 = vmatprep.subr.mxu0 0.0
        %2692 = vmatpush2.msra.mxu0 %v1138
        %2693 = vmatprep.subr.mxu0 0.0
        %2694 = vmatpush2.msra.mxu0 %v1137
        %2695 = vmatprep.subr.mxu0 0.0
        %2696 = vmatpush2.msra.mxu0 %v1136
        %2697 = vmatprep.subr.mxu0 0.0
        %2698 = vmatpush2.msra.mxu0 %v1135
        %2699 = vmatprep.subr.mxu0 0.0
        %2700 = vmatpush2.msra.mxu0 %v1134
        %2701 = vmatprep.subr.mxu0 0.0
        %2702 = vmatpush2.msra.mxu0 %v1133
        %2703 = vmatprep.subr.mxu0 0.0
        %2704 = vmatpush2.msra.mxu0 %v1132
        %2705 = vmatprep.subr.mxu0 0.0
        %2706 = vmatpush2.msra.mxu0 %v1131
        %2707 = vmatprep.subr.mxu0 0.0
        %2708 = vmatpush2.msra.mxu0 %v1130
        %2709 = vmatprep.subr.mxu0 0.0
        %2710 = vmatpush2.msra.mxu0 %v1129
        %2711 = vmatprep.subr.mxu0 0.0
        %2712 = vmatpush2.msra.mxu0 %v1128
        %2713 = vmatprep.subr.mxu0 0.0
        %2714 = vmatpush2.msra.mxu0 %v1127
        %2715 = vmatprep.subr.mxu0 0.0
        %2716 = vmatpush2.msra.mxu0 %v1126
        %2717 = vmatprep.mubr.f32.mxu0 %v2030
        %2718 = vmatmul.mubr.f32.gmra.mxu0 %v2026
        %v2719 = vpop.f32.mrf.mxu0
        %v2720 = vadd.f32 %v2650, %v2719
        %v2721 = vpop.f32.mrf.mxu0
        %2722 = vdwg.mxu0
        %2723 = vmatprep.subr.mxu0 0.0
        %2724 = vmatpush1.msra.mxu0 %v1157
        %2725 = vmatprep.subr.mxu0 0.0
        %2726 = vmatpush1.msra.mxu0 %v1156
        %2727 = vmatprep.subr.mxu0 0.0
        %2728 = vmatpush1.msra.mxu0 %v1155
        %2729 = vmatprep.subr.mxu0 0.0
        %2730 = vmatpush1.msra.mxu0 %v1154
        %2731 = vmatprep.subr.mxu0 0.0
        %2732 = vmatpush1.msra.mxu0 %v1153
        %2733 = vmatprep.subr.mxu0 0.0
        %2734 = vmatpush1.msra.mxu0 %v1152
        %2735 = vmatprep.subr.mxu0 0.0
        %2736 = vmatpush1.msra.mxu0 %v1151
        %2737 = vmatprep.subr.mxu0 0.0
        %2738 = vmatpush1.msra.mxu0 %v1150
        %2739 = vmatprep.subr.mxu0 0.0
        %2740 = vmatpush1.msra.mxu0 %v1149
        %2741 = vmatprep.subr.mxu0 0.0
        %2742 = vmatpush1.msra.mxu0 %v1148
        %2743 = vmatprep.subr.mxu0 0.0
        %2744 = vmatpush1.msra.mxu0 %v1147
        %2745 = vmatprep.subr.mxu0 0.0
        %2746 = vmatpush1.msra.mxu0 %v1146
        %2747 = vmatprep.subr.mxu0 0.0
        %2748 = vmatpush1.msra.mxu0 %v1145
        %2749 = vmatprep.subr.mxu0 0.0
        %2750 = vmatpush1.msra.mxu0 %v1144
        %2751 = vmatprep.subr.mxu0 0.0
        %2752 = vmatpush1.msra.mxu0 %v1143
        %2753 = vmatprep.subr.mxu0 0.0
        %2754 = vmatpush1.msra.mxu0 %v1142
        %2755 = vmatprep.subr.mxu0 0.0
        %2756 = vmatpush2.msra.mxu0 %v1173
        %2757 = vmatprep.subr.mxu0 0.0
        %2758 = vmatpush2.msra.mxu0 %v1172
        %2759 = vmatprep.subr.mxu0 0.0
        %2760 = vmatpush2.msra.mxu0 %v1171
        %2761 = vmatprep.subr.mxu0 0.0
        %2762 = vmatpush2.msra.mxu0 %v1170
        %2763 = vmatprep.subr.mxu0 0.0
        %2764 = vmatpush2.msra.mxu0 %v1169
        %2765 = vmatprep.subr.mxu0 0.0
        %2766 = vmatpush2.msra.mxu0 %v1168
        %2767 = vmatprep.subr.mxu0 0.0
        %2768 = vmatpush2.msra.mxu0 %v1167
        %2769 = vmatprep.subr.mxu0 0.0
        %2770 = vmatpush2.msra.mxu0 %v1166
        %2771 = vmatprep.subr.mxu0 0.0
        %2772 = vmatpush2.msra.mxu0 %v1165
        %2773 = vmatprep.subr.mxu0 0.0
        %2774 = vmatpush2.msra.mxu0 %v1164
        %2775 = vmatprep.subr.mxu0 0.0
        %2776 = vmatpush2.msra.mxu0 %v1163
        %2777 = vmatprep.subr.mxu0 0.0
        %2778 = vmatpush2.msra.mxu0 %v1162
        %2779 = vmatprep.subr.mxu0 0.0
        %2780 = vmatpush2.msra.mxu0 %v1161
        %2781 = vmatprep.subr.mxu0 0.0
        %2782 = vmatpush2.msra.mxu0 %v1160
        %2783 = vmatprep.subr.mxu0 0.0
        %2784 = vmatpush2.msra.mxu0 %v1159
        %2785 = vmatprep.subr.mxu0 0.0
        %2786 = vmatpush2.msra.mxu0 %v1158
        %2787 = vmatprep.mubr.f32.mxu0 %v2038
        %2788 = vmatmul.mubr.f32.gmra.mxu0 %v2034
        %v2789 = vpop.f32.mrf.mxu0
        %v2790 = vadd.f32 %v2720, %v2789
        %v2791 = vpop.f32.mrf.mxu0
        %2792 = vdwg.mxu0
        %2793 = vmatprep.subr.mxu0 0.0
        %2794 = vmatpush1.msra.mxu0 %v1189
        %2795 = vmatprep.subr.mxu0 0.0
        %2796 = vmatpush1.msra.mxu0 %v1188
        %2797 = vmatprep.subr.mxu0 0.0
        %2798 = vmatpush1.msra.mxu0 %v1187
        %2799 = vmatprep.subr.mxu0 0.0
        %2800 = vmatpush1.msra.mxu0 %v1186
        %2801 = vmatprep.subr.mxu0 0.0
        %2802 = vmatpush1.msra.mxu0 %v1185
        %2803 = vmatprep.subr.mxu0 0.0
        %2804 = vmatpush1.msra.mxu0 %v1184
        %2805 = vmatprep.subr.mxu0 0.0
        %2806 = vmatpush1.msra.mxu0 %v1183
        %2807 = vmatprep.subr.mxu0 0.0
        %2808 = vmatpush1.msra.mxu0 %v1182
        %2809 = vmatprep.subr.mxu0 0.0
        %2810 = vmatpush1.msra.mxu0 %v1181
        %2811 = vmatprep.subr.mxu0 0.0
        %2812 = vmatpush1.msra.mxu0 %v1180
        %2813 = vmatprep.subr.mxu0 0.0
        %2814 = vmatpush1.msra.mxu0 %v1179
        %2815 = vmatprep.subr.mxu0 0.0
        %2816 = vmatpush1.msra.mxu0 %v1178
        %2817 = vmatprep.subr.mxu0 0.0
        %2818 = vmatpush1.msra.mxu0 %v1177
        %2819 = vmatprep.subr.mxu0 0.0
        %2820 = vmatpush1.msra.mxu0 %v1176
        %2821 = vmatprep.subr.mxu0 0.0
        %2822 = vmatpush1.msra.mxu0 %v1175
        %2823 = vmatprep.subr.mxu0 0.0
        %2824 = vmatpush1.msra.mxu0 %v1174
        %2825 = vmatprep.subr.mxu0 0.0
        %2826 = vmatpush2.msra.mxu0 %v1205
        %2827 = vmatprep.subr.mxu0 0.0
        %2828 = vmatpush2.msra.mxu0 %v1204
        %2829 = vmatprep.subr.mxu0 0.0
        %2830 = vmatpush2.msra.mxu0 %v1203
        %2831 = vmatprep.subr.mxu0 0.0
        %2832 = vmatpush2.msra.mxu0 %v1202
        %2833 = vmatprep.subr.mxu0 0.0
        %2834 = vmatpush2.msra.mxu0 %v1201
        %2835 = vmatprep.subr.mxu0 0.0
        %2836 = vmatpush2.msra.mxu0 %v1200
        %2837 = vmatprep.subr.mxu0 0.0
        %2838 = vmatpush2.msra.mxu0 %v1199
        %2839 = vmatprep.subr.mxu0 0.0
        %2840 = vmatpush2.msra.mxu0 %v1198
        %2841 = vmatprep.subr.mxu0 0.0
        %2842 = vmatpush2.msra.mxu0 %v1197
        %2843 = vmatprep.subr.mxu0 0.0
        %2844 = vmatpush2.msra.mxu0 %v1196
        %2845 = vmatprep.subr.mxu0 0.0
        %2846 = vmatpush2.msra.mxu0 %v1195
        %2847 = vmatprep.subr.mxu0 0.0
        %2848 = vmatpush2.msra.mxu0 %v1194
        %2849 = vmatprep.subr.mxu0 0.0
        %2850 = vmatpush2.msra.mxu0 %v1193
        %2851 = vmatprep.subr.mxu0 0.0
        %2852 = vmatpush2.msra.mxu0 %v1192
        %2853 = vmatprep.subr.mxu0 0.0
        %2854 = vmatpush2.msra.mxu0 %v1191
        %2855 = vmatprep.subr.mxu0 0.0
        %2856 = vmatpush2.msra.mxu0 %v1190
        %2857 = vmatprep.mubr.f32.mxu0 %v2046
        %2858 = vmatmul.mubr.f32.gmra.mxu0 %v2042
        %v2859 = vpop.f32.mrf.mxu0
        %v2860 = vadd.f32 %v2790, %v2859
        %v2861 = vpop.f32.mrf.mxu0
        %2862 = vdwg.mxu0
        %2863 = vmatprep.subr.mxu0 0.0
        %2864 = vmatpush1.msra.mxu0 %v1221
        %2865 = vmatprep.subr.mxu0 0.0
        %2866 = vmatpush1.msra.mxu0 %v1220
        %2867 = vmatprep.subr.mxu0 0.0
        %2868 = vmatpush1.msra.mxu0 %v1219
        %2869 = vmatprep.subr.mxu0 0.0
        %2870 = vmatpush1.msra.mxu0 %v1218
        %2871 = vmatprep.subr.mxu0 0.0
        %2872 = vmatpush1.msra.mxu0 %v1217
        %2873 = vmatprep.subr.mxu0 0.0
        %2874 = vmatpush1.msra.mxu0 %v1216
        %2875 = vmatprep.subr.mxu0 0.0
        %2876 = vmatpush1.msra.mxu0 %v1215
        %2877 = vmatprep.subr.mxu0 0.0
        %2878 = vmatpush1.msra.mxu0 %v1214
        %2879 = vmatprep.subr.mxu0 0.0
        %2880 = vmatpush1.msra.mxu0 %v1213
        %2881 = vmatprep.subr.mxu0 0.0
        %2882 = vmatpush1.msra.mxu0 %v1212
        %2883 = vmatprep.subr.mxu0 0.0
        %2884 = vmatpush1.msra.mxu0 %v1211
        %2885 = vmatprep.subr.mxu0 0.0
        %2886 = vmatpush1.msra.mxu0 %v1210
        %2887 = vmatprep.subr.mxu0 0.0
        %2888 = vmatpush1.msra.mxu0 %v1209
        %2889 = vmatprep.subr.mxu0 0.0
        %2890 = vmatpush1.msra.mxu0 %v1208
        %2891 = vmatprep.subr.mxu0 0.0
        %2892 = vmatpush1.msra.mxu0 %v1207
        %2893 = vmatprep.subr.mxu0 0.0
        %2894 = vmatpush1.msra.mxu0 %v1206
        %2895 = vmatprep.subr.mxu0 0.0
        %2896 = vmatpush2.msra.mxu0 %v1237
        %2897 = vmatprep.subr.mxu0 0.0
        %2898 = vmatpush2.msra.mxu0 %v1236
        %2899 = vmatprep.subr.mxu0 0.0
        %2900 = vmatpush2.msra.mxu0 %v1235
        %2901 = vmatprep.subr.mxu0 0.0
        %2902 = vmatpush2.msra.mxu0 %v1234
        %2903 = vmatprep.subr.mxu0 0.0
        %2904 = vmatpush2.msra.mxu0 %v1233
        %2905 = vmatprep.subr.mxu0 0.0
        %2906 = vmatpush2.msra.mxu0 %v1232
        %2907 = vmatprep.subr.mxu0 0.0
        %2908 = vmatpush2.msra.mxu0 %v1231
        %2909 = vmatprep.subr.mxu0 0.0
        %2910 = vmatpush2.msra.mxu0 %v1230
        %2911 = vmatprep.subr.mxu0 0.0
        %2912 = vmatpush2.msra.mxu0 %v1229
        %2913 = vmatprep.subr.mxu0 0.0
        %2914 = vmatpush2.msra.mxu0 %v1228
        %2915 = vmatprep.subr.mxu0 0.0
        %2916 = vmatpush2.msra.mxu0 %v1227
        %2917 = vmatprep.subr.mxu0 0.0
        %2918 = vmatpush2.msra.mxu0 %v1226
        %2919 = vmatprep.subr.mxu0 0.0
        %2920 = vmatpush2.msra.mxu0 %v1225
        %2921 = vmatprep.subr.mxu0 0.0
        %2922 = vmatpush2.msra.mxu0 %v1224
        %2923 = vmatprep.subr.mxu0 0.0
        %2924 = vmatpush2.msra.mxu0 %v1223
        %2925 = vmatprep.subr.mxu0 0.0
        %2926 = vmatpush2.msra.mxu0 %v1222
        %2927 = vmatprep.mubr.f32.mxu0 %v2054
        %2928 = vmatmul.mubr.f32.gmra.mxu0 %v2050
        %v2929 = vpop.f32.mrf.mxu0
        %v2930 = vadd.f32 %v2860, %v2929
        %v2931 = vpop.f32.mrf.mxu0
        %2932 = vdwg.mxu0
        %2933 = vmatprep.subr.mxu0 0.0
        %2934 = vmatpush1.msra.mxu0 %v1253
        %2935 = vmatprep.subr.mxu0 0.0
        %2936 = vmatpush1.msra.mxu0 %v1252
        %2937 = vmatprep.subr.mxu0 0.0
        %2938 = vmatpush1.msra.mxu0 %v1251
        %2939 = vmatprep.subr.mxu0 0.0
        %2940 = vmatpush1.msra.mxu0 %v1250
        %2941 = vmatprep.subr.mxu0 0.0
        %2942 = vmatpush1.msra.mxu0 %v1249
        %2943 = vmatprep.subr.mxu0 0.0
        %2944 = vmatpush1.msra.mxu0 %v1248
        %2945 = vmatprep.subr.mxu0 0.0
        %2946 = vmatpush1.msra.mxu0 %v1247
        %2947 = vmatprep.subr.mxu0 0.0
        %2948 = vmatpush1.msra.mxu0 %v1246
        %2949 = vmatprep.subr.mxu0 0.0
        %2950 = vmatpush1.msra.mxu0 %v1245
        %2951 = vmatprep.subr.mxu0 0.0
        %2952 = vmatpush1.msra.mxu0 %v1244
        %2953 = vmatprep.subr.mxu0 0.0
        %2954 = vmatpush1.msra.mxu0 %v1243
        %2955 = vmatprep.subr.mxu0 0.0
        %2956 = vmatpush1.msra.mxu0 %v1242
        %2957 = vmatprep.subr.mxu0 0.0
        %2958 = vmatpush1.msra.mxu0 %v1241
        %2959 = vmatprep.subr.mxu0 0.0
        %2960 = vmatpush1.msra.mxu0 %v1240
        %2961 = vmatprep.subr.mxu0 0.0
        %2962 = vmatpush1.msra.mxu0 %v1239
        %2963 = vmatprep.subr.mxu0 0.0
        %2964 = vmatpush1.msra.mxu0 %v1238
        %2965 = vmatprep.subr.mxu0 0.0
        %2966 = vmatpush2.msra.mxu0 %v1269
        %2967 = vmatprep.subr.mxu0 0.0
        %2968 = vmatpush2.msra.mxu0 %v1268
        %2969 = vmatprep.subr.mxu0 0.0
        %2970 = vmatpush2.msra.mxu0 %v1267
        %2971 = vmatprep.subr.mxu0 0.0
        %2972 = vmatpush2.msra.mxu0 %v1266
        %2973 = vmatprep.subr.mxu0 0.0
        %2974 = vmatpush2.msra.mxu0 %v1265
        %2975 = vmatprep.subr.mxu0 0.0
        %2976 = vmatpush2.msra.mxu0 %v1264
        %2977 = vmatprep.subr.mxu0 0.0
        %2978 = vmatpush2.msra.mxu0 %v1263
        %2979 = vmatprep.subr.mxu0 0.0
        %2980 = vmatpush2.msra.mxu0 %v1262
        %2981 = vmatprep.subr.mxu0 0.0
        %2982 = vmatpush2.msra.mxu0 %v1261
        %2983 = vmatprep.subr.mxu0 0.0
        %2984 = vmatpush2.msra.mxu0 %v1260
        %2985 = vmatprep.subr.mxu0 0.0
        %2986 = vmatpush2.msra.mxu0 %v1259
        %2987 = vmatprep.subr.mxu0 0.0
        %2988 = vmatpush2.msra.mxu0 %v1258
        %2989 = vmatprep.subr.mxu0 0.0
        %2990 = vmatpush2.msra.mxu0 %v1257
        %2991 = vmatprep.subr.mxu0 0.0
        %2992 = vmatpush2.msra.mxu0 %v1256
        %2993 = vmatprep.subr.mxu0 0.0
        %2994 = vmatpush2.msra.mxu0 %v1255
        %2995 = vmatprep.subr.mxu0 0.0
        %2996 = vmatpush2.msra.mxu0 %v1254
        %2997 = vmatprep.mubr.f32.mxu0 %v2062
        %2998 = vmatmul.mubr.f32.gmra.mxu0 %v2058
        %v2999 = vpop.f32.mrf.mxu0
        %v3000 = vadd.f32 %v2930, %v2999
        %v3001 = vpop.f32.mrf.mxu0
        %3002 = vdwg.mxu0
        %3003 = vmatprep.subr.mxu0 0.0
        %3004 = vmatpush1.msra.mxu0 %v1285
        %3005 = vmatprep.subr.mxu0 0.0
        %3006 = vmatpush1.msra.mxu0 %v1284
        %3007 = vmatprep.subr.mxu0 0.0
        %3008 = vmatpush1.msra.mxu0 %v1283
        %3009 = vmatprep.subr.mxu0 0.0
        %3010 = vmatpush1.msra.mxu0 %v1282
        %3011 = vmatprep.subr.mxu0 0.0
        %3012 = vmatpush1.msra.mxu0 %v1281
        %3013 = vmatprep.subr.mxu0 0.0
        %3014 = vmatpush1.msra.mxu0 %v1280
        %3015 = vmatprep.subr.mxu0 0.0
        %3016 = vmatpush1.msra.mxu0 %v1279
        %3017 = vmatprep.subr.mxu0 0.0
        %3018 = vmatpush1.msra.mxu0 %v1278
        %3019 = vmatprep.subr.mxu0 0.0
        %3020 = vmatpush1.msra.mxu0 %v1277
        %3021 = vmatprep.subr.mxu0 0.0
        %3022 = vmatpush1.msra.mxu0 %v1276
        %3023 = vmatprep.subr.mxu0 0.0
        %3024 = vmatpush1.msra.mxu0 %v1275
        %3025 = vmatprep.subr.mxu0 0.0
        %3026 = vmatpush1.msra.mxu0 %v1274
        %3027 = vmatprep.subr.mxu0 0.0
        %3028 = vmatpush1.msra.mxu0 %v1273
        %3029 = vmatprep.subr.mxu0 0.0
        %3030 = vmatpush1.msra.mxu0 %v1272
        %3031 = vmatprep.subr.mxu0 0.0
        %3032 = vmatpush1.msra.mxu0 %v1271
        %3033 = vmatprep.subr.mxu0 0.0
        %3034 = vmatpush1.msra.mxu0 %v1270
        %3035 = vmatprep.subr.mxu0 0.0
        %3036 = vmatpush2.msra.mxu0 %v1301
        %3037 = vmatprep.subr.mxu0 0.0
        %3038 = vmatpush2.msra.mxu0 %v1300
        %3039 = vmatprep.subr.mxu0 0.0
        %3040 = vmatpush2.msra.mxu0 %v1299
        %3041 = vmatprep.subr.mxu0 0.0
        %3042 = vmatpush2.msra.mxu0 %v1298
        %3043 = vmatprep.subr.mxu0 0.0
        %3044 = vmatpush2.msra.mxu0 %v1297
        %3045 = vmatprep.subr.mxu0 0.0
        %3046 = vmatpush2.msra.mxu0 %v1296
        %3047 = vmatprep.subr.mxu0 0.0
        %3048 = vmatpush2.msra.mxu0 %v1295
        %3049 = vmatprep.subr.mxu0 0.0
        %3050 = vmatpush2.msra.mxu0 %v1294
        %3051 = vmatprep.subr.mxu0 0.0
        %3052 = vmatpush2.msra.mxu0 %v1293
        %3053 = vmatprep.subr.mxu0 0.0
        %3054 = vmatpush2.msra.mxu0 %v1292
        %3055 = vmatprep.subr.mxu0 0.0
        %3056 = vmatpush2.msra.mxu0 %v1291
        %3057 = vmatprep.subr.mxu0 0.0
        %3058 = vmatpush2.msra.mxu0 %v1290
        %3059 = vmatprep.subr.mxu0 0.0
        %3060 = vmatpush2.msra.mxu0 %v1289
        %3061 = vmatprep.subr.mxu0 0.0
        %3062 = vmatpush2.msra.mxu0 %v1288
        %3063 = vmatprep.subr.mxu0 0.0
        %3064 = vmatpush2.msra.mxu0 %v1287
        %3065 = vmatprep.subr.mxu0 0.0
        %3066 = vmatpush2.msra.mxu0 %v1286
        %3067 = vmatprep.mubr.f32.mxu0 %v2070
        %3068 = vmatmul.mubr.f32.gmra.mxu0 %v2066
        %v3069 = vpop.f32.mrf.mxu0
        %v3070 = vadd.f32 %v3000, %v3069
        %v3071 = vpop.f32.mrf.mxu0
        %3072 = vdwg.mxu0
        %3073 = vmatprep.subr.mxu0 0.0
        %3074 = vmatpush1.msra.mxu0 %v1317
        %3075 = vmatprep.subr.mxu0 0.0
        %3076 = vmatpush1.msra.mxu0 %v1316
        %3077 = vmatprep.subr.mxu0 0.0
        %3078 = vmatpush1.msra.mxu0 %v1315
        %3079 = vmatprep.subr.mxu0 0.0
        %3080 = vmatpush1.msra.mxu0 %v1314
        %3081 = vmatprep.subr.mxu0 0.0
        %3082 = vmatpush1.msra.mxu0 %v1313
        %3083 = vmatprep.subr.mxu0 0.0
        %3084 = vmatpush1.msra.mxu0 %v1312
        %3085 = vmatprep.subr.mxu0 0.0
        %3086 = vmatpush1.msra.mxu0 %v1311
        %3087 = vmatprep.subr.mxu0 0.0
        %3088 = vmatpush1.msra.mxu0 %v1310
        %3089 = vmatprep.subr.mxu0 0.0
        %3090 = vmatpush1.msra.mxu0 %v1309
        %3091 = vmatprep.subr.mxu0 0.0
        %3092 = vmatpush1.msra.mxu0 %v1308
        %3093 = vmatprep.subr.mxu0 0.0
        %3094 = vmatpush1.msra.mxu0 %v1307
        %3095 = vmatprep.subr.mxu0 0.0
        %3096 = vmatpush1.msra.mxu0 %v1306
        %3097 = vmatprep.subr.mxu0 0.0
        %3098 = vmatpush1.msra.mxu0 %v1305
        %3099 = vmatprep.subr.mxu0 0.0
        %3100 = vmatpush1.msra.mxu0 %v1304
        %3101 = vmatprep.subr.mxu0 0.0
        %3102 = vmatpush1.msra.mxu0 %v1303
        %3103 = vmatprep.subr.mxu0 0.0
        %3104 = vmatpush1.msra.mxu0 %v1302
        %3105 = vmatprep.subr.mxu0 0.0
        %3106 = vmatpush2.msra.mxu0 %v1333
        %3107 = vmatprep.subr.mxu0 0.0
        %3108 = vmatpush2.msra.mxu0 %v1332
        %3109 = vmatprep.subr.mxu0 0.0
        %3110 = vmatpush2.msra.mxu0 %v1331
        %3111 = vmatprep.subr.mxu0 0.0
        %3112 = vmatpush2.msra.mxu0 %v1330
        %3113 = vmatprep.subr.mxu0 0.0
        %3114 = vmatpush2.msra.mxu0 %v1329
        %3115 = vmatprep.subr.mxu0 0.0
        %3116 = vmatpush2.msra.mxu0 %v1328
        %3117 = vmatprep.subr.mxu0 0.0
        %3118 = vmatpush2.msra.mxu0 %v1327
        %3119 = vmatprep.subr.mxu0 0.0
        %3120 = vmatpush2.msra.mxu0 %v1326
        %3121 = vmatprep.subr.mxu0 0.0
        %3122 = vmatpush2.msra.mxu0 %v1325
        %3123 = vmatprep.subr.mxu0 0.0
        %3124 = vmatpush2.msra.mxu0 %v1324
        %3125 = vmatprep.subr.mxu0 0.0
        %3126 = vmatpush2.msra.mxu0 %v1323
        %3127 = vmatprep.subr.mxu0 0.0
        %3128 = vmatpush2.msra.mxu0 %v1322
        %3129 = vmatprep.subr.mxu0 0.0
        %3130 = vmatpush2.msra.mxu0 %v1321
        %3131 = vmatprep.subr.mxu0 0.0
        %3132 = vmatpush2.msra.mxu0 %v1320
        %3133 = vmatprep.subr.mxu0 0.0
        %3134 = vmatpush2.msra.mxu0 %v1319
        %3135 = vmatprep.subr.mxu0 0.0
        %3136 = vmatpush2.msra.mxu0 %v1318
        %3137 = vmatprep.mubr.f32.mxu0 %v2078
        %3138 = vmatmul.mubr.f32.gmra.mxu0 %v2074
        %v3139 = vpop.f32.mrf.mxu0
        %v3140 = vadd.f32 %v3070, %v3139
        %v3141 = vpop.f32.mrf.mxu0
        %3142 = vdwg.mxu0
        %3143 = vmatprep.subr.mxu0 0.0
        %3144 = vmatpush1.msra.mxu0 %v1349
        %3145 = vmatprep.subr.mxu0 0.0
        %3146 = vmatpush1.msra.mxu0 %v1348
        %3147 = vmatprep.subr.mxu0 0.0
        %3148 = vmatpush1.msra.mxu0 %v1347
        %3149 = vmatprep.subr.mxu0 0.0
        %3150 = vmatpush1.msra.mxu0 %v1346
        %3151 = vmatprep.subr.mxu0 0.0
        %3152 = vmatpush1.msra.mxu0 %v1345
        %3153 = vmatprep.subr.mxu0 0.0
        %3154 = vmatpush1.msra.mxu0 %v1344
        %3155 = vmatprep.subr.mxu0 0.0
        %3156 = vmatpush1.msra.mxu0 %v1343
        %3157 = vmatprep.subr.mxu0 0.0
        %3158 = vmatpush1.msra.mxu0 %v1342
        %3159 = vmatprep.subr.mxu0 0.0
        %3160 = vmatpush1.msra.mxu0 %v1341
        %3161 = vmatprep.subr.mxu0 0.0
        %3162 = vmatpush1.msra.mxu0 %v1340
        %3163 = vmatprep.subr.mxu0 0.0
        %3164 = vmatpush1.msra.mxu0 %v1339
        %3165 = vmatprep.subr.mxu0 0.0
        %3166 = vmatpush1.msra.mxu0 %v1338
        %3167 = vmatprep.subr.mxu0 0.0
        %3168 = vmatpush1.msra.mxu0 %v1337
        %3169 = vmatprep.subr.mxu0 0.0
        %3170 = vmatpush1.msra.mxu0 %v1336
        %3171 = vmatprep.subr.mxu0 0.0
        %3172 = vmatpush1.msra.mxu0 %v1335
        %3173 = vmatprep.subr.mxu0 0.0
        %3174 = vmatpush1.msra.mxu0 %v1334
        %3175 = vmatprep.subr.mxu0 0.0
        %3176 = vmatpush2.msra.mxu0 %v1365
        %3177 = vmatprep.subr.mxu0 0.0
        %3178 = vmatpush2.msra.mxu0 %v1364
        %3179 = vmatprep.subr.mxu0 0.0
        %3180 = vmatpush2.msra.mxu0 %v1363
        %3181 = vmatprep.subr.mxu0 0.0
        %3182 = vmatpush2.msra.mxu0 %v1362
        %3183 = vmatprep.subr.mxu0 0.0
        %3184 = vmatpush2.msra.mxu0 %v1361
        %3185 = vmatprep.subr.mxu0 0.0
        %3186 = vmatpush2.msra.mxu0 %v1360
        %3187 = vmatprep.subr.mxu0 0.0
        %3188 = vmatpush2.msra.mxu0 %v1359
        %3189 = vmatprep.subr.mxu0 0.0
        %3190 = vmatpush2.msra.mxu0 %v1358
        %3191 = vmatprep.subr.mxu0 0.0
        %3192 = vmatpush2.msra.mxu0 %v1357
        %3193 = vmatprep.subr.mxu0 0.0
        %3194 = vmatpush2.msra.mxu0 %v1356
        %3195 = vmatprep.subr.mxu0 0.0
        %3196 = vmatpush2.msra.mxu0 %v1355
        %3197 = vmatprep.subr.mxu0 0.0
        %3198 = vmatpush2.msra.mxu0 %v1354
        %3199 = vmatprep.subr.mxu0 0.0
        %3200 = vmatpush2.msra.mxu0 %v1353
        %3201 = vmatprep.subr.mxu0 0.0
        %3202 = vmatpush2.msra.mxu0 %v1352
        %3203 = vmatprep.subr.mxu0 0.0
        %3204 = vmatpush2.msra.mxu0 %v1351
        %3205 = vmatprep.subr.mxu0 0.0
        %3206 = vmatpush2.msra.mxu0 %v1350
        %3207 = vmatprep.mubr.f32.mxu0 %v2086
        %3208 = vmatmul.mubr.f32.gmra.mxu0 %v2082
        %v3209 = vpop.f32.mrf.mxu0
        %v3210 = vadd.f32 %v3140, %v3209
        %v3211 = vpop.f32.mrf.mxu0
        %3212 = vdwg.mxu0
        %3213 = vmatprep.subr.mxu0 0.0
        %3214 = vmatpush1.msra.mxu0 %v1381
        %3215 = vmatprep.subr.mxu0 0.0
        %3216 = vmatpush1.msra.mxu0 %v1380
        %3217 = vmatprep.subr.mxu0 0.0
        %3218 = vmatpush1.msra.mxu0 %v1379
        %3219 = vmatprep.subr.mxu0 0.0
        %3220 = vmatpush1.msra.mxu0 %v1378
        %3221 = vmatprep.subr.mxu0 0.0
        %3222 = vmatpush1.msra.mxu0 %v1377
        %3223 = vmatprep.subr.mxu0 0.0
        %3224 = vmatpush1.msra.mxu0 %v1376
        %3225 = vmatprep.subr.mxu0 0.0
        %3226 = vmatpush1.msra.mxu0 %v1375
        %3227 = vmatprep.subr.mxu0 0.0
        %3228 = vmatpush1.msra.mxu0 %v1374
        %3229 = vmatprep.subr.mxu0 0.0
        %3230 = vmatpush1.msra.mxu0 %v1373
        %3231 = vmatprep.subr.mxu0 0.0
        %3232 = vmatpush1.msra.mxu0 %v1372
        %3233 = vmatprep.subr.mxu0 0.0
        %3234 = vmatpush1.msra.mxu0 %v1371
        %3235 = vmatprep.subr.mxu0 0.0
        %3236 = vmatpush1.msra.mxu0 %v1370
        %3237 = vmatprep.subr.mxu0 0.0
        %3238 = vmatpush1.msra.mxu0 %v1369
        %3239 = vmatprep.subr.mxu0 0.0
        %3240 = vmatpush1.msra.mxu0 %v1368
        %3241 = vmatprep.subr.mxu0 0.0
        %3242 = vmatpush1.msra.mxu0 %v1367
        %3243 = vmatprep.subr.mxu0 0.0
        %3244 = vmatpush1.msra.mxu0 %v1366
        %3245 = vmatprep.subr.mxu0 0.0
        %3246 = vmatpush2.msra.mxu0 %v1397
        %3247 = vmatprep.subr.mxu0 0.0
        %3248 = vmatpush2.msra.mxu0 %v1396
        %3249 = vmatprep.subr.mxu0 0.0
        %3250 = vmatpush2.msra.mxu0 %v1395
        %3251 = vmatprep.subr.mxu0 0.0
        %3252 = vmatpush2.msra.mxu0 %v1394
        %3253 = vmatprep.subr.mxu0 0.0
        %3254 = vmatpush2.msra.mxu0 %v1393
        %3255 = vmatprep.subr.mxu0 0.0
        %3256 = vmatpush2.msra.mxu0 %v1392
        %3257 = vmatprep.subr.mxu0 0.0
        %3258 = vmatpush2.msra.mxu0 %v1391
        %3259 = vmatprep.subr.mxu0 0.0
        %3260 = vmatpush2.msra.mxu0 %v1390
        %3261 = vmatprep.subr.mxu0 0.0
        %3262 = vmatpush2.msra.mxu0 %v1389
        %3263 = vmatprep.subr.mxu0 0.0
        %3264 = vmatpush2.msra.mxu0 %v1388
        %3265 = vmatprep.subr.mxu0 0.0
        %3266 = vmatpush2.msra.mxu0 %v1387
        %3267 = vmatprep.subr.mxu0 0.0
        %3268 = vmatpush2.msra.mxu0 %v1386
        %3269 = vmatprep.subr.mxu0 0.0
        %3270 = vmatpush2.msra.mxu0 %v1385
        %3271 = vmatprep.subr.mxu0 0.0
        %3272 = vmatpush2.msra.mxu0 %v1384
        %3273 = vmatprep.subr.mxu0 0.0
        %3274 = vmatpush2.msra.mxu0 %v1383
        %3275 = vmatprep.subr.mxu0 0.0
        %3276 = vmatpush2.msra.mxu0 %v1382
        %3277 = vmatprep.mubr.f32.mxu0 %v2094
        %3278 = vmatmul.mubr.f32.gmra.mxu0 %v2090
        %v3279 = vpop.f32.mrf.mxu0
        %v3280 = vadd.f32 %v3210, %v3279
        %v3281 = vpop.f32.mrf.mxu0
        %3282 = vdwg.mxu0
        %3283 = vmatprep.subr.mxu0 0.0
        %3284 = vmatpush1.msra.mxu0 %v1413
        %3285 = vmatprep.subr.mxu0 0.0
        %3286 = vmatpush1.msra.mxu0 %v1412
        %3287 = vmatprep.subr.mxu0 0.0
        %3288 = vmatpush1.msra.mxu0 %v1411
        %3289 = vmatprep.subr.mxu0 0.0
        %3290 = vmatpush1.msra.mxu0 %v1410
        %3291 = vmatprep.subr.mxu0 0.0
        %3292 = vmatpush1.msra.mxu0 %v1409
        %3293 = vmatprep.subr.mxu0 0.0
        %3294 = vmatpush1.msra.mxu0 %v1408
        %3295 = vmatprep.subr.mxu0 0.0
        %3296 = vmatpush1.msra.mxu0 %v1407
        %3297 = vmatprep.subr.mxu0 0.0
        %3298 = vmatpush1.msra.mxu0 %v1406
        %3299 = vmatprep.subr.mxu0 0.0
        %3300 = vmatpush1.msra.mxu0 %v1405
        %3301 = vmatprep.subr.mxu0 0.0
        %3302 = vmatpush1.msra.mxu0 %v1404
        %3303 = vmatprep.subr.mxu0 0.0
        %3304 = vmatpush1.msra.mxu0 %v1403
        %3305 = vmatprep.subr.mxu0 0.0
        %3306 = vmatpush1.msra.mxu0 %v1402
        %3307 = vmatprep.subr.mxu0 0.0
        %3308 = vmatpush1.msra.mxu0 %v1401
        %3309 = vmatprep.subr.mxu0 0.0
        %3310 = vmatpush1.msra.mxu0 %v1400
        %3311 = vmatprep.subr.mxu0 0.0
        %3312 = vmatpush1.msra.mxu0 %v1399
        %3313 = vmatprep.subr.mxu0 0.0
        %3314 = vmatpush1.msra.mxu0 %v1398
        %3315 = vmatprep.subr.mxu0 0.0
        %3316 = vmatpush2.msra.mxu0 %v1429
        %3317 = vmatprep.subr.mxu0 0.0
        %3318 = vmatpush2.msra.mxu0 %v1428
        %3319 = vmatprep.subr.mxu0 0.0
        %3320 = vmatpush2.msra.mxu0 %v1427
        %3321 = vmatprep.subr.mxu0 0.0
        %3322 = vmatpush2.msra.mxu0 %v1426
        %3323 = vmatprep.subr.mxu0 0.0
        %3324 = vmatpush2.msra.mxu0 %v1425
        %3325 = vmatprep.subr.mxu0 0.0
        %3326 = vmatpush2.msra.mxu0 %v1424
        %3327 = vmatprep.subr.mxu0 0.0
        %3328 = vmatpush2.msra.mxu0 %v1423
        %3329 = vmatprep.subr.mxu0 0.0
        %3330 = vmatpush2.msra.mxu0 %v1422
        %3331 = vmatprep.subr.mxu0 0.0
        %3332 = vmatpush2.msra.mxu0 %v1421
        %3333 = vmatprep.subr.mxu0 0.0
        %3334 = vmatpush2.msra.mxu0 %v1420
        %3335 = vmatprep.subr.mxu0 0.0
        %3336 = vmatpush2.msra.mxu0 %v1419
        %3337 = vmatprep.subr.mxu0 0.0
        %3338 = vmatpush2.msra.mxu0 %v1418
        %3339 = vmatprep.subr.mxu0 0.0
        %3340 = vmatpush2.msra.mxu0 %v1417
        %3341 = vmatprep.subr.mxu0 0.0
        %3342 = vmatpush2.msra.mxu0 %v1416
        %3343 = vmatprep.subr.mxu0 0.0
        %3344 = vmatpush2.msra.mxu0 %v1415
        %3345 = vmatprep.subr.mxu0 0.0
        %3346 = vmatpush2.msra.mxu0 %v1414
        %3347 = vmatprep.mubr.f32.mxu0 %v2102
        %3348 = vmatmul.mubr.f32.gmra.mxu0 %v2098
        %v3349 = vpop.f32.mrf.mxu0
        %v3350 = vadd.f32 %v3280, %v3349
        %v3351 = vpop.f32.mrf.mxu0
        %3352 = vdwg.mxu0
        %3353 = vmatprep.subr.mxu0 0.0
        %3354 = vmatpush1.msra.mxu0 %v1445
        %3355 = vmatprep.subr.mxu0 0.0
        %3356 = vmatpush1.msra.mxu0 %v1444
        %3357 = vmatprep.subr.mxu0 0.0
        %3358 = vmatpush1.msra.mxu0 %v1443
        %3359 = vmatprep.subr.mxu0 0.0
        %3360 = vmatpush1.msra.mxu0 %v1442
        %3361 = vmatprep.subr.mxu0 0.0
        %3362 = vmatpush1.msra.mxu0 %v1441
        %3363 = vmatprep.subr.mxu0 0.0
        %3364 = vmatpush1.msra.mxu0 %v1440
        %3365 = vmatprep.subr.mxu0 0.0
        %3366 = vmatpush1.msra.mxu0 %v1439
        %3367 = vmatprep.subr.mxu0 0.0
        %3368 = vmatpush1.msra.mxu0 %v1438
        %3369 = vmatprep.subr.mxu0 0.0
        %3370 = vmatpush1.msra.mxu0 %v1437
        %3371 = vmatprep.subr.mxu0 0.0
        %3372 = vmatpush1.msra.mxu0 %v1436
        %3373 = vmatprep.subr.mxu0 0.0
        %3374 = vmatpush1.msra.mxu0 %v1435
        %3375 = vmatprep.subr.mxu0 0.0
        %3376 = vmatpush1.msra.mxu0 %v1434
        %3377 = vmatprep.subr.mxu0 0.0
        %3378 = vmatpush1.msra.mxu0 %v1433
        %3379 = vmatprep.subr.mxu0 0.0
        %3380 = vmatpush1.msra.mxu0 %v1432
        %3381 = vmatprep.subr.mxu0 0.0
        %3382 = vmatpush1.msra.mxu0 %v1431
        %3383 = vmatprep.subr.mxu0 0.0
        %3384 = vmatpush1.msra.mxu0 %v1430
        %3385 = vmatprep.subr.mxu0 0.0
        %3386 = vmatpush2.msra.mxu0 %v1461
        %3387 = vmatprep.subr.mxu0 0.0
        %3388 = vmatpush2.msra.mxu0 %v1460
        %3389 = vmatprep.subr.mxu0 0.0
        %3390 = vmatpush2.msra.mxu0 %v1459
        %3391 = vmatprep.subr.mxu0 0.0
        %3392 = vmatpush2.msra.mxu0 %v1458
        %3393 = vmatprep.subr.mxu0 0.0
        %3394 = vmatpush2.msra.mxu0 %v1457
        %3395 = vmatprep.subr.mxu0 0.0
        %3396 = vmatpush2.msra.mxu0 %v1456
        %3397 = vmatprep.subr.mxu0 0.0
        %3398 = vmatpush2.msra.mxu0 %v1455
        %3399 = vmatprep.subr.mxu0 0.0
        %3400 = vmatpush2.msra.mxu0 %v1454
        %3401 = vmatprep.subr.mxu0 0.0
        %3402 = vmatpush2.msra.mxu0 %v1453
        %3403 = vmatprep.subr.mxu0 0.0
        %3404 = vmatpush2.msra.mxu0 %v1452
        %3405 = vmatprep.subr.mxu0 0.0
        %3406 = vmatpush2.msra.mxu0 %v1451
        %3407 = vmatprep.subr.mxu0 0.0
        %3408 = vmatpush2.msra.mxu0 %v1450
        %3409 = vmatprep.subr.mxu0 0.0
        %3410 = vmatpush2.msra.mxu0 %v1449
        %3411 = vmatprep.subr.mxu0 0.0
        %3412 = vmatpush2.msra.mxu0 %v1448
        %3413 = vmatprep.subr.mxu0 0.0
        %3414 = vmatpush2.msra.mxu0 %v1447
        %3415 = vmatprep.subr.mxu0 0.0
        %3416 = vmatpush2.msra.mxu0 %v1446
        %3417 = vmatprep.mubr.f32.mxu0 %v2110
        %3418 = vmatmul.mubr.f32.gmra.mxu0 %v2106
        %v3419 = vpop.f32.mrf.mxu0
        %v3420 = vadd.f32 %v3350, %v3419
        %v3421 = vpop.f32.mrf.mxu0
        %3422 = vdwg.mxu0
        %3423 = vmatprep.subr.mxu0 0.0
        %3424 = vmatpush1.msra.mxu0 %v1477
        %3425 = vmatprep.subr.mxu0 0.0
        %3426 = vmatpush1.msra.mxu0 %v1476
        %3427 = vmatprep.subr.mxu0 0.0
        %3428 = vmatpush1.msra.mxu0 %v1475
        %3429 = vmatprep.subr.mxu0 0.0
        %3430 = vmatpush1.msra.mxu0 %v1474
        %3431 = vmatprep.subr.mxu0 0.0
        %3432 = vmatpush1.msra.mxu0 %v1473
        %3433 = vmatprep.subr.mxu0 0.0
        %3434 = vmatpush1.msra.mxu0 %v1472
        %3435 = vmatprep.subr.mxu0 0.0
        %3436 = vmatpush1.msra.mxu0 %v1471
        %3437 = vmatprep.subr.mxu0 0.0
        %3438 = vmatpush1.msra.mxu0 %v1470
        %3439 = vmatprep.subr.mxu0 0.0
        %3440 = vmatpush1.msra.mxu0 %v1469
        %3441 = vmatprep.subr.mxu0 0.0
        %3442 = vmatpush1.msra.mxu0 %v1468
        %3443 = vmatprep.subr.mxu0 0.0
        %3444 = vmatpush1.msra.mxu0 %v1467
        %3445 = vmatprep.subr.mxu0 0.0
        %3446 = vmatpush1.msra.mxu0 %v1466
        %3447 = vmatprep.subr.mxu0 0.0
        %3448 = vmatpush1.msra.mxu0 %v1465
        %3449 = vmatprep.subr.mxu0 0.0
        %3450 = vmatpush1.msra.mxu0 %v1464
        %3451 = vmatprep.subr.mxu0 0.0
        %3452 = vmatpush1.msra.mxu0 %v1463
        %3453 = vmatprep.subr.mxu0 0.0
        %3454 = vmatpush1.msra.mxu0 %v1462
        %3455 = vmatprep.subr.mxu0 0.0
        %3456 = vmatpush2.msra.mxu0 %v1493
        %3457 = vmatprep.subr.mxu0 0.0
        %3458 = vmatpush2.msra.mxu0 %v1492
        %3459 = vmatprep.subr.mxu0 0.0
        %3460 = vmatpush2.msra.mxu0 %v1491
        %3461 = vmatprep.subr.mxu0 0.0
        %3462 = vmatpush2.msra.mxu0 %v1490
        %3463 = vmatprep.subr.mxu0 0.0
        %3464 = vmatpush2.msra.mxu0 %v1489
        %3465 = vmatprep.subr.mxu0 0.0
        %3466 = vmatpush2.msra.mxu0 %v1488
        %3467 = vmatprep.subr.mxu0 0.0
        %3468 = vmatpush2.msra.mxu0 %v1487
        %3469 = vmatprep.subr.mxu0 0.0
        %3470 = vmatpush2.msra.mxu0 %v1486
        %3471 = vmatprep.subr.mxu0 0.0
        %3472 = vmatpush2.msra.mxu0 %v1485
        %3473 = vmatprep.subr.mxu0 0.0
        %3474 = vmatpush2.msra.mxu0 %v1484
        %3475 = vmatprep.subr.mxu0 0.0
        %3476 = vmatpush2.msra.mxu0 %v1483
        %3477 = vmatprep.subr.mxu0 0.0
        %3478 = vmatpush2.msra.mxu0 %v1482
        %3479 = vmatprep.subr.mxu0 0.0
        %3480 = vmatpush2.msra.mxu0 %v1481
        %3481 = vmatprep.subr.mxu0 0.0
        %3482 = vmatpush2.msra.mxu0 %v1480
        %3483 = vmatprep.subr.mxu0 0.0
        %3484 = vmatpush2.msra.mxu0 %v1479
        %3485 = vmatprep.subr.mxu0 0.0
        %3486 = vmatpush2.msra.mxu0 %v1478
        %3487 = vmatprep.mubr.f32.mxu0 %v2118
        %3488 = vmatmul.mubr.f32.gmra.mxu0 %v2114
        %v3489 = vpop.f32.mrf.mxu0
        %v3490 = vadd.f32 %v3420, %v3489
        %v3491 = vpop.f32.mrf.mxu0
        %3492 = vdwg.mxu0
        %3493 = vmatprep.subr.mxu0 0.0
        %3494 = vmatpush1.msra.mxu0 %v1509
        %3495 = vmatprep.subr.mxu0 0.0
        %3496 = vmatpush1.msra.mxu0 %v1508
        %3497 = vmatprep.subr.mxu0 0.0
        %3498 = vmatpush1.msra.mxu0 %v1507
        %3499 = vmatprep.subr.mxu0 0.0
        %3500 = vmatpush1.msra.mxu0 %v1506
        %3501 = vmatprep.subr.mxu0 0.0
        %3502 = vmatpush1.msra.mxu0 %v1505
        %3503 = vmatprep.subr.mxu0 0.0
        %3504 = vmatpush1.msra.mxu0 %v1504
        %3505 = vmatprep.subr.mxu0 0.0
        %3506 = vmatpush1.msra.mxu0 %v1503
        %3507 = vmatprep.subr.mxu0 0.0
        %3508 = vmatpush1.msra.mxu0 %v1502
        %3509 = vmatprep.subr.mxu0 0.0
        %3510 = vmatpush1.msra.mxu0 %v1501
        %3511 = vmatprep.subr.mxu0 0.0
        %3512 = vmatpush1.msra.mxu0 %v1500
        %3513 = vmatprep.subr.mxu0 0.0
        %3514 = vmatpush1.msra.mxu0 %v1499
        %3515 = vmatprep.subr.mxu0 0.0
        %3516 = vmatpush1.msra.mxu0 %v1498
        %3517 = vmatprep.subr.mxu0 0.0
        %3518 = vmatpush1.msra.mxu0 %v1497
        %3519 = vmatprep.subr.mxu0 0.0
        %3520 = vmatpush1.msra.mxu0 %v1496
        %3521 = vmatprep.subr.mxu0 0.0
        %3522 = vmatpush1.msra.mxu0 %v1495
        %3523 = vmatprep.subr.mxu0 0.0
        %3524 = vmatpush1.msra.mxu0 %v1494
        %3525 = vmatprep.subr.mxu0 0.0
        %3526 = vmatpush2.msra.mxu0 %v1525
        %3527 = vmatprep.subr.mxu0 0.0
        %3528 = vmatpush2.msra.mxu0 %v1524
        %3529 = vmatprep.subr.mxu0 0.0
        %3530 = vmatpush2.msra.mxu0 %v1523
        %3531 = vmatprep.subr.mxu0 0.0
        %3532 = vmatpush2.msra.mxu0 %v1522
        %3533 = vmatprep.subr.mxu0 0.0
        %3534 = vmatpush2.msra.mxu0 %v1521
        %3535 = vmatprep.subr.mxu0 0.0
        %3536 = vmatpush2.msra.mxu0 %v1520
        %3537 = vmatprep.subr.mxu0 0.0
        %3538 = vmatpush2.msra.mxu0 %v1519
        %3539 = vmatprep.subr.mxu0 0.0
        %3540 = vmatpush2.msra.mxu0 %v1518
        %3541 = vmatprep.subr.mxu0 0.0
        %3542 = vmatpush2.msra.mxu0 %v1517
        %3543 = vmatprep.subr.mxu0 0.0
        %3544 = vmatpush2.msra.mxu0 %v1516
        %3545 = vmatprep.subr.mxu0 0.0
        %3546 = vmatpush2.msra.mxu0 %v1515
        %3547 = vmatprep.subr.mxu0 0.0
        %3548 = vmatpush2.msra.mxu0 %v1514
        %3549 = vmatprep.subr.mxu0 0.0
        %3550 = vmatpush2.msra.mxu0 %v1513
        %3551 = vmatprep.subr.mxu0 0.0
        %3552 = vmatpush2.msra.mxu0 %v1512
        %3553 = vmatprep.subr.mxu0 0.0
        %3554 = vmatpush2.msra.mxu0 %v1511
        %3555 = vmatprep.subr.mxu0 0.0
        %3556 = vmatpush2.msra.mxu0 %v1510
        %3557 = vmatprep.mubr.f32.mxu0 %v2126
        %3558 = vmatmul.mubr.f32.gmra.mxu0 %v2122
        %v3559 = vpop.f32.mrf.mxu0
        %v3560 = vadd.f32 %v3490, %v3559
        %v3561 = vpop.f32.mrf.mxu0
        %3562 = vdwg.mxu0
        %3563 = vmatprep.subr.mxu0 0.0
        %3564 = vmatpush1.msra.mxu0 %v1541
        %3565 = vmatprep.subr.mxu0 0.0
        %3566 = vmatpush1.msra.mxu0 %v1540
        %3567 = vmatprep.subr.mxu0 0.0
        %3568 = vmatpush1.msra.mxu0 %v1539
        %3569 = vmatprep.subr.mxu0 0.0
        %3570 = vmatpush1.msra.mxu0 %v1538
        %3571 = vmatprep.subr.mxu0 0.0
        %3572 = vmatpush1.msra.mxu0 %v1537
        %3573 = vmatprep.subr.mxu0 0.0
        %3574 = vmatpush1.msra.mxu0 %v1536
        %3575 = vmatprep.subr.mxu0 0.0
        %3576 = vmatpush1.msra.mxu0 %v1535
        %3577 = vmatprep.subr.mxu0 0.0
        %3578 = vmatpush1.msra.mxu0 %v1534
        %3579 = vmatprep.subr.mxu0 0.0
        %3580 = vmatpush1.msra.mxu0 %v1533
        %3581 = vmatprep.subr.mxu0 0.0
        %3582 = vmatpush1.msra.mxu0 %v1532
        %3583 = vmatprep.subr.mxu0 0.0
        %3584 = vmatpush1.msra.mxu0 %v1531
        %3585 = vmatprep.subr.mxu0 0.0
        %3586 = vmatpush1.msra.mxu0 %v1530
        %3587 = vmatprep.subr.mxu0 0.0
        %3588 = vmatpush1.msra.mxu0 %v1529
        %3589 = vmatprep.subr.mxu0 0.0
        %3590 = vmatpush1.msra.mxu0 %v1528
        %3591 = vmatprep.subr.mxu0 0.0
        %3592 = vmatpush1.msra.mxu0 %v1527
        %3593 = vmatprep.subr.mxu0 0.0
        %3594 = vmatpush1.msra.mxu0 %v1526
        %3595 = vmatprep.subr.mxu0 0.0
        %3596 = vmatpush2.msra.mxu0 %v1557
        %3597 = vmatprep.subr.mxu0 0.0
        %3598 = vmatpush2.msra.mxu0 %v1556
        %3599 = vmatprep.subr.mxu0 0.0
        %3600 = vmatpush2.msra.mxu0 %v1555
        %3601 = vmatprep.subr.mxu0 0.0
        %3602 = vmatpush2.msra.mxu0 %v1554
        %3603 = vmatprep.subr.mxu0 0.0
        %3604 = vmatpush2.msra.mxu0 %v1553
        %3605 = vmatprep.subr.mxu0 0.0
        %3606 = vmatpush2.msra.mxu0 %v1552
        %3607 = vmatprep.subr.mxu0 0.0
        %3608 = vmatpush2.msra.mxu0 %v1551
        %3609 = vmatprep.subr.mxu0 0.0
        %3610 = vmatpush2.msra.mxu0 %v1550
        %3611 = vmatprep.subr.mxu0 0.0
        %3612 = vmatpush2.msra.mxu0 %v1549
        %3613 = vmatprep.subr.mxu0 0.0
        %3614 = vmatpush2.msra.mxu0 %v1548
        %3615 = vmatprep.subr.mxu0 0.0
        %3616 = vmatpush2.msra.mxu0 %v1547
        %3617 = vmatprep.subr.mxu0 0.0
        %3618 = vmatpush2.msra.mxu0 %v1546
        %3619 = vmatprep.subr.mxu0 0.0
        %3620 = vmatpush2.msra.mxu0 %v1545
        %3621 = vmatprep.subr.mxu0 0.0
        %3622 = vmatpush2.msra.mxu0 %v1544
        %3623 = vmatprep.subr.mxu0 0.0
        %3624 = vmatpush2.msra.mxu0 %v1543
        %3625 = vmatprep.subr.mxu0 0.0
        %3626 = vmatpush2.msra.mxu0 %v1542
        %3627 = vmatprep.mubr.f32.mxu0 %v2134
        %3628 = vmatmul.mubr.f32.gmra.mxu0 %v2130
        %v3629 = vpop.f32.mrf.mxu0
        %v3630 = vadd.f32 %v3560, %v3629
        %v3631 = vpop.f32.mrf.mxu0
        %3632 = vdwg.mxu0
        %3633 = vmatprep.subr.mxu0 0.0
        %3634 = vmatpush1.msra.mxu0 %v1573
        %3635 = vmatprep.subr.mxu0 0.0
        %3636 = vmatpush1.msra.mxu0 %v1572
        %3637 = vmatprep.subr.mxu0 0.0
        %3638 = vmatpush1.msra.mxu0 %v1571
        %3639 = vmatprep.subr.mxu0 0.0
        %3640 = vmatpush1.msra.mxu0 %v1570
        %3641 = vmatprep.subr.mxu0 0.0
        %3642 = vmatpush1.msra.mxu0 %v1569
        %3643 = vmatprep.subr.mxu0 0.0
        %3644 = vmatpush1.msra.mxu0 %v1568
        %3645 = vmatprep.subr.mxu0 0.0
        %3646 = vmatpush1.msra.mxu0 %v1567
        %3647 = vmatprep.subr.mxu0 0.0
        %3648 = vmatpush1.msra.mxu0 %v1566
        %3649 = vmatprep.subr.mxu0 0.0
        %3650 = vmatpush1.msra.mxu0 %v1565
        %3651 = vmatprep.subr.mxu0 0.0
        %3652 = vmatpush1.msra.mxu0 %v1564
        %3653 = vmatprep.subr.mxu0 0.0
        %3654 = vmatpush1.msra.mxu0 %v1563
        %3655 = vmatprep.subr.mxu0 0.0
        %3656 = vmatpush1.msra.mxu0 %v1562
        %3657 = vmatprep.subr.mxu0 0.0
        %3658 = vmatpush1.msra.mxu0 %v1561
        %3659 = vmatprep.subr.mxu0 0.0
        %3660 = vmatpush1.msra.mxu0 %v1560
        %3661 = vmatprep.subr.mxu0 0.0
        %3662 = vmatpush1.msra.mxu0 %v1559
        %3663 = vmatprep.subr.mxu0 0.0
        %3664 = vmatpush1.msra.mxu0 %v1558
        %3665 = vmatprep.subr.mxu0 0.0
        %3666 = vmatpush2.msra.mxu0 %v1589
        %3667 = vmatprep.subr.mxu0 0.0
        %3668 = vmatpush2.msra.mxu0 %v1588
        %3669 = vmatprep.subr.mxu0 0.0
        %3670 = vmatpush2.msra.mxu0 %v1587
        %3671 = vmatprep.subr.mxu0 0.0
        %3672 = vmatpush2.msra.mxu0 %v1586
        %3673 = vmatprep.subr.mxu0 0.0
        %3674 = vmatpush2.msra.mxu0 %v1585
        %3675 = vmatprep.subr.mxu0 0.0
        %3676 = vmatpush2.msra.mxu0 %v1584
        %3677 = vmatprep.subr.mxu0 0.0
        %3678 = vmatpush2.msra.mxu0 %v1583
        %3679 = vmatprep.subr.mxu0 0.0
        %3680 = vmatpush2.msra.mxu0 %v1582
        %3681 = vmatprep.subr.mxu0 0.0
        %3682 = vmatpush2.msra.mxu0 %v1581
        %3683 = vmatprep.subr.mxu0 0.0
        %3684 = vmatpush2.msra.mxu0 %v1580
        %3685 = vmatprep.subr.mxu0 0.0
        %3686 = vmatpush2.msra.mxu0 %v1579
        %3687 = vmatprep.subr.mxu0 0.0
        %3688 = vmatpush2.msra.mxu0 %v1578
        %3689 = vmatprep.subr.mxu0 0.0
        %3690 = vmatpush2.msra.mxu0 %v1577
        %3691 = vmatprep.subr.mxu0 0.0
        %3692 = vmatpush2.msra.mxu0 %v1576
        %3693 = vmatprep.subr.mxu0 0.0
        %3694 = vmatpush2.msra.mxu0 %v1575
        %3695 = vmatprep.subr.mxu0 0.0
        %3696 = vmatpush2.msra.mxu0 %v1574
        %3697 = vmatprep.mubr.f32.mxu0 %v2142
        %3698 = vmatmul.mubr.f32.gmra.mxu0 %v2138
        %v3699 = vpop.f32.mrf.mxu0
        %v3700 = vadd.f32 %v3630, %v3699
        %v3701 = vpop.f32.mrf.mxu0
        %3702 = vdwg.mxu0
        %3703 = vmatprep.subr.mxu0 0.0
        %3704 = vmatpush1.msra.mxu0 %v1605
        %3705 = vmatprep.subr.mxu0 0.0
        %3706 = vmatpush1.msra.mxu0 %v1604
        %3707 = vmatprep.subr.mxu0 0.0
        %3708 = vmatpush1.msra.mxu0 %v1603
        %3709 = vmatprep.subr.mxu0 0.0
        %3710 = vmatpush1.msra.mxu0 %v1602
        %3711 = vmatprep.subr.mxu0 0.0
        %3712 = vmatpush1.msra.mxu0 %v1601
        %3713 = vmatprep.subr.mxu0 0.0
        %3714 = vmatpush1.msra.mxu0 %v1600
        %3715 = vmatprep.subr.mxu0 0.0
        %3716 = vmatpush1.msra.mxu0 %v1599
        %3717 = vmatprep.subr.mxu0 0.0
        %3718 = vmatpush1.msra.mxu0 %v1598
        %3719 = vmatprep.subr.mxu0 0.0
        %3720 = vmatpush1.msra.mxu0 %v1597
        %3721 = vmatprep.subr.mxu0 0.0
        %3722 = vmatpush1.msra.mxu0 %v1596
        %3723 = vmatprep.subr.mxu0 0.0
        %3724 = vmatpush1.msra.mxu0 %v1595
        %3725 = vmatprep.subr.mxu0 0.0
        %3726 = vmatpush1.msra.mxu0 %v1594
        %3727 = vmatprep.subr.mxu0 0.0
        %3728 = vmatpush1.msra.mxu0 %v1593
        %3729 = vmatprep.subr.mxu0 0.0
        %3730 = vmatpush1.msra.mxu0 %v1592
        %3731 = vmatprep.subr.mxu0 0.0
        %3732 = vmatpush1.msra.mxu0 %v1591
        %3733 = vmatprep.subr.mxu0 0.0
        %3734 = vmatpush1.msra.mxu0 %v1590
        %3735 = vmatprep.subr.mxu0 0.0
        %3736 = vmatpush2.msra.mxu0 %v1621
        %3737 = vmatprep.subr.mxu0 0.0
        %3738 = vmatpush2.msra.mxu0 %v1620
        %3739 = vmatprep.subr.mxu0 0.0
        %3740 = vmatpush2.msra.mxu0 %v1619
        %3741 = vmatprep.subr.mxu0 0.0
        %3742 = vmatpush2.msra.mxu0 %v1618
        %3743 = vmatprep.subr.mxu0 0.0
        %3744 = vmatpush2.msra.mxu0 %v1617
        %3745 = vmatprep.subr.mxu0 0.0
        %3746 = vmatpush2.msra.mxu0 %v1616
        %3747 = vmatprep.subr.mxu0 0.0
        %3748 = vmatpush2.msra.mxu0 %v1615
        %3749 = vmatprep.subr.mxu0 0.0
        %3750 = vmatpush2.msra.mxu0 %v1614
        %3751 = vmatprep.subr.mxu0 0.0
        %3752 = vmatpush2.msra.mxu0 %v1613
        %3753 = vmatprep.subr.mxu0 0.0
        %3754 = vmatpush2.msra.mxu0 %v1612
        %3755 = vmatprep.subr.mxu0 0.0
        %3756 = vmatpush2.msra.mxu0 %v1611
        %3757 = vmatprep.subr.mxu0 0.0
        %3758 = vmatpush2.msra.mxu0 %v1610
        %3759 = vmatprep.subr.mxu0 0.0
        %3760 = vmatpush2.msra.mxu0 %v1609
        %3761 = vmatprep.subr.mxu0 0.0
        %3762 = vmatpush2.msra.mxu0 %v1608
        %3763 = vmatprep.subr.mxu0 0.0
        %3764 = vmatpush2.msra.mxu0 %v1607
        %3765 = vmatprep.subr.mxu0 0.0
        %3766 = vmatpush2.msra.mxu0 %v1606
        %3767 = vmatprep.mubr.f32.mxu0 %v2150
        %3768 = vmatmul.mubr.f32.gmra.mxu0 %v2146
        %v3769 = vpop.f32.mrf.mxu0
        %v3770 = vadd.f32 %v3700, %v3769
        %v3771 = vpop.f32.mrf.mxu0
        %3772 = vdwg.mxu0
        %3773 = vmatprep.subr.mxu0 0.0
        %3774 = vmatpush1.msra.mxu0 %v1637
        %3775 = vmatprep.subr.mxu0 0.0
        %3776 = vmatpush1.msra.mxu0 %v1636
        %3777 = vmatprep.subr.mxu0 0.0
        %3778 = vmatpush1.msra.mxu0 %v1635
        %3779 = vmatprep.subr.mxu0 0.0
        %3780 = vmatpush1.msra.mxu0 %v1634
        %3781 = vmatprep.subr.mxu0 0.0
        %3782 = vmatpush1.msra.mxu0 %v1633
        %3783 = vmatprep.subr.mxu0 0.0
        %3784 = vmatpush1.msra.mxu0 %v1632
        %3785 = vmatprep.subr.mxu0 0.0
        %3786 = vmatpush1.msra.mxu0 %v1631
        %3787 = vmatprep.subr.mxu0 0.0
        %3788 = vmatpush1.msra.mxu0 %v1630
        %3789 = vmatprep.subr.mxu0 0.0
        %3790 = vmatpush1.msra.mxu0 %v1629
        %3791 = vmatprep.subr.mxu0 0.0
        %3792 = vmatpush1.msra.mxu0 %v1628
        %3793 = vmatprep.subr.mxu0 0.0
        %3794 = vmatpush1.msra.mxu0 %v1627
        %3795 = vmatprep.subr.mxu0 0.0
        %3796 = vmatpush1.msra.mxu0 %v1626
        %3797 = vmatprep.subr.mxu0 0.0
        %3798 = vmatpush1.msra.mxu0 %v1625
        %3799 = vmatprep.subr.mxu0 0.0
        %3800 = vmatpush1.msra.mxu0 %v1624
        %3801 = vmatprep.subr.mxu0 0.0
        %3802 = vmatpush1.msra.mxu0 %v1623
        %3803 = vmatprep.subr.mxu0 0.0
        %3804 = vmatpush1.msra.mxu0 %v1622
        %3805 = vmatprep.subr.mxu0 0.0
        %3806 = vmatpush2.msra.mxu0 %v1653
        %3807 = vmatprep.subr.mxu0 0.0
        %3808 = vmatpush2.msra.mxu0 %v1652
        %3809 = vmatprep.subr.mxu0 0.0
        %3810 = vmatpush2.msra.mxu0 %v1651
        %3811 = vmatprep.subr.mxu0 0.0
        %3812 = vmatpush2.msra.mxu0 %v1650
        %3813 = vmatprep.subr.mxu0 0.0
        %3814 = vmatpush2.msra.mxu0 %v1649
        %3815 = vmatprep.subr.mxu0 0.0
        %3816 = vmatpush2.msra.mxu0 %v1648
        %3817 = vmatprep.subr.mxu0 0.0
        %3818 = vmatpush2.msra.mxu0 %v1647
        %3819 = vmatprep.subr.mxu0 0.0
        %3820 = vmatpush2.msra.mxu0 %v1646
        %3821 = vmatprep.subr.mxu0 0.0
        %3822 = vmatpush2.msra.mxu0 %v1645
        %3823 = vmatprep.subr.mxu0 0.0
        %3824 = vmatpush2.msra.mxu0 %v1644
        %3825 = vmatprep.subr.mxu0 0.0
        %3826 = vmatpush2.msra.mxu0 %v1643
        %3827 = vmatprep.subr.mxu0 0.0
        %3828 = vmatpush2.msra.mxu0 %v1642
        %3829 = vmatprep.subr.mxu0 0.0
        %3830 = vmatpush2.msra.mxu0 %v1641
        %3831 = vmatprep.subr.mxu0 0.0
        %3832 = vmatpush2.msra.mxu0 %v1640
        %3833 = vmatprep.subr.mxu0 0.0
        %3834 = vmatpush2.msra.mxu0 %v1639
        %3835 = vmatprep.subr.mxu0 0.0
        %3836 = vmatpush2.msra.mxu0 %v1638
        %3837 = vmatprep.mubr.f32.mxu0 %v2158
        %3838 = vmatmul.mubr.f32.gmra.mxu0 %v2154
        %v3839 = vpop.f32.mrf.mxu0
        %v3840 = vadd.f32 %v3770, %v3839
        %v3841 = vpop.f32.mrf.mxu0
        %3842 = vdwg.mxu0
        %3843 = vmatprep.subr.mxu0 0.0
        %3844 = vmatpush1.msra.mxu0 %v1669
        %3845 = vmatprep.subr.mxu0 0.0
        %3846 = vmatpush1.msra.mxu0 %v1668
        %3847 = vmatprep.subr.mxu0 0.0
        %3848 = vmatpush1.msra.mxu0 %v1667
        %3849 = vmatprep.subr.mxu0 0.0
        %3850 = vmatpush1.msra.mxu0 %v1666
        %3851 = vmatprep.subr.mxu0 0.0
        %3852 = vmatpush1.msra.mxu0 %v1665
        %3853 = vmatprep.subr.mxu0 0.0
        %3854 = vmatpush1.msra.mxu0 %v1664
        %3855 = vmatprep.subr.mxu0 0.0
        %3856 = vmatpush1.msra.mxu0 %v1663
        %3857 = vmatprep.subr.mxu0 0.0
        %3858 = vmatpush1.msra.mxu0 %v1662
        %3859 = vmatprep.subr.mxu0 0.0
        %3860 = vmatpush1.msra.mxu0 %v1661
        %3861 = vmatprep.subr.mxu0 0.0
        %3862 = vmatpush1.msra.mxu0 %v1660
        %3863 = vmatprep.subr.mxu0 0.0
        %3864 = vmatpush1.msra.mxu0 %v1659
        %3865 = vmatprep.subr.mxu0 0.0
        %3866 = vmatpush1.msra.mxu0 %v1658
        %3867 = vmatprep.subr.mxu0 0.0
        %3868 = vmatpush1.msra.mxu0 %v1657
        %3869 = vmatprep.subr.mxu0 0.0
        %3870 = vmatpush1.msra.mxu0 %v1656
        %3871 = vmatprep.subr.mxu0 0.0
        %3872 = vmatpush1.msra.mxu0 %v1655
        %3873 = vmatprep.subr.mxu0 0.0
        %3874 = vmatpush1.msra.mxu0 %v1654
        %3875 = vmatprep.subr.mxu0 0.0
        %3876 = vmatpush2.msra.mxu0 %v1685
        %3877 = vmatprep.subr.mxu0 0.0
        %3878 = vmatpush2.msra.mxu0 %v1684
        %3879 = vmatprep.subr.mxu0 0.0
        %3880 = vmatpush2.msra.mxu0 %v1683
        %3881 = vmatprep.subr.mxu0 0.0
        %3882 = vmatpush2.msra.mxu0 %v1682
        %3883 = vmatprep.subr.mxu0 0.0
        %3884 = vmatpush2.msra.mxu0 %v1681
        %3885 = vmatprep.subr.mxu0 0.0
        %3886 = vmatpush2.msra.mxu0 %v1680
        %3887 = vmatprep.subr.mxu0 0.0
        %3888 = vmatpush2.msra.mxu0 %v1679
        %3889 = vmatprep.subr.mxu0 0.0
        %3890 = vmatpush2.msra.mxu0 %v1678
        %3891 = vmatprep.subr.mxu0 0.0
        %3892 = vmatpush2.msra.mxu0 %v1677
        %3893 = vmatprep.subr.mxu0 0.0
        %3894 = vmatpush2.msra.mxu0 %v1676
        %3895 = vmatprep.subr.mxu0 0.0
        %3896 = vmatpush2.msra.mxu0 %v1675
        %3897 = vmatprep.subr.mxu0 0.0
        %3898 = vmatpush2.msra.mxu0 %v1674
        %3899 = vmatprep.subr.mxu0 0.0
        %3900 = vmatpush2.msra.mxu0 %v1673
        %3901 = vmatprep.subr.mxu0 0.0
        %3902 = vmatpush2.msra.mxu0 %v1672
        %3903 = vmatprep.subr.mxu0 0.0
        %3904 = vmatpush2.msra.mxu0 %v1671
        %3905 = vmatprep.subr.mxu0 0.0
        %3906 = vmatpush2.msra.mxu0 %v1670
        %3907 = vmatprep.mubr.f32.mxu0 %v2166
        %3908 = vmatmul.mubr.f32.gmra.mxu0 %v2162
        %v3909 = vpop.f32.mrf.mxu0
        %v3910 = vadd.f32 %v3840, %v3909
        %v3911 = vpop.f32.mrf.mxu0
        %3912 = vdwg.mxu0
        %3913 = vmatprep.subr.mxu0 0.0
        %3914 = vmatpush1.msra.mxu0 %v1701
        %3915 = vmatprep.subr.mxu0 0.0
        %3916 = vmatpush1.msra.mxu0 %v1700
        %3917 = vmatprep.subr.mxu0 0.0
        %3918 = vmatpush1.msra.mxu0 %v1699
        %3919 = vmatprep.subr.mxu0 0.0
        %3920 = vmatpush1.msra.mxu0 %v1698
        %3921 = vmatprep.subr.mxu0 0.0
        %3922 = vmatpush1.msra.mxu0 %v1697
        %3923 = vmatprep.subr.mxu0 0.0
        %3924 = vmatpush1.msra.mxu0 %v1696
        %3925 = vmatprep.subr.mxu0 0.0
        %3926 = vmatpush1.msra.mxu0 %v1695
        %3927 = vmatprep.subr.mxu0 0.0
        %3928 = vmatpush1.msra.mxu0 %v1694
        %3929 = vmatprep.subr.mxu0 0.0
        %3930 = vmatpush1.msra.mxu0 %v1693
        %3931 = vmatprep.subr.mxu0 0.0
        %3932 = vmatpush1.msra.mxu0 %v1692
        %3933 = vmatprep.subr.mxu0 0.0
        %3934 = vmatpush1.msra.mxu0 %v1691
        %3935 = vmatprep.subr.mxu0 0.0
        %3936 = vmatpush1.msra.mxu0 %v1690
        %3937 = vmatprep.subr.mxu0 0.0
        %3938 = vmatpush1.msra.mxu0 %v1689
        %3939 = vmatprep.subr.mxu0 0.0
        %3940 = vmatpush1.msra.mxu0 %v1688
        %3941 = vmatprep.subr.mxu0 0.0
        %3942 = vmatpush1.msra.mxu0 %v1687
        %3943 = vmatprep.subr.mxu0 0.0
        %3944 = vmatpush1.msra.mxu0 %v1686
        %3945 = vmatprep.subr.mxu0 0.0
        %3946 = vmatpush2.msra.mxu0 %v1717
        %3947 = vmatprep.subr.mxu0 0.0
        %3948 = vmatpush2.msra.mxu0 %v1716
        %3949 = vmatprep.subr.mxu0 0.0
        %3950 = vmatpush2.msra.mxu0 %v1715
        %3951 = vmatprep.subr.mxu0 0.0
        %3952 = vmatpush2.msra.mxu0 %v1714
        %3953 = vmatprep.subr.mxu0 0.0
        %3954 = vmatpush2.msra.mxu0 %v1713
        %3955 = vmatprep.subr.mxu0 0.0
        %3956 = vmatpush2.msra.mxu0 %v1712
        %3957 = vmatprep.subr.mxu0 0.0
        %3958 = vmatpush2.msra.mxu0 %v1711
        %3959 = vmatprep.subr.mxu0 0.0
        %3960 = vmatpush2.msra.mxu0 %v1710
        %3961 = vmatprep.subr.mxu0 0.0
        %3962 = vmatpush2.msra.mxu0 %v1709
        %3963 = vmatprep.subr.mxu0 0.0
        %3964 = vmatpush2.msra.mxu0 %v1708
        %3965 = vmatprep.subr.mxu0 0.0
        %3966 = vmatpush2.msra.mxu0 %v1707
        %3967 = vmatprep.subr.mxu0 0.0
        %3968 = vmatpush2.msra.mxu0 %v1706
        %3969 = vmatprep.subr.mxu0 0.0
        %3970 = vmatpush2.msra.mxu0 %v1705
        %3971 = vmatprep.subr.mxu0 0.0
        %3972 = vmatpush2.msra.mxu0 %v1704
        %3973 = vmatprep.subr.mxu0 0.0
        %3974 = vmatpush2.msra.mxu0 %v1703
        %3975 = vmatprep.subr.mxu0 0.0
        %3976 = vmatpush2.msra.mxu0 %v1702
        %3977 = vmatprep.mubr.f32.mxu0 %v2174
        %3978 = vmatmul.mubr.f32.gmra.mxu0 %v2170
        %v3979 = vpop.f32.mrf.mxu0
        %v3980 = vadd.f32 %v3910, %v3979
        %v3981 = vpop.f32.mrf.mxu0
        %3982 = vdwg.mxu0
        %3983 = vmatprep.subr.mxu0 0.0
        %3984 = vmatpush1.msra.mxu0 %v1733
        %3985 = vmatprep.subr.mxu0 0.0
        %3986 = vmatpush1.msra.mxu0 %v1732
        %3987 = vmatprep.subr.mxu0 0.0
        %3988 = vmatpush1.msra.mxu0 %v1731
        %3989 = vmatprep.subr.mxu0 0.0
        %3990 = vmatpush1.msra.mxu0 %v1730
        %3991 = vmatprep.subr.mxu0 0.0
        %3992 = vmatpush1.msra.mxu0 %v1729
        %3993 = vmatprep.subr.mxu0 0.0
        %3994 = vmatpush1.msra.mxu0 %v1728
        %3995 = vmatprep.subr.mxu0 0.0
        %3996 = vmatpush1.msra.mxu0 %v1727
        %3997 = vmatprep.subr.mxu0 0.0
        %3998 = vmatpush1.msra.mxu0 %v1726
        %3999 = vmatprep.subr.mxu0 0.0
        %4000 = vmatpush1.msra.mxu0 %v1725
        %4001 = vmatprep.subr.mxu0 0.0
        %4002 = vmatpush1.msra.mxu0 %v1724
        %4003 = vmatprep.subr.mxu0 0.0
        %4004 = vmatpush1.msra.mxu0 %v1723
        %4005 = vmatprep.subr.mxu0 0.0
        %4006 = vmatpush1.msra.mxu0 %v1722
        %4007 = vmatprep.subr.mxu0 0.0
        %4008 = vmatpush1.msra.mxu0 %v1721
        %4009 = vmatprep.subr.mxu0 0.0
        %4010 = vmatpush1.msra.mxu0 %v1720
        %4011 = vmatprep.subr.mxu0 0.0
        %4012 = vmatpush1.msra.mxu0 %v1719
        %4013 = vmatprep.subr.mxu0 0.0
        %4014 = vmatpush1.msra.mxu0 %v1718
        %4015 = vmatprep.subr.mxu0 0.0
        %4016 = vmatpush2.msra.mxu0 %v1749
        %4017 = vmatprep.subr.mxu0 0.0
        %4018 = vmatpush2.msra.mxu0 %v1748
        %4019 = vmatprep.subr.mxu0 0.0
        %4020 = vmatpush2.msra.mxu0 %v1747
        %4021 = vmatprep.subr.mxu0 0.0
        %4022 = vmatpush2.msra.mxu0 %v1746
        %4023 = vmatprep.subr.mxu0 0.0
        %4024 = vmatpush2.msra.mxu0 %v1745
        %4025 = vmatprep.subr.mxu0 0.0
        %4026 = vmatpush2.msra.mxu0 %v1744
        %4027 = vmatprep.subr.mxu0 0.0
        %4028 = vmatpush2.msra.mxu0 %v1743
        %4029 = vmatprep.subr.mxu0 0.0
        %4030 = vmatpush2.msra.mxu0 %v1742
        %4031 = vmatprep.subr.mxu0 0.0
        %4032 = vmatpush2.msra.mxu0 %v1741
        %4033 = vmatprep.subr.mxu0 0.0
        %4034 = vmatpush2.msra.mxu0 %v1740
        %4035 = vmatprep.subr.mxu0 0.0
        %4036 = vmatpush2.msra.mxu0 %v1739
        %4037 = vmatprep.subr.mxu0 0.0
        %4038 = vmatpush2.msra.mxu0 %v1738
        %4039 = vmatprep.subr.mxu0 0.0
        %4040 = vmatpush2.msra.mxu0 %v1737
        %4041 = vmatprep.subr.mxu0 0.0
        %4042 = vmatpush2.msra.mxu0 %v1736
        %4043 = vmatprep.subr.mxu0 0.0
        %4044 = vmatpush2.msra.mxu0 %v1735
        %4045 = vmatprep.subr.mxu0 0.0
        %4046 = vmatpush2.msra.mxu0 %v1734
        %4047 = vmatprep.mubr.f32.mxu0 %v2182
        %4048 = vmatmul.mubr.f32.gmra.mxu0 %v2178
        %v4049 = vpop.f32.mrf.mxu0
        %v4050 = vadd.f32 %v3980, %v4049
        %v4051 = vpop.f32.mrf.mxu0
        %4052 = vdwg.mxu0
        %4053 = vmatprep.subr.mxu0 0.0
        %4054 = vmatpush1.msra.mxu0 %v1765
        %4055 = vmatprep.subr.mxu0 0.0
        %4056 = vmatpush1.msra.mxu0 %v1764
        %4057 = vmatprep.subr.mxu0 0.0
        %4058 = vmatpush1.msra.mxu0 %v1763
        %4059 = vmatprep.subr.mxu0 0.0
        %4060 = vmatpush1.msra.mxu0 %v1762
        %4061 = vmatprep.subr.mxu0 0.0
        %4062 = vmatpush1.msra.mxu0 %v1761
        %4063 = vmatprep.subr.mxu0 0.0
        %4064 = vmatpush1.msra.mxu0 %v1760
        %4065 = vmatprep.subr.mxu0 0.0
        %4066 = vmatpush1.msra.mxu0 %v1759
        %4067 = vmatprep.subr.mxu0 0.0
        %4068 = vmatpush1.msra.mxu0 %v1758
        %4069 = vmatprep.subr.mxu0 0.0
        %4070 = vmatpush1.msra.mxu0 %v1757
        %4071 = vmatprep.subr.mxu0 0.0
        %4072 = vmatpush1.msra.mxu0 %v1756
        %4073 = vmatprep.subr.mxu0 0.0
        %4074 = vmatpush1.msra.mxu0 %v1755
        %4075 = vmatprep.subr.mxu0 0.0
        %4076 = vmatpush1.msra.mxu0 %v1754
        %4077 = vmatprep.subr.mxu0 0.0
        %4078 = vmatpush1.msra.mxu0 %v1753
        %4079 = vmatprep.subr.mxu0 0.0
        %4080 = vmatpush1.msra.mxu0 %v1752
        %4081 = vmatprep.subr.mxu0 0.0
        %4082 = vmatpush1.msra.mxu0 %v1751
        %4083 = vmatprep.subr.mxu0 0.0
        %4084 = vmatpush1.msra.mxu0 %v1750
        %4085 = vmatprep.subr.mxu0 0.0
        %4086 = vmatpush2.msra.mxu0 %v1781
        %4087 = vmatprep.subr.mxu0 0.0
        %4088 = vmatpush2.msra.mxu0 %v1780
        %4089 = vmatprep.subr.mxu0 0.0
        %4090 = vmatpush2.msra.mxu0 %v1779
        %4091 = vmatprep.subr.mxu0 0.0
        %4092 = vmatpush2.msra.mxu0 %v1778
        %4093 = vmatprep.subr.mxu0 0.0
        %4094 = vmatpush2.msra.mxu0 %v1777
        %4095 = vmatprep.subr.mxu0 0.0
        %4096 = vmatpush2.msra.mxu0 %v1776
        %4097 = vmatprep.subr.mxu0 0.0
        %4098 = vmatpush2.msra.mxu0 %v1775
        %4099 = vmatprep.subr.mxu0 0.0
        %4100 = vmatpush2.msra.mxu0 %v1774
        %4101 = vmatprep.subr.mxu0 0.0
        %4102 = vmatpush2.msra.mxu0 %v1773
        %4103 = vmatprep.subr.mxu0 0.0
        %4104 = vmatpush2.msra.mxu0 %v1772
        %4105 = vmatprep.subr.mxu0 0.0
        %4106 = vmatpush2.msra.mxu0 %v1771
        %4107 = vmatprep.subr.mxu0 0.0
        %4108 = vmatpush2.msra.mxu0 %v1770
        %4109 = vmatprep.subr.mxu0 0.0
        %4110 = vmatpush2.msra.mxu0 %v1769
        %4111 = vmatprep.subr.mxu0 0.0
        %4112 = vmatpush2.msra.mxu0 %v1768
        %4113 = vmatprep.subr.mxu0 0.0
        %4114 = vmatpush2.msra.mxu0 %v1767
        %4115 = vmatprep.subr.mxu0 0.0
        %4116 = vmatpush2.msra.mxu0 %v1766
        %4117 = vmatprep.mubr.f32.mxu0 %v2190
        %4118 = vmatmul.mubr.f32.gmra.mxu0 %v2186
        %v4119 = vpop.f32.mrf.mxu0
        %v4120 = vadd.f32 %v4050, %v4119
        %v4121 = vpop.f32.mrf.mxu0
        %4122 = vdwg.mxu0
        %4123 = vmatprep.subr.mxu0 0.0
        %4124 = vmatpush1.msra.mxu0 %v1797
        %4125 = vmatprep.subr.mxu0 0.0
        %4126 = vmatpush1.msra.mxu0 %v1796
        %4127 = vmatprep.subr.mxu0 0.0
        %4128 = vmatpush1.msra.mxu0 %v1795
        %4129 = vmatprep.subr.mxu0 0.0
        %4130 = vmatpush1.msra.mxu0 %v1794
        %4131 = vmatprep.subr.mxu0 0.0
        %4132 = vmatpush1.msra.mxu0 %v1793
        %4133 = vmatprep.subr.mxu0 0.0
        %4134 = vmatpush1.msra.mxu0 %v1792
        %4135 = vmatprep.subr.mxu0 0.0
        %4136 = vmatpush1.msra.mxu0 %v1791
        %4137 = vmatprep.subr.mxu0 0.0
        %4138 = vmatpush1.msra.mxu0 %v1790
        %4139 = vmatprep.subr.mxu0 0.0
        %4140 = vmatpush1.msra.mxu0 %v1789
        %4141 = vmatprep.subr.mxu0 0.0
        %4142 = vmatpush1.msra.mxu0 %v1788
        %4143 = vmatprep.subr.mxu0 0.0
        %4144 = vmatpush1.msra.mxu0 %v1787
        %4145 = vmatprep.subr.mxu0 0.0
        %4146 = vmatpush1.msra.mxu0 %v1786
        %4147 = vmatprep.subr.mxu0 0.0
        %4148 = vmatpush1.msra.mxu0 %v1785
        %4149 = vmatprep.subr.mxu0 0.0
        %4150 = vmatpush1.msra.mxu0 %v1784
        %4151 = vmatprep.subr.mxu0 0.0
        %4152 = vmatpush1.msra.mxu0 %v1783
        %4153 = vmatprep.subr.mxu0 0.0
        %4154 = vmatpush1.msra.mxu0 %v1782
        %4155 = vmatprep.subr.mxu0 0.0
        %4156 = vmatpush2.msra.mxu0 %v1813
        %4157 = vmatprep.subr.mxu0 0.0
        %4158 = vmatpush2.msra.mxu0 %v1812
        %4159 = vmatprep.subr.mxu0 0.0
        %4160 = vmatpush2.msra.mxu0 %v1811
        %4161 = vmatprep.subr.mxu0 0.0
        %4162 = vmatpush2.msra.mxu0 %v1810
        %4163 = vmatprep.subr.mxu0 0.0
        %4164 = vmatpush2.msra.mxu0 %v1809
        %4165 = vmatprep.subr.mxu0 0.0
        %4166 = vmatpush2.msra.mxu0 %v1808
        %4167 = vmatprep.subr.mxu0 0.0
        %4168 = vmatpush2.msra.mxu0 %v1807
        %4169 = vmatprep.subr.mxu0 0.0
        %4170 = vmatpush2.msra.mxu0 %v1806
        %4171 = vmatprep.subr.mxu0 0.0
        %4172 = vmatpush2.msra.mxu0 %v1805
        %4173 = vmatprep.subr.mxu0 0.0
        %4174 = vmatpush2.msra.mxu0 %v1804
        %4175 = vmatprep.subr.mxu0 0.0
        %4176 = vmatpush2.msra.mxu0 %v1803
        %4177 = vmatprep.subr.mxu0 0.0
        %4178 = vmatpush2.msra.mxu0 %v1802
        %4179 = vmatprep.subr.mxu0 0.0
        %4180 = vmatpush2.msra.mxu0 %v1801
        %4181 = vmatprep.subr.mxu0 0.0
        %4182 = vmatpush2.msra.mxu0 %v1800
        %4183 = vmatprep.subr.mxu0 0.0
        %4184 = vmatpush2.msra.mxu0 %v1799
        %4185 = vmatprep.subr.mxu0 0.0
        %4186 = vmatpush2.msra.mxu0 %v1798
        %4187 = vmatprep.mubr.f32.mxu0 %v2198
        %4188 = vmatmul.mubr.f32.gmra.mxu0 %v2194
        %v4189 = vpop.f32.mrf.mxu0
        %v4190 = vadd.f32 %v4120, %v4189
        %v4191 = vpop.f32.mrf.mxu0
        %4192 = vdwg.mxu0
        %4193 = vmatprep.subr.mxu0 0.0
        %4194 = vmatpush1.msra.mxu0 %v1829
        %4195 = vmatprep.subr.mxu0 0.0
        %4196 = vmatpush1.msra.mxu0 %v1828
        %4197 = vmatprep.subr.mxu0 0.0
        %4198 = vmatpush1.msra.mxu0 %v1827
        %4199 = vmatprep.subr.mxu0 0.0
        %4200 = vmatpush1.msra.mxu0 %v1826
        %4201 = vmatprep.subr.mxu0 0.0
        %4202 = vmatpush1.msra.mxu0 %v1825
        %4203 = vmatprep.subr.mxu0 0.0
        %4204 = vmatpush1.msra.mxu0 %v1824
        %4205 = vmatprep.subr.mxu0 0.0
        %4206 = vmatpush1.msra.mxu0 %v1823
        %4207 = vmatprep.subr.mxu0 0.0
        %4208 = vmatpush1.msra.mxu0 %v1822
        %4209 = vmatprep.subr.mxu0 0.0
        %4210 = vmatpush1.msra.mxu0 %v1821
        %4211 = vmatprep.subr.mxu0 0.0
        %4212 = vmatpush1.msra.mxu0 %v1820
        %4213 = vmatprep.subr.mxu0 0.0
        %4214 = vmatpush1.msra.mxu0 %v1819
        %4215 = vmatprep.subr.mxu0 0.0
        %4216 = vmatpush1.msra.mxu0 %v1818
        %4217 = vmatprep.subr.mxu0 0.0
        %4218 = vmatpush1.msra.mxu0 %v1817
        %4219 = vmatprep.subr.mxu0 0.0
        %4220 = vmatpush1.msra.mxu0 %v1816
        %4221 = vmatprep.subr.mxu0 0.0
        %4222 = vmatpush1.msra.mxu0 %v1815
        %4223 = vmatprep.subr.mxu0 0.0
        %4224 = vmatpush1.msra.mxu0 %v1814
        %4225 = vmatprep.subr.mxu0 0.0
        %4226 = vmatpush2.msra.mxu0 %v1845
        %4227 = vmatprep.subr.mxu0 0.0
        %4228 = vmatpush2.msra.mxu0 %v1844
        %4229 = vmatprep.subr.mxu0 0.0
        %4230 = vmatpush2.msra.mxu0 %v1843
        %4231 = vmatprep.subr.mxu0 0.0
        %4232 = vmatpush2.msra.mxu0 %v1842
        %4233 = vmatprep.subr.mxu0 0.0
        %4234 = vmatpush2.msra.mxu0 %v1841
        %4235 = vmatprep.subr.mxu0 0.0
        %4236 = vmatpush2.msra.mxu0 %v1840
        %4237 = vmatprep.subr.mxu0 0.0
        %4238 = vmatpush2.msra.mxu0 %v1839
        %4239 = vmatprep.subr.mxu0 0.0
        %4240 = vmatpush2.msra.mxu0 %v1838
        %4241 = vmatprep.subr.mxu0 0.0
        %4242 = vmatpush2.msra.mxu0 %v1837
        %4243 = vmatprep.subr.mxu0 0.0
        %4244 = vmatpush2.msra.mxu0 %v1836
        %4245 = vmatprep.subr.mxu0 0.0
        %4246 = vmatpush2.msra.mxu0 %v1835
        %4247 = vmatprep.subr.mxu0 0.0
        %4248 = vmatpush2.msra.mxu0 %v1834
        %4249 = vmatprep.subr.mxu0 0.0
        %4250 = vmatpush2.msra.mxu0 %v1833
        %4251 = vmatprep.subr.mxu0 0.0
        %4252 = vmatpush2.msra.mxu0 %v1832
        %4253 = vmatprep.subr.mxu0 0.0
        %4254 = vmatpush2.msra.mxu0 %v1831
        %4255 = vmatprep.subr.mxu0 0.0
        %4256 = vmatpush2.msra.mxu0 %v1830
        %4257 = vmatprep.mubr.f32.mxu0 %v2206
        %4258 = vmatmul.mubr.f32.gmra.mxu0 %v2202
        %v4259 = vpop.f32.mrf.mxu0
        %v4260 = vadd.f32 %v4190, %v4259
        %v4261 = vpop.f32.mrf.mxu0
        %4262 = vdwg.mxu0
        %4263 = vmatprep.subr.mxu0 0.0
        %4264 = vmatpush1.msra.mxu0 %v1861
        %4265 = vmatprep.subr.mxu0 0.0
        %4266 = vmatpush1.msra.mxu0 %v1860
        %4267 = vmatprep.subr.mxu0 0.0
        %4268 = vmatpush1.msra.mxu0 %v1859
        %4269 = vmatprep.subr.mxu0 0.0
        %4270 = vmatpush1.msra.mxu0 %v1858
        %4271 = vmatprep.subr.mxu0 0.0
        %4272 = vmatpush1.msra.mxu0 %v1857
        %4273 = vmatprep.subr.mxu0 0.0
        %4274 = vmatpush1.msra.mxu0 %v1856
        %4275 = vmatprep.subr.mxu0 0.0
        %4276 = vmatpush1.msra.mxu0 %v1855
        %4277 = vmatprep.subr.mxu0 0.0
        %4278 = vmatpush1.msra.mxu0 %v1854
        %4279 = vmatprep.subr.mxu0 0.0
        %4280 = vmatpush1.msra.mxu0 %v1853
        %4281 = vmatprep.subr.mxu0 0.0
        %4282 = vmatpush1.msra.mxu0 %v1852
        %4283 = vmatprep.subr.mxu0 0.0
        %4284 = vmatpush1.msra.mxu0 %v1851
        %4285 = vmatprep.subr.mxu0 0.0
        %4286 = vmatpush1.msra.mxu0 %v1850
        %4287 = vmatprep.subr.mxu0 0.0
        %4288 = vmatpush1.msra.mxu0 %v1849
        %4289 = vmatprep.subr.mxu0 0.0
        %4290 = vmatpush1.msra.mxu0 %v1848
        %4291 = vmatprep.subr.mxu0 0.0
        %4292 = vmatpush1.msra.mxu0 %v1847
        %4293 = vmatprep.subr.mxu0 0.0
        %4294 = vmatpush1.msra.mxu0 %v1846
        %4295 = vmatprep.subr.mxu0 0.0
        %4296 = vmatpush2.msra.mxu0 %v1877
        %4297 = vmatprep.subr.mxu0 0.0
        %4298 = vmatpush2.msra.mxu0 %v1876
        %4299 = vmatprep.subr.mxu0 0.0
        %4300 = vmatpush2.msra.mxu0 %v1875
        %4301 = vmatprep.subr.mxu0 0.0
        %4302 = vmatpush2.msra.mxu0 %v1874
        %4303 = vmatprep.subr.mxu0 0.0
        %4304 = vmatpush2.msra.mxu0 %v1873
        %4305 = vmatprep.subr.mxu0 0.0
        %4306 = vmatpush2.msra.mxu0 %v1872
        %4307 = vmatprep.subr.mxu0 0.0
        %4308 = vmatpush2.msra.mxu0 %v1871
        %4309 = vmatprep.subr.mxu0 0.0
        %4310 = vmatpush2.msra.mxu0 %v1870
        %4311 = vmatprep.subr.mxu0 0.0
        %4312 = vmatpush2.msra.mxu0 %v1869
        %4313 = vmatprep.subr.mxu0 0.0
        %4314 = vmatpush2.msra.mxu0 %v1868
        %4315 = vmatprep.subr.mxu0 0.0
        %4316 = vmatpush2.msra.mxu0 %v1867
        %4317 = vmatprep.subr.mxu0 0.0
        %4318 = vmatpush2.msra.mxu0 %v1866
        %4319 = vmatprep.subr.mxu0 0.0
        %4320 = vmatpush2.msra.mxu0 %v1865
        %4321 = vmatprep.subr.mxu0 0.0
        %4322 = vmatpush2.msra.mxu0 %v1864
        %4323 = vmatprep.subr.mxu0 0.0
        %4324 = vmatpush2.msra.mxu0 %v1863
        %4325 = vmatprep.subr.mxu0 0.0
        %4326 = vmatpush2.msra.mxu0 %v1862
        %4327 = vmatprep.mubr.f32.mxu0 %v2214
        %4328 = vmatmul.mubr.f32.gmra.mxu0 %v2210
        %v4329 = vpop.f32.mrf.mxu0
        %v4330 = vadd.f32 %v4260, %v4329
        %v4331 = vpop.f32.mrf.mxu0
        %4332 = vdwg.mxu0
        %4333 = vmatprep.subr.mxu0 0.0
        %4334 = vmatpush1.msra.mxu0 %v1893
        %4335 = vmatprep.subr.mxu0 0.0
        %4336 = vmatpush1.msra.mxu0 %v1892
        %4337 = vmatprep.subr.mxu0 0.0
        %4338 = vmatpush1.msra.mxu0 %v1891
        %4339 = vmatprep.subr.mxu0 0.0
        %4340 = vmatpush1.msra.mxu0 %v1890
        %4341 = vmatprep.subr.mxu0 0.0
        %4342 = vmatpush1.msra.mxu0 %v1889
        %4343 = vmatprep.subr.mxu0 0.0
        %4344 = vmatpush1.msra.mxu0 %v1888
        %4345 = vmatprep.subr.mxu0 0.0
        %4346 = vmatpush1.msra.mxu0 %v1887
        %4347 = vmatprep.subr.mxu0 0.0
        %4348 = vmatpush1.msra.mxu0 %v1886
        %4349 = vmatprep.subr.mxu0 0.0
        %4350 = vmatpush1.msra.mxu0 %v1885
        %4351 = vmatprep.subr.mxu0 0.0
        %4352 = vmatpush1.msra.mxu0 %v1884
        %4353 = vmatprep.subr.mxu0 0.0
        %4354 = vmatpush1.msra.mxu0 %v1883
        %4355 = vmatprep.subr.mxu0 0.0
        %4356 = vmatpush1.msra.mxu0 %v1882
        %4357 = vmatprep.subr.mxu0 0.0
        %4358 = vmatpush1.msra.mxu0 %v1881
        %4359 = vmatprep.subr.mxu0 0.0
        %4360 = vmatpush1.msra.mxu0 %v1880
        %4361 = vmatprep.subr.mxu0 0.0
        %4362 = vmatpush1.msra.mxu0 %v1879
        %4363 = vmatprep.subr.mxu0 0.0
        %4364 = vmatpush1.msra.mxu0 %v1878
        %4365 = vmatprep.subr.mxu0 0.0
        %4366 = vmatpush2.msra.mxu0 %v1909
        %4367 = vmatprep.subr.mxu0 0.0
        %4368 = vmatpush2.msra.mxu0 %v1908
        %4369 = vmatprep.subr.mxu0 0.0
        %4370 = vmatpush2.msra.mxu0 %v1907
        %4371 = vmatprep.subr.mxu0 0.0
        %4372 = vmatpush2.msra.mxu0 %v1906
        %4373 = vmatprep.subr.mxu0 0.0
        %4374 = vmatpush2.msra.mxu0 %v1905
        %4375 = vmatprep.subr.mxu0 0.0
        %4376 = vmatpush2.msra.mxu0 %v1904
        %4377 = vmatprep.subr.mxu0 0.0
        %4378 = vmatpush2.msra.mxu0 %v1903
        %4379 = vmatprep.subr.mxu0 0.0
        %4380 = vmatpush2.msra.mxu0 %v1902
        %4381 = vmatprep.subr.mxu0 0.0
        %4382 = vmatpush2.msra.mxu0 %v1901
        %4383 = vmatprep.subr.mxu0 0.0
        %4384 = vmatpush2.msra.mxu0 %v1900
        %4385 = vmatprep.subr.mxu0 0.0
        %4386 = vmatpush2.msra.mxu0 %v1899
        %4387 = vmatprep.subr.mxu0 0.0
        %4388 = vmatpush2.msra.mxu0 %v1898
        %4389 = vmatprep.subr.mxu0 0.0
        %4390 = vmatpush2.msra.mxu0 %v1897
        %4391 = vmatprep.subr.mxu0 0.0
        %4392 = vmatpush2.msra.mxu0 %v1896
        %4393 = vmatprep.subr.mxu0 0.0
        %4394 = vmatpush2.msra.mxu0 %v1895
        %4395 = vmatprep.subr.mxu0 0.0
        %4396 = vmatpush2.msra.mxu0 %v1894
        %4397 = vmatprep.mubr.f32.mxu0 %v2222
        %4398 = vmatmul.mubr.f32.gmra.mxu0 %v2218
        %v4399 = vpop.f32.mrf.mxu0
        %v4400 = vadd.f32 %v4330, %v4399
        %v4401 = vpop.f32.mrf.mxu0
        %4402 = vdwg.mxu0
        %4403 = vmatprep.subr.mxu0 0.0
        %4404 = vmatpush1.msra.mxu0 %v1925
        %4405 = vmatprep.subr.mxu0 0.0
        %4406 = vmatpush1.msra.mxu0 %v1924
        %4407 = vmatprep.subr.mxu0 0.0
        %4408 = vmatpush1.msra.mxu0 %v1923
        %4409 = vmatprep.subr.mxu0 0.0
        %4410 = vmatpush1.msra.mxu0 %v1922
        %4411 = vmatprep.subr.mxu0 0.0
        %4412 = vmatpush1.msra.mxu0 %v1921
        %4413 = vmatprep.subr.mxu0 0.0
        %4414 = vmatpush1.msra.mxu0 %v1920
        %4415 = vmatprep.subr.mxu0 0.0
        %4416 = vmatpush1.msra.mxu0 %v1919
        %4417 = vmatprep.subr.mxu0 0.0
        %4418 = vmatpush1.msra.mxu0 %v1918
        %4419 = vmatprep.subr.mxu0 0.0
        %4420 = vmatpush1.msra.mxu0 %v1917
        %4421 = vmatprep.subr.mxu0 0.0
        %4422 = vmatpush1.msra.mxu0 %v1916
        %4423 = vmatprep.subr.mxu0 0.0
        %4424 = vmatpush1.msra.mxu0 %v1915
        %4425 = vmatprep.subr.mxu0 0.0
        %4426 = vmatpush1.msra.mxu0 %v1914
        %4427 = vmatprep.subr.mxu0 0.0
        %4428 = vmatpush1.msra.mxu0 %v1913
        %4429 = vmatprep.subr.mxu0 0.0
        %4430 = vmatpush1.msra.mxu0 %v1912
        %4431 = vmatprep.subr.mxu0 0.0
        %4432 = vmatpush1.msra.mxu0 %v1911
        %4433 = vmatprep.subr.mxu0 0.0
        %4434 = vmatpush1.msra.mxu0 %v1910
        %4435 = vmatprep.subr.mxu0 0.0
        %4436 = vmatpush2.msra.mxu0 %v1941
        %4437 = vmatprep.subr.mxu0 0.0
        %4438 = vmatpush2.msra.mxu0 %v1940
        %4439 = vmatprep.subr.mxu0 0.0
        %4440 = vmatpush2.msra.mxu0 %v1939
        %4441 = vmatprep.subr.mxu0 0.0
        %4442 = vmatpush2.msra.mxu0 %v1938
        %4443 = vmatprep.subr.mxu0 0.0
        %4444 = vmatpush2.msra.mxu0 %v1937
        %4445 = vmatprep.subr.mxu0 0.0
        %4446 = vmatpush2.msra.mxu0 %v1936
        %4447 = vmatprep.subr.mxu0 0.0
        %4448 = vmatpush2.msra.mxu0 %v1935
        %4449 = vmatprep.subr.mxu0 0.0
        %4450 = vmatpush2.msra.mxu0 %v1934
        %4451 = vmatprep.subr.mxu0 0.0
        %4452 = vmatpush2.msra.mxu0 %v1933
        %4453 = vmatprep.subr.mxu0 0.0
        %4454 = vmatpush2.msra.mxu0 %v1932
        %4455 = vmatprep.subr.mxu0 0.0
        %4456 = vmatpush2.msra.mxu0 %v1931
        %4457 = vmatprep.subr.mxu0 0.0
        %4458 = vmatpush2.msra.mxu0 %v1930
        %4459 = vmatprep.subr.mxu0 0.0
        %4460 = vmatpush2.msra.mxu0 %v1929
        %4461 = vmatprep.subr.mxu0 0.0
        %4462 = vmatpush2.msra.mxu0 %v1928
        %4463 = vmatprep.subr.mxu0 0.0
        %4464 = vmatpush2.msra.mxu0 %v1927
        %4465 = vmatprep.subr.mxu0 0.0
        %4466 = vmatpush2.msra.mxu0 %v1926
        %4467 = vmatprep.mubr.f32.mxu0 %v2230
        %4468 = vmatmul.mubr.f32.gmra.mxu0 %v2226
        %v4469 = vpop.f32.mrf.mxu0
        %v4470 = vadd.f32 %v4400, %v4469
        %v4471 = vpop.f32.mrf.mxu0
        %4472 = vdwg.mxu0
        %4473 = vmatprep.subr.mxu0 0.0
        %4474 = vmatpush1.msra.mxu0 %v1957
        %4475 = vmatprep.subr.mxu0 0.0
        %4476 = vmatpush1.msra.mxu0 %v1956
        %4477 = vmatprep.subr.mxu0 0.0
        %4478 = vmatpush1.msra.mxu0 %v1955
        %4479 = vmatprep.subr.mxu0 0.0
        %4480 = vmatpush1.msra.mxu0 %v1954
        %4481 = vmatprep.subr.mxu0 0.0
        %4482 = vmatpush1.msra.mxu0 %v1953
        %4483 = vmatprep.subr.mxu0 0.0
        %4484 = vmatpush1.msra.mxu0 %v1952
        %4485 = vmatprep.subr.mxu0 0.0
        %4486 = vmatpush1.msra.mxu0 %v1951
        %4487 = vmatprep.subr.mxu0 0.0
        %4488 = vmatpush1.msra.mxu0 %v1950
        %4489 = vmatprep.subr.mxu0 0.0
        %4490 = vmatpush1.msra.mxu0 %v1949
        %4491 = vmatprep.subr.mxu0 0.0
        %4492 = vmatpush1.msra.mxu0 %v1948
        %4493 = vmatprep.subr.mxu0 0.0
        %4494 = vmatpush1.msra.mxu0 %v1947
        %4495 = vmatprep.subr.mxu0 0.0
        %4496 = vmatpush1.msra.mxu0 %v1946
        %4497 = vmatprep.subr.mxu0 0.0
        %4498 = vmatpush1.msra.mxu0 %v1945
        %4499 = vmatprep.subr.mxu0 0.0
        %4500 = vmatpush1.msra.mxu0 %v1944
        %4501 = vmatprep.subr.mxu0 0.0
        %4502 = vmatpush1.msra.mxu0 %v1943
        %4503 = vmatprep.subr.mxu0 0.0
        %4504 = vmatpush1.msra.mxu0 %v1942
        %4505 = vmatprep.subr.mxu0 0.0
        %4506 = vmatpush2.msra.mxu0 %v1973
        %4507 = vmatprep.subr.mxu0 0.0
        %4508 = vmatpush2.msra.mxu0 %v1972
        %4509 = vmatprep.subr.mxu0 0.0
        %4510 = vmatpush2.msra.mxu0 %v1971
        %4511 = vmatprep.subr.mxu0 0.0
        %4512 = vmatpush2.msra.mxu0 %v1970
        %4513 = vmatprep.subr.mxu0 0.0
        %4514 = vmatpush2.msra.mxu0 %v1969
        %4515 = vmatprep.subr.mxu0 0.0
        %4516 = vmatpush2.msra.mxu0 %v1968
        %4517 = vmatprep.subr.mxu0 0.0
        %4518 = vmatpush2.msra.mxu0 %v1967
        %4519 = vmatprep.subr.mxu0 0.0
        %4520 = vmatpush2.msra.mxu0 %v1966
        %4521 = vmatprep.subr.mxu0 0.0
        %4522 = vmatpush2.msra.mxu0 %v1965
        %4523 = vmatprep.subr.mxu0 0.0
        %4524 = vmatpush2.msra.mxu0 %v1964
        %4525 = vmatprep.subr.mxu0 0.0
        %4526 = vmatpush2.msra.mxu0 %v1963
        %4527 = vmatprep.subr.mxu0 0.0
        %4528 = vmatpush2.msra.mxu0 %v1962
        %4529 = vmatprep.subr.mxu0 0.0
        %4530 = vmatpush2.msra.mxu0 %v1961
        %4531 = vmatprep.subr.mxu0 0.0
        %4532 = vmatpush2.msra.mxu0 %v1960
        %4533 = vmatprep.subr.mxu0 0.0
        %4534 = vmatpush2.msra.mxu0 %v1959
        %4535 = vmatprep.subr.mxu0 0.0
        %4536 = vmatpush2.msra.mxu0 %v1958
        %4537 = vmatprep.mubr.f32.mxu0 %v2238
        %4538 = vmatmul.mubr.f32.gmra.mxu0 %v2234
        %v4539 = vpop.f32.mrf.mxu0
        %v4540 = vadd.f32 %v4470, %v4539
        %v4541 = vpop.f32.mrf.mxu0
        %4542 = vdwg.mxu0
        %4543 = vst [vmem:[%s319] sm:$0x1] %v4540
        %s4544 = sand.u32 %s164, 1
        %s4545 = scalar_lea.sflag [#allocation6], %s4544
        %s4546 = sand.u32 %s164, 1
        %s4547 = scalar_lea.vmem [#allocation13], %s4546
        // Predicated region
        $region65: #{tpu_custom_call.1} parent=43 // pred_check
          %p4548 = pneg %p174
        $region66: #{tpu_custom_call.1} parent=43 // pred_check_branch
          %4550 = sbr.rel (%p4548) target = $region68
        $region67: #{tpu_custom_call.1} parent=43 // pred_region
          %s4552 = ssub.s32 16, 16
          %4553 = vsyncadd %s4545, %s4552
          %s4554 = smul.addr %s25, 16
          %s4555 = scalar_lea.hbm %s6, %s4554
          %s4557 = sshll.u32 %s4547, 4
          %s4558 = int_to_ptr.vmem [resolvable:$true] %s4557
          %4560 = dma.vmem_to_hbm [thread:$0]  %s4558, 16, %s4555, %s4545
        $region68: #{tpu_custom_call.1} parent=43 // pred_fallthru
          _
      $region44: #{tpu_custom_call.1} parent=5 // pred_fallthru
        _
      %p4561 = scmp.le.s32.totalorder 2, %s20
      // Predicated region
      $region69: #{tpu_custom_call.1} parent=5 // pred_check
        %p4562 = pneg %p4561
      $region70: #{tpu_custom_call.1} parent=5 // pred_check_branch
        %4564 = sbr.rel (%p4562) target = $region72
      $region71: #{tpu_custom_call.1} parent=5 // pred_region
        %s4565 = ssub.s32 %s20, 2
        // Predicated region
        $region73: #{tpu_custom_call.1} parent=71 // pred_check
          %p4566 = pneg %p180
        $region74: #{tpu_custom_call.1} parent=71 // pred_check_branch
          %4568 = sbr.rel (%p4566) target = $region76
        $region75: #{tpu_custom_call.1} parent=71 // pred_region
          %s4569 = sand.u32 %s165, 1
          %s4570 = scalar_lea.sflag [#allocation6], %s4569
          %s4571 = sand.u32 %s165, 1
          %s4572 = scalar_lea.vmem [#allocation13], %s4571
          %4573 = dma.done %s4570, 16
        $region76: #{tpu_custom_call.1} parent=71 // pred_fallthru
          _
      $region72: #{tpu_custom_call.1} parent=5 // pred_fallthru
        _
    $region6: #{tpu_custom_call.1} parent=1 // loop_footer
      %s24 = sadd.s32 1, %s20
    $region7: #{tpu_custom_call.1} parent=1 // loop_footer_branch
      %19 = sbr.rel target = $region3
    $region8: #{tpu_custom_call.1} parent=1 // loop_exit
      _
    %4574 = vsyncpa [#allocation5], 1
    %s4575 = scalar_lea.sflag [#allocation5], 1
    %4576 = vsyncpa %s4575, 1
    %4577 = vsyncpa [#allocation8], 1
    %4578 = vsyncpa [#allocation11], 1
    %4579 = vsyncpa [#allocation6], 1
    %s4580 = scalar_lea.sflag [#allocation6], 1
    %4581 = vsyncpa %s4580, 1

</llo_original>
